<compile_context>
chip_gen: v7x
topology: tpu7x:2x2x1
jax: 0.10.0
libtpu: 0.0.40
codegen_flags: <defaults>
</compile_context>

<pallas_src>
import functools

import jax
import jax.numpy as jnp
from jax.experimental import pallas as pl
from jax.experimental.pallas import tpu as pltpu

VMEM_SPEC = pl.BlockSpec(memory_space=pltpu.MemorySpace.VMEM)


# ------------------------------ fused kernel -------------------------------

def _stnorm_kernel(x_ref, sw_ref, sb_ref, ssum_ref,
                   tg_ref, tb_ref, sg_ref, sbt_ref,
                   wfg_ref, bfg_ref, wsr_ref, bsr_ref,
                   w1_ref, b1_ref, w2_ref, b2_ref,
                   o_ref, *, dilations, ksize, nbatch, t_in, n_nodes, channels):
    B, T, N, C = nbatch, t_in, n_nodes, channels
    NC = N * C
    inv_n = 1.0 / N
    inv_nm1 = 1.0 / (N - 1)

    def tshift(a, t0, t_out, t_cur):
        # rows are (b, t); take the per-batch time window [t0, t0 + t_out)
        parts = [a[b * t_cur + t0: b * t_cur + t0 + t_out] for b in range(B)]
        return parts[0] if B == 1 else jnp.concatenate(parts, axis=0)

    # ---- start 1x1 conv: block-diagonal over nodes, emits lane-dense [B*T, NC]
    x = (jnp.dot(x_ref[...], sw_ref[...], preferred_element_type=jnp.float32)
         + sb_ref[...])

    skip = None
    t_skip = 0
    for i, d in enumerate(dilations):
        t_out = T - d * (ksize - 1)

        # ---- TNorm: stats over (batch, time), biased variance (train mode).
        mu_t = jnp.mean(x, axis=0, keepdims=True)
        xc_t = x - mu_t
        var_t = jnp.mean(xc_t * xc_t, axis=0, keepdims=True)
        x_t = xc_t * jax.lax.rsqrt(var_t + 1e-5) * tg_ref[i] + tb_ref[i]

        # ---- SNorm: stats over nodes, unbiased variance (requires N > 1).
        # node-sum-and-broadcast as a lane-dense MXU matmul (no XLU reduce).
        mu_s = jnp.dot(x, ssum_ref[...],
                       preferred_element_type=jnp.float32) * inv_n
        xc_s = x - mu_s
        var_s = jnp.dot(xc_s * xc_s, ssum_ref[...],
                        preferred_element_type=jnp.float32) * inv_nm1
        x_s = xc_s * jax.lax.rsqrt(var_s + 1e-5) * sg_ref[i] + sbt_ref[i]

        # ---- dilated gated conv: ONE block-diagonal matmul for filter|gate.
        # operand block order = tap-major, branch(x, x_t, x_s)-minor; matches
        # the packed weight.  Pure register concat, no VMEM scratch.
        ops = []
        for k in range(ksize):
            t0 = k * d
            ops.append(tshift(x, t0, t_out, T))
            ops.append(tshift(x_t, t0, t_out, T))
            ops.append(tshift(x_s, t0, t_out, T))
        operand = jnp.concatenate(ops, axis=1)          # [B*t_out, k*3*NC]
        fg = (jnp.dot(operand, wfg_ref[i], preferred_element_type=jnp.float32)
              + bfg_ref[i])                             # [B*t_out, 2*NC]
        g = jnp.tanh(fg[:, :NC]) * jax.nn.sigmoid(fg[:, NC:])

        # ---- fused skip + residual 1x1 convs (block-diagonal over nodes)
        sr = (jnp.dot(g, wsr_ref[i], preferred_element_type=jnp.float32)
              + bsr_ref[i])                             # [B*t_out, 2*NC]
        s = sr[:, :NC]
        r = sr[:, NC:]

        if skip is None:
            skip = s
        else:
            skip = s + tshift(skip, t_skip - t_out, t_out, t_skip)
        t_skip = t_out
        x = r + tshift(x, T - t_out, t_out, T)
        T = t_out

    # ---- end head: relu(skip) -> relu(end_conv_1) -> end_conv_2 ----
    h = jnp.maximum(skip, 0.0)
    h = jnp.maximum(
        jnp.dot(h, w1_ref[...], preferred_element_type=jnp.float32)
        + b1_ref[...], 0.0)                             # [B*T, NC]
    # end_conv_2 fused with the output layout: y[b, o*N+n, t]
    for b in range(B):
        hb = h[b * T:(b + 1) * T]                       # [T, NC]
        yb = jnp.einsum('rk,tk->rt', w2_ref[...], hb,
                        preferred_element_type=jnp.float32) + b2_ref[...]
        o_ref[b] = yb                                   # [out_dim*N, T]


# --------------------------- param packing / glue ---------------------------

def pack_params(params, ksize, N, C, out_dim):
    """Pre-pack per-layer params into lane-dense / block-diagonal operands."""
    NC = N * C
    eye_n = jnp.eye(N, dtype=jnp.float32)

    def bdiag(w):                       # [Cin, Cout] -> [N*Cin, N*Cout]
        ci, co = w.shape
        return jnp.einsum('nm,io->nimo', eye_n, w).reshape(N * ci, N * co)

    def tile_lane(v):                   # per-channel vector -> [1, N*C]
        return jnp.tile(jnp.reshape(v, (1, -1)), (1, N))

    layers = params['layers']
    tg = jnp.stack([p['tn_gamma'][0, :, 0, :].reshape(1, NC) for p in layers])
    tb = jnp.stack([p['tn_beta'][0, :, 0, :].reshape(1, NC) for p in layers])
    sg = jnp.stack([tile_lane(p['sn_gamma']) for p in layers])
    sbt = jnp.stack([tile_lane(p['sn_beta']) for p in layers])

    def fg_big(p):
        blocks = []
        for k in range(ksize):
            for br in range(3):
                wfk = p['wf'][k, br * C:(br + 1) * C, :]
                wgk = p['wg'][k, br * C:(br + 1) * C, :]
                blocks.append(jnp.concatenate([bdiag(wfk), bdiag(wgk)], axis=1))
        return jnp.concatenate(blocks, axis=0)          # [k*3*NC, 2*NC]

    wfg = jnp.stack([fg_big(p) for p in layers])
    bfg = jnp.stack([jnp.concatenate([tile_lane(p['bf']), tile_lane(p['bg'])],
                                     axis=1) for p in layers])
    wsr = jnp.stack([jnp.concatenate([bdiag(p['ws']), bdiag(p['wr'])], axis=1)
                     for p in layers])
    bsr = jnp.stack([jnp.concatenate([tile_lane(p['bs']), tile_lane(p['br'])],
                                     axis=1) for p in layers])

    # sum-over-nodes + broadcast-back matrix for SNorm: S[i, j] = [i%C == j%C]
    ssum = jnp.tile(jnp.eye(C, dtype=jnp.float32), (N, N))

    sw = bdiag(params['start_w'])                       # [N*Cin, NC]
    sb = tile_lane(params['start_b'])
    w1 = bdiag(params['end1_w'])                        # [NC, NC]
    b1 = tile_lane(params['end1_b'])
    # end_conv_2 packed so that y[b, o*N+n, t] = sum_c h[(b,t), n*C+c]*w2[c,o]
    w2t = jnp.einsum('nm,co->onmc', eye_n,
                     params['end2_w']).reshape(out_dim * N, NC)
    b2col = jnp.repeat(jnp.reshape(params['end2_b'], (out_dim, 1)), N, axis=0)

    return dict(tg=tg, tb=tb, sg=sg, sbt=sbt, wfg=wfg, bfg=bfg, wsr=wsr,
                bsr=bsr, ssum=ssum, sw=sw, sb=sb, w1=w1, b1=b1, w2t=w2t,
                b2col=b2col)


def stnorm_forward(params, history_data, *, kernel_size, receptive_field,
                   dilations):
    # history_data: [B, L, N, C_in]  (time-major, BasicTS convention)
    B, L, N, Cin = history_data.shape
    assert N > 1, "SNorm uses an unbiased variance over nodes; needs N > 1"
    x = history_data
    if L < receptive_field:
        x = jnp.pad(x, ((0, 0), (receptive_field - L, 0), (0, 0), (0, 0)))
    T0 = x.shape[1]
    C = params['start_w'].shape[1]
    out_dim = params['end2_w'].shape[1]

    packed = pack_params(params, kernel_size, N, C, out_dim)

    T = T0
    for d in dilations:
        T = T - d * (kernel_size - 1)
    t_final = T

    x_in = x.reshape(B * T0, N * Cin)                   # rows (b,t), lanes (n,ci)

    kern = functools.partial(_stnorm_kernel, dilations=tuple(dilations),
                             ksize=kernel_size, nbatch=B, t_in=T0,
                             n_nodes=N, channels=C)
    out = pl.pallas_call(
        kern,
        out_shape=jax.ShapeDtypeStruct((B, out_dim * N, t_final), jnp.float32),
        in_specs=[VMEM_SPEC] * 16,
        out_specs=VMEM_SPEC,
        compiler_params=pltpu.CompilerParams(
            vmem_limit_bytes=32 * 1024 * 1024),
    )(x_in, packed['sw'], packed['sb'], packed['ssum'],
      packed['tg'], packed['tb'], packed['sg'], packed['sbt'],
      packed['wfg'], packed['bfg'], packed['wsr'], packed['bsr'],
      packed['w1'], packed['b1'], packed['w2t'], packed['b2col'])

    # pure reshape (rows are o-major, node-minor) -> [B, out_dim, N, T]
    return out.reshape(B, out_dim, N, t_final)


# --------------------------- pure-JAX reference ----------------------------

def stnorm_reference(params, history_data, *, kernel_size, receptive_field,
                     dilations):
    x = jnp.transpose(history_data, (0, 3, 2, 1))        # [B, C, N, L] (NCHW)
    in_len = x.shape[3]
    if in_len < receptive_field:
        x = jnp.pad(x, ((0, 0), (0, 0), (0, 0), (receptive_field - in_len, 0)))

    def conv1x1(y, w, b):                                # w: [Cin, Cout]
        return jnp.einsum('bcnt,co->bont', y, w) + b.reshape(1, -1, 1, 1)

    def dilated_conv(y, w, b, d):                        # w: [k, Cin, Cout]
        k = w.shape[0]
        Tout = y.shape[3] - d * (k - 1)
        out = b.reshape(1, -1, 1, 1)
        for j in range(k):
            out = out + jnp.einsum('bcnt,co->bont',
                                   y[:, :, :, j * d:j * d + Tout], w[j])
        return out

    x = conv1x1(x, params['start_w'], params['start_b'])
    skip = None
    for i, d in enumerate(dilations):
        p = params['layers'][i]
        residual = x
        # TNorm (training-mode batch stats)
        mu_t = jnp.mean(x, axis=(0, 3), keepdims=True)
        var_t = jnp.var(x, axis=(0, 3), keepdims=True)
        x_t = (x - mu_t) / jnp.sqrt(var_t + 1e-5)
        x_t = (x_t * jnp.transpose(p['tn_gamma'], (0, 3, 1, 2))
               + jnp.transpose(p['tn_beta'], (0, 3, 1, 2)))
        # SNorm
        mu_s = jnp.mean(x, axis=2, keepdims=True)
        var_s = jnp.var(x, axis=2, keepdims=True, ddof=1)
        x_s = (x - mu_s) / jnp.sqrt(var_s + 1e-5)
        x_s = (x_s * p['sn_gamma'].reshape(1, -1, 1, 1)
               + p['sn_beta'].reshape(1, -1, 1, 1))
        xc = jnp.concatenate([x, x_t, x_s], axis=1)
        filt = jnp.tanh(dilated_conv(xc, p['wf'], p['bf'], d))
        gate = jax.nn.sigmoid(dilated_conv(xc, p['wg'], p['bg'], d))
        x = filt * gate
        s = conv1x1(x, p['ws'], p['bs'])
        skip = s if skip is None else s + skip[:, :, :, -s.shape[3]:]
        x = conv1x1(x, p['wr'], p['br'])
        x = x + residual[:, :, :, -x.shape[3]:]
    x = jax.nn.relu(skip)
    rep = jax.nn.relu(conv1x1(x, params['end1_w'], params['end1_b']))
    return conv1x1(rep, params['end2_w'], params['end2_b'])


# ------------------------------ param init --------------------------------

def init_params(key, *, num_nodes, in_dim, out_dim, channels, kernel_size,
                n_layers_total, num):
    keys = iter(jax.random.split(key, 6 + 12 * n_layers_total))

    def w(shape, fan_in):
        return (jax.random.normal(next(keys), shape, jnp.float32)
                / jnp.sqrt(jnp.float32(fan_in)))

    def b(shape):
        return 0.1 * jax.random.normal(next(keys), shape, jnp.float32)

    params = {
        'start_w': w((in_dim, channels), in_dim),
        'start_b': b((1, channels)),
        'end1_w': w((channels, channels), channels),
        'end1_b': b((1, channels)),
        'end2_w': w((channels, out_dim), channels),
        'end2_b': b((1, out_dim)),
        'layers': [],
    }
    cin = num * channels
    for _ in range(n_layers_total):
        params['layers'].append({
            # module init is ones/zeros; perturb to exercise the broadcasts
            'tn_gamma': 1.0 + 0.1 * jax.random.normal(
                next(keys), (1, num_nodes, 1, channels), jnp.float32),
            'tn_beta': 0.1 * jax.random.normal(
                next(keys), (1, num_nodes, 1, channels), jnp.float32),
            'sn_gamma': 1.0 + 0.1 * jax.random.normal(
                next(keys), (1, 1, 1, channels), jnp.float32),
            'sn_beta': 0.1 * jax.random.normal(
                next(keys), (1, 1, 1, channels), jnp.float32),
            'wf': w((kernel_size, cin, channels), cin * kernel_size),
            'bf': b((1, channels)),
            'wg': w((kernel_size, cin, channels), cin * kernel_size),
            'bg': b((1, channels)),
            'ws': w((channels, channels), channels),
            'bs': b((1, channels)),
            'wr': w((channels, channels), channels),
            'br': b((1, channels)),
        })
    return params


# ---------------------------------- main -----------------------------------

if __name__ == "__main__":
    # module config (N * channels = 128 -> one full lane tile)
    num_nodes, in_dim, out_dim, channels = 8, 2, 1, 16
    kernel_size, blocks, layers = 2, 2, 2
    tnorm_bool = snorm_bool = True
    num = int(tnorm_bool) + int(snorm_bool) + 1

    # dilations / receptive field, exactly as in the torch __init__
    dilations = []
    receptive_field = 1
    for _ in range(blocks):
        additional_scope = kernel_size - 1
        d = 1
        for _ in range(layers):
            dilations.append(d)
            d *= 2
            receptive_field += additional_scope
            additional_scope *= 2

    B, L = 2, 13
    key = jax.random.PRNGKey(0)
    k_x, k_p = jax.random.split(key)
    history_data = jax.random.normal(k_x, (B, L, num_nodes, in_dim), jnp.float32)
    params = init_params(k_p, num_nodes=num_nodes, in_dim=in_dim,
                         out_dim=out_dim, channels=channels,
                         kernel_size=kernel_size,
                         n_layers_total=blocks * layers, num=num)

    out = stnorm_forward(params, history_data, kernel_size=kernel_size,
                         receptive_field=receptive_field, dilations=dilations)
    out = jax.block_until_ready(out)

    ref = stnorm_reference(params, history_data, kernel_size=kernel_size,
                           receptive_field=receptive_field, dilations=dilations)
    assert out.shape == ref.shape, (out.shape, ref.shape)
    max_err = float(jnp.max(jnp.abs(out - ref)))
    if not bool(jnp.allclose(out, ref, rtol=5e-3, atol=5e-3)):
        raise AssertionError(f"Pallas/reference mismatch, max abs err {max_err}")
    print("KERNEL_OK")
</pallas_src>

<mosaic_0001>
module attributes {stable_mosaic.version = 11 : i64} {
  func.func @_stnorm_kernel(%arg0: memref<26x16xf32, #tpu.memory_space<vmem>>, %arg1: memref<16x128xf32, #tpu.memory_space<vmem>>, %arg2: memref<1x128xf32, #tpu.memory_space<vmem>>, %arg3: memref<128x128xf32, #tpu.memory_space<vmem>>, %arg4: memref<4x1x128xf32, #tpu.memory_space<vmem>>, %arg5: memref<4x1x128xf32, #tpu.memory_space<vmem>>, %arg6: memref<4x1x128xf32, #tpu.memory_space<vmem>>, %arg7: memref<4x1x128xf32, #tpu.memory_space<vmem>>, %arg8: memref<4x768x256xf32, #tpu.memory_space<vmem>>, %arg9: memref<4x1x256xf32, #tpu.memory_space<vmem>>, %arg10: memref<4x128x256xf32, #tpu.memory_space<vmem>>, %arg11: memref<4x1x256xf32, #tpu.memory_space<vmem>>, %arg12: memref<128x128xf32, #tpu.memory_space<vmem>>, %arg13: memref<1x128xf32, #tpu.memory_space<vmem>>, %arg14: memref<8x128xf32, #tpu.memory_space<vmem>>, %arg15: memref<8x1xf32, #tpu.memory_space<vmem>>, %arg16: memref<2x8x7xf32, #tpu.memory_space<vmem>>) attributes {dimension_semantics = [], scalar_prefetch = 0 : i64, scratch_operands = 0 : i64, tpu.core_type = #tpu.core_type<tc>} {
    %c0 = arith.constant 0 : index
    %c0_0 = arith.constant 0 : index
    %0 = vector.load %arg0[%c0, %c0_0] : memref<26x16xf32, #tpu.memory_space<vmem>>, vector<26x16xf32>
    %c0_1 = arith.constant 0 : index
    %c0_2 = arith.constant 0 : index
    %1 = vector.load %arg1[%c0_1, %c0_2] : memref<16x128xf32, #tpu.memory_space<vmem>>, vector<16x128xf32>
    %cst = arith.constant dense<0.000000e+00> : vector<26x128xf32>
    %2 = tpu.matmul %0, %1, %cst {dimension_numbers = #tpu.dot_dimension_numbers<[1], [0], [0], [1], [0, 0, 1, 1], [], []>} : vector<26x16xf32>, vector<16x128xf32>, vector<26x128xf32> -> vector<26x128xf32>
    %c0_3 = arith.constant 0 : index
    %c0_4 = arith.constant 0 : index
    %3 = vector.load %arg2[%c0_3, %c0_4] : memref<1x128xf32, #tpu.memory_space<vmem>>, vector<1x128xf32>
    %4 = vector.broadcast %3 : vector<1x128xf32> to vector<26x128xf32>
    %5 = arith.addf %2, %4 : vector<26x128xf32>
    %cst_5 = arith.constant dense<0.000000e+00> : vector<128xf32>
    %6 = vector.multi_reduction <add>, %5, %cst_5 [0] : vector<26x128xf32> to vector<128xf32>
    %7 = vector.shape_cast %6 : vector<128xf32> to vector<1x128xf32>
    %cst_6 = arith.constant 2.600000e+01 : f32
    %8 = vector.broadcast %cst_6 : f32 to vector<1x128xf32>
    %9 = arith.divf %7, %8 : vector<1x128xf32>
    %10 = vector.broadcast %9 : vector<1x128xf32> to vector<26x128xf32>
    %11 = arith.subf %5, %10 : vector<26x128xf32>
    %12 = arith.mulf %11, %11 : vector<26x128xf32>
    %cst_7 = arith.constant dense<0.000000e+00> : vector<128xf32>
    %13 = vector.multi_reduction <add>, %12, %cst_7 [0] : vector<26x128xf32> to vector<128xf32>
    %14 = vector.shape_cast %13 : vector<128xf32> to vector<1x128xf32>
    %cst_8 = arith.constant 2.600000e+01 : f32
    %15 = vector.broadcast %cst_8 : f32 to vector<1x128xf32>
    %16 = arith.divf %14, %15 : vector<1x128xf32>
    %cst_9 = arith.constant 9.99999974E-6 : f32
    %17 = vector.broadcast %cst_9 : f32 to vector<1x128xf32>
    %18 = arith.addf %16, %17 : vector<1x128xf32>
    %19 = math.rsqrt %18 : vector<1x128xf32>
    %20 = vector.broadcast %19 : vector<1x128xf32> to vector<26x128xf32>
    %21 = arith.mulf %11, %20 : vector<26x128xf32>
    %c0_10 = arith.constant 0 : index
    %c0_11 = arith.constant 0 : index
    %c0_12 = arith.constant 0 : index
    %22 = vector.load %arg4[%c0_10, %c0_11, %c0_12] : memref<4x1x128xf32, #tpu.memory_space<vmem>>, vector<1x1x128xf32>
    %23 = vector.shape_cast %22 : vector<1x1x128xf32> to vector<1x128xf32>
    %24 = vector.broadcast %23 : vector<1x128xf32> to vector<26x128xf32>
    %25 = arith.mulf %21, %24 : vector<26x128xf32>
    %c0_13 = arith.constant 0 : index
    %c0_14 = arith.constant 0 : index
    %c0_15 = arith.constant 0 : index
    %26 = vector.load %arg5[%c0_13, %c0_14, %c0_15] : memref<4x1x128xf32, #tpu.memory_space<vmem>>, vector<1x1x128xf32>
    %27 = vector.shape_cast %26 : vector<1x1x128xf32> to vector<1x128xf32>
    %28 = vector.broadcast %27 : vector<1x128xf32> to vector<26x128xf32>
    %29 = arith.addf %25, %28 : vector<26x128xf32>
    %c0_16 = arith.constant 0 : index
    %c0_17 = arith.constant 0 : index
    %30 = vector.load %arg3[%c0_16, %c0_17] : memref<128x128xf32, #tpu.memory_space<vmem>>, vector<128x128xf32>
    %cst_18 = arith.constant dense<0.000000e+00> : vector<26x128xf32>
    %31 = tpu.matmul %5, %30, %cst_18 {dimension_numbers = #tpu.dot_dimension_numbers<[1], [0], [0], [1], [0, 0, 1, 1], [], []>} : vector<26x128xf32>, vector<128x128xf32>, vector<26x128xf32> -> vector<26x128xf32>
    %cst_19 = arith.constant 1.250000e-01 : f32
    %32 = vector.broadcast %cst_19 : f32 to vector<26x128xf32>
    %33 = arith.mulf %31, %32 : vector<26x128xf32>
    %34 = arith.subf %5, %33 : vector<26x128xf32>
    %35 = arith.mulf %34, %34 : vector<26x128xf32>
    %c0_20 = arith.constant 0 : index
    %c0_21 = arith.constant 0 : index
    %36 = vector.load %arg3[%c0_20, %c0_21] : memref<128x128xf32, #tpu.memory_space<vmem>>, vector<128x128xf32>
    %cst_22 = arith.constant dense<0.000000e+00> : vector<26x128xf32>
    %37 = tpu.matmul %35, %36, %cst_22 {dimension_numbers = #tpu.dot_dimension_numbers<[1], [0], [0], [1], [0, 0, 1, 1], [], []>} : vector<26x128xf32>, vector<128x128xf32>, vector<26x128xf32> -> vector<26x128xf32>
    %cst_23 = arith.constant 0.142857149 : f32
    %38 = vector.broadcast %cst_23 : f32 to vector<26x128xf32>
    %39 = arith.mulf %37, %38 : vector<26x128xf32>
    %cst_24 = arith.constant 9.99999974E-6 : f32
    %40 = vector.broadcast %cst_24 : f32 to vector<26x128xf32>
    %41 = arith.addf %39, %40 : vector<26x128xf32>
    %42 = math.rsqrt %41 : vector<26x128xf32>
    %43 = arith.mulf %34, %42 : vector<26x128xf32>
    %c0_25 = arith.constant 0 : index
    %c0_26 = arith.constant 0 : index
    %c0_27 = arith.constant 0 : index
    %44 = vector.load %arg6[%c0_25, %c0_26, %c0_27] : memref<4x1x128xf32, #tpu.memory_space<vmem>>, vector<1x1x128xf32>
    %45 = vector.shape_cast %44 : vector<1x1x128xf32> to vector<1x128xf32>
    %46 = vector.broadcast %45 : vector<1x128xf32> to vector<26x128xf32>
    %47 = arith.mulf %43, %46 : vector<26x128xf32>
    %c0_28 = arith.constant 0 : index
    %c0_29 = arith.constant 0 : index
    %c0_30 = arith.constant 0 : index
    %48 = vector.load %arg7[%c0_28, %c0_29, %c0_30] : memref<4x1x128xf32, #tpu.memory_space<vmem>>, vector<1x1x128xf32>
    %49 = vector.shape_cast %48 : vector<1x1x128xf32> to vector<1x128xf32>
    %50 = vector.broadcast %49 : vector<1x128xf32> to vector<26x128xf32>
    %51 = arith.addf %47, %50 : vector<26x128xf32>
    %52 = vector.extract_strided_slice %5 {offsets = [0, 0], sizes = [12, 128], strides = [1, 1]} : vector<26x128xf32> to vector<12x128xf32>
    %53 = vector.extract_strided_slice %5 {offsets = [13, 0], sizes = [12, 128], strides = [1, 1]} : vector<26x128xf32> to vector<12x128xf32>
    %54 = tpu.concatenate %52, %53 in 0 : vector<12x128xf32>, vector<12x128xf32> -> vector<24x128xf32>
    %55 = vector.extract_strided_slice %29 {offsets = [0, 0], sizes = [12, 128], strides = [1, 1]} : vector<26x128xf32> to vector<12x128xf32>
    %56 = vector.extract_strided_slice %29 {offsets = [13, 0], sizes = [12, 128], strides = [1, 1]} : vector<26x128xf32> to vector<12x128xf32>
    %57 = tpu.concatenate %55, %56 in 0 : vector<12x128xf32>, vector<12x128xf32> -> vector<24x128xf32>
    %58 = vector.extract_strided_slice %51 {offsets = [0, 0], sizes = [12, 128], strides = [1, 1]} : vector<26x128xf32> to vector<12x128xf32>
    %59 = vector.extract_strided_slice %51 {offsets = [13, 0], sizes = [12, 128], strides = [1, 1]} : vector<26x128xf32> to vector<12x128xf32>
    %60 = tpu.concatenate %58, %59 in 0 : vector<12x128xf32>, vector<12x128xf32> -> vector<24x128xf32>
    %61 = vector.extract_strided_slice %5 {offsets = [1, 0], sizes = [12, 128], strides = [1, 1]} : vector<26x128xf32> to vector<12x128xf32>
    %62 = vector.extract_strided_slice %5 {offsets = [14, 0], sizes = [12, 128], strides = [1, 1]} : vector<26x128xf32> to vector<12x128xf32>
    %63 = tpu.concatenate %61, %62 in 0 : vector<12x128xf32>, vector<12x128xf32> -> vector<24x128xf32>
    %64 = vector.extract_strided_slice %29 {offsets = [1, 0], sizes = [12, 128], strides = [1, 1]} : vector<26x128xf32> to vector<12x128xf32>
    %65 = vector.extract_strided_slice %29 {offsets = [14, 0], sizes = [12, 128], strides = [1, 1]} : vector<26x128xf32> to vector<12x128xf32>
    %66 = tpu.concatenate %64, %65 in 0 : vector<12x128xf32>, vector<12x128xf32> -> vector<24x128xf32>
    %67 = vector.extract_strided_slice %51 {offsets = [1, 0], sizes = [12, 128], strides = [1, 1]} : vector<26x128xf32> to vector<12x128xf32>
    %68 = vector.extract_strided_slice %51 {offsets = [14, 0], sizes = [12, 128], strides = [1, 1]} : vector<26x128xf32> to vector<12x128xf32>
    %69 = tpu.concatenate %67, %68 in 0 : vector<12x128xf32>, vector<12x128xf32> -> vector<24x128xf32>
    %70 = tpu.concatenate %54, %57, %60, %63, %66, %69 in 1 : vector<24x128xf32>, vector<24x128xf32>, vector<24x128xf32>, vector<24x128xf32>, vector<24x128xf32>, vector<24x128xf32> -> vector<24x768xf32>
    %c0_31 = arith.constant 0 : index
    %c0_32 = arith.constant 0 : index
    %c0_33 = arith.constant 0 : index
    %71 = vector.load %arg8[%c0_31, %c0_32, %c0_33] : memref<4x768x256xf32, #tpu.memory_space<vmem>>, vector<1x768x256xf32>
    %72 = vector.shape_cast %71 : vector<1x768x256xf32> to vector<768x256xf32>
    %cst_34 = arith.constant dense<0.000000e+00> : vector<24x256xf32>
    %73 = tpu.matmul %70, %72, %cst_34 {dimension_numbers = #tpu.dot_dimension_numbers<[1], [0], [0], [1], [0, 0, 1, 1], [], []>} : vector<24x768xf32>, vector<768x256xf32>, vector<24x256xf32> -> vector<24x256xf32>
    %c0_35 = arith.constant 0 : index
    %c0_36 = arith.constant 0 : index
    %c0_37 = arith.constant 0 : index
    %74 = vector.load %arg9[%c0_35, %c0_36, %c0_37] : memref<4x1x256xf32, #tpu.memory_space<vmem>>, vector<1x1x256xf32>
    %75 = vector.shape_cast %74 : vector<1x1x256xf32> to vector<1x256xf32>
    %76 = vector.broadcast %75 : vector<1x256xf32> to vector<24x256xf32>
    %77 = arith.addf %73, %76 : vector<24x256xf32>
    %78 = vector.extract_strided_slice %77 {offsets = [0, 0], sizes = [24, 128], strides = [1, 1]} : vector<24x256xf32> to vector<24x128xf32>
    %79 = math.tanh %78 : vector<24x128xf32>
    %80 = vector.extract_strided_slice %77 {offsets = [0, 128], sizes = [24, 128], strides = [1, 1]} : vector<24x256xf32> to vector<24x128xf32>
    %81 = arith.negf %80 : vector<24x128xf32>
    %82 = math.exp %81 : vector<24x128xf32>
    %cst_38 = arith.constant 1.000000e+00 : f32
    %83 = vector.broadcast %cst_38 : f32 to vector<24x128xf32>
    %84 = arith.addf %83, %82 : vector<24x128xf32>
    %85 = arith.divf %83, %84 : vector<24x128xf32>
    %86 = arith.mulf %79, %85 : vector<24x128xf32>
    %c0_39 = arith.constant 0 : index
    %c0_40 = arith.constant 0 : index
    %c0_41 = arith.constant 0 : index
    %87 = vector.load %arg10[%c0_39, %c0_40, %c0_41] : memref<4x128x256xf32, #tpu.memory_space<vmem>>, vector<1x128x256xf32>
    %88 = vector.shape_cast %87 : vector<1x128x256xf32> to vector<128x256xf32>
    %cst_42 = arith.constant dense<0.000000e+00> : vector<24x256xf32>
    %89 = tpu.matmul %86, %88, %cst_42 {dimension_numbers = #tpu.dot_dimension_numbers<[1], [0], [0], [1], [0, 0, 1, 1], [], []>} : vector<24x128xf32>, vector<128x256xf32>, vector<24x256xf32> -> vector<24x256xf32>
    %c0_43 = arith.constant 0 : index
    %c0_44 = arith.constant 0 : index
    %c0_45 = arith.constant 0 : index
    %90 = vector.load %arg11[%c0_43, %c0_44, %c0_45] : memref<4x1x256xf32, #tpu.memory_space<vmem>>, vector<1x1x256xf32>
    %91 = vector.shape_cast %90 : vector<1x1x256xf32> to vector<1x256xf32>
    %92 = vector.broadcast %91 : vector<1x256xf32> to vector<24x256xf32>
    %93 = arith.addf %89, %92 : vector<24x256xf32>
    %94 = vector.extract_strided_slice %93 {offsets = [0, 0], sizes = [24, 128], strides = [1, 1]} : vector<24x256xf32> to vector<24x128xf32>
    %95 = vector.extract_strided_slice %93 {offsets = [0, 128], sizes = [24, 128], strides = [1, 1]} : vector<24x256xf32> to vector<24x128xf32>
    %96 = vector.extract_strided_slice %5 {offsets = [1, 0], sizes = [12, 128], strides = [1, 1]} : vector<26x128xf32> to vector<12x128xf32>
    %97 = vector.extract_strided_slice %5 {offsets = [14, 0], sizes = [12, 128], strides = [1, 1]} : vector<26x128xf32> to vector<12x128xf32>
    %98 = tpu.concatenate %96, %97 in 0 : vector<12x128xf32>, vector<12x128xf32> -> vector<24x128xf32>
    %99 = arith.addf %95, %98 : vector<24x128xf32>
    %cst_46 = arith.constant dense<0.000000e+00> : vector<128xf32>
    %100 = vector.multi_reduction <add>, %99, %cst_46 [0] : vector<24x128xf32> to vector<128xf32>
    %101 = vector.shape_cast %100 : vector<128xf32> to vector<1x128xf32>
    %cst_47 = arith.constant 2.400000e+01 : f32
    %102 = vector.broadcast %cst_47 : f32 to vector<1x128xf32>
    %103 = arith.divf %101, %102 : vector<1x128xf32>
    %104 = vector.broadcast %103 : vector<1x128xf32> to vector<24x128xf32>
    %105 = arith.subf %99, %104 : vector<24x128xf32>
    %106 = arith.mulf %105, %105 : vector<24x128xf32>
    %cst_48 = arith.constant dense<0.000000e+00> : vector<128xf32>
    %107 = vector.multi_reduction <add>, %106, %cst_48 [0] : vector<24x128xf32> to vector<128xf32>
    %108 = vector.shape_cast %107 : vector<128xf32> to vector<1x128xf32>
    %cst_49 = arith.constant 2.400000e+01 : f32
    %109 = vector.broadcast %cst_49 : f32 to vector<1x128xf32>
    %110 = arith.divf %108, %109 : vector<1x128xf32>
    %cst_50 = arith.constant 9.99999974E-6 : f32
    %111 = vector.broadcast %cst_50 : f32 to vector<1x128xf32>
    %112 = arith.addf %110, %111 : vector<1x128xf32>
    %113 = math.rsqrt %112 : vector<1x128xf32>
    %114 = vector.broadcast %113 : vector<1x128xf32> to vector<24x128xf32>
    %115 = arith.mulf %105, %114 : vector<24x128xf32>
    %c1 = arith.constant 1 : index
    %c0_51 = arith.constant 0 : index
    %c0_52 = arith.constant 0 : index
    %116 = vector.load %arg4[%c1, %c0_51, %c0_52] : memref<4x1x128xf32, #tpu.memory_space<vmem>>, vector<1x1x128xf32>
    %117 = vector.shape_cast %116 : vector<1x1x128xf32> to vector<1x128xf32>
    %118 = vector.broadcast %117 : vector<1x128xf32> to vector<24x128xf32>
    %119 = arith.mulf %115, %118 : vector<24x128xf32>
    %c1_53 = arith.constant 1 : index
    %c0_54 = arith.constant 0 : index
    %c0_55 = arith.constant 0 : index
    %120 = vector.load %arg5[%c1_53, %c0_54, %c0_55] : memref<4x1x128xf32, #tpu.memory_space<vmem>>, vector<1x1x128xf32>
    %121 = vector.shape_cast %120 : vector<1x1x128xf32> to vector<1x128xf32>
    %122 = vector.broadcast %121 : vector<1x128xf32> to vector<24x128xf32>
    %123 = arith.addf %119, %122 : vector<24x128xf32>
    %c0_56 = arith.constant 0 : index
    %c0_57 = arith.constant 0 : index
    %124 = vector.load %arg3[%c0_56, %c0_57] : memref<128x128xf32, #tpu.memory_space<vmem>>, vector<128x128xf32>
    %cst_58 = arith.constant dense<0.000000e+00> : vector<24x128xf32>
    %125 = tpu.matmul %99, %124, %cst_58 {dimension_numbers = #tpu.dot_dimension_numbers<[1], [0], [0], [1], [0, 0, 1, 1], [], []>} : vector<24x128xf32>, vector<128x128xf32>, vector<24x128xf32> -> vector<24x128xf32>
    %cst_59 = arith.constant 1.250000e-01 : f32
    %126 = vector.broadcast %cst_59 : f32 to vector<24x128xf32>
    %127 = arith.mulf %125, %126 : vector<24x128xf32>
    %128 = arith.subf %99, %127 : vector<24x128xf32>
    %129 = arith.mulf %128, %128 : vector<24x128xf32>
    %c0_60 = arith.constant 0 : index
    %c0_61 = arith.constant 0 : index
    %130 = vector.load %arg3[%c0_60, %c0_61] : memref<128x128xf32, #tpu.memory_space<vmem>>, vector<128x128xf32>
    %cst_62 = arith.constant dense<0.000000e+00> : vector<24x128xf32>
    %131 = tpu.matmul %129, %130, %cst_62 {dimension_numbers = #tpu.dot_dimension_numbers<[1], [0], [0], [1], [0, 0, 1, 1], [], []>} : vector<24x128xf32>, vector<128x128xf32>, vector<24x128xf32> -> vector<24x128xf32>
    %cst_63 = arith.constant 0.142857149 : f32
    %132 = vector.broadcast %cst_63 : f32 to vector<24x128xf32>
    %133 = arith.mulf %131, %132 : vector<24x128xf32>
    %cst_64 = arith.constant 9.99999974E-6 : f32
    %134 = vector.broadcast %cst_64 : f32 to vector<24x128xf32>
    %135 = arith.addf %133, %134 : vector<24x128xf32>
    %136 = math.rsqrt %135 : vector<24x128xf32>
    %137 = arith.mulf %128, %136 : vector<24x128xf32>
    %c1_65 = arith.constant 1 : index
    %c0_66 = arith.constant 0 : index
    %c0_67 = arith.constant 0 : index
    %138 = vector.load %arg6[%c1_65, %c0_66, %c0_67] : memref<4x1x128xf32, #tpu.memory_space<vmem>>, vector<1x1x128xf32>
    %139 = vector.shape_cast %138 : vector<1x1x128xf32> to vector<1x128xf32>
    %140 = vector.broadcast %139 : vector<1x128xf32> to vector<24x128xf32>
    %141 = arith.mulf %137, %140 : vector<24x128xf32>
    %c1_68 = arith.constant 1 : index
    %c0_69 = arith.constant 0 : index
    %c0_70 = arith.constant 0 : index
    %142 = vector.load %arg7[%c1_68, %c0_69, %c0_70] : memref<4x1x128xf32, #tpu.memory_space<vmem>>, vector<1x1x128xf32>
    %143 = vector.shape_cast %142 : vector<1x1x128xf32> to vector<1x128xf32>
    %144 = vector.broadcast %143 : vector<1x128xf32> to vector<24x128xf32>
    %145 = arith.addf %141, %144 : vector<24x128xf32>
    %146 = vector.extract_strided_slice %99 {offsets = [0, 0], sizes = [10, 128], strides = [1, 1]} : vector<24x128xf32> to vector<10x128xf32>
    %147 = vector.extract_strided_slice %99 {offsets = [12, 0], sizes = [10, 128], strides = [1, 1]} : vector<24x128xf32> to vector<10x128xf32>
    %148 = tpu.concatenate %146, %147 in 0 : vector<10x128xf32>, vector<10x128xf32> -> vector<20x128xf32>
    %149 = vector.extract_strided_slice %123 {offsets = [0, 0], sizes = [10, 128], strides = [1, 1]} : vector<24x128xf32> to vector<10x128xf32>
    %150 = vector.extract_strided_slice %123 {offsets = [12, 0], sizes = [10, 128], strides = [1, 1]} : vector<24x128xf32> to vector<10x128xf32>
    %151 = tpu.concatenate %149, %150 in 0 : vector<10x128xf32>, vector<10x128xf32> -> vector<20x128xf32>
    %152 = vector.extract_strided_slice %145 {offsets = [0, 0], sizes = [10, 128], strides = [1, 1]} : vector<24x128xf32> to vector<10x128xf32>
    %153 = vector.extract_strided_slice %145 {offsets = [12, 0], sizes = [10, 128], strides = [1, 1]} : vector<24x128xf32> to vector<10x128xf32>
    %154 = tpu.concatenate %152, %153 in 0 : vector<10x128xf32>, vector<10x128xf32> -> vector<20x128xf32>
    %155 = vector.extract_strided_slice %99 {offsets = [2, 0], sizes = [10, 128], strides = [1, 1]} : vector<24x128xf32> to vector<10x128xf32>
    %156 = vector.extract_strided_slice %99 {offsets = [14, 0], sizes = [10, 128], strides = [1, 1]} : vector<24x128xf32> to vector<10x128xf32>
    %157 = tpu.concatenate %155, %156 in 0 : vector<10x128xf32>, vector<10x128xf32> -> vector<20x128xf32>
    %158 = vector.extract_strided_slice %123 {offsets = [2, 0], sizes = [10, 128], strides = [1, 1]} : vector<24x128xf32> to vector<10x128xf32>
    %159 = vector.extract_strided_slice %123 {offsets = [14, 0], sizes = [10, 128], strides = [1, 1]} : vector<24x128xf32> to vector<10x128xf32>
    %160 = tpu.concatenate %158, %159 in 0 : vector<10x128xf32>, vector<10x128xf32> -> vector<20x128xf32>
    %161 = vector.extract_strided_slice %145 {offsets = [2, 0], sizes = [10, 128], strides = [1, 1]} : vector<24x128xf32> to vector<10x128xf32>
    %162 = vector.extract_strided_slice %145 {offsets = [14, 0], sizes = [10, 128], strides = [1, 1]} : vector<24x128xf32> to vector<10x128xf32>
    %163 = tpu.concatenate %161, %162 in 0 : vector<10x128xf32>, vector<10x128xf32> -> vector<20x128xf32>
    %164 = tpu.concatenate %148, %151, %154, %157, %160, %163 in 1 : vector<20x128xf32>, vector<20x128xf32>, vector<20x128xf32>, vector<20x128xf32>, vector<20x128xf32>, vector<20x128xf32> -> vector<20x768xf32>
    %c1_71 = arith.constant 1 : index
    %c0_72 = arith.constant 0 : index
    %c0_73 = arith.constant 0 : index
    %165 = vector.load %arg8[%c1_71, %c0_72, %c0_73] : memref<4x768x256xf32, #tpu.memory_space<vmem>>, vector<1x768x256xf32>
    %166 = vector.shape_cast %165 : vector<1x768x256xf32> to vector<768x256xf32>
    %cst_74 = arith.constant dense<0.000000e+00> : vector<20x256xf32>
    %167 = tpu.matmul %164, %166, %cst_74 {dimension_numbers = #tpu.dot_dimension_numbers<[1], [0], [0], [1], [0, 0, 1, 1], [], []>} : vector<20x768xf32>, vector<768x256xf32>, vector<20x256xf32> -> vector<20x256xf32>
    %c1_75 = arith.constant 1 : index
    %c0_76 = arith.constant 0 : index
    %c0_77 = arith.constant 0 : index
    %168 = vector.load %arg9[%c1_75, %c0_76, %c0_77] : memref<4x1x256xf32, #tpu.memory_space<vmem>>, vector<1x1x256xf32>
    %169 = vector.shape_cast %168 : vector<1x1x256xf32> to vector<1x256xf32>
    %170 = vector.broadcast %169 : vector<1x256xf32> to vector<20x256xf32>
    %171 = arith.addf %167, %170 : vector<20x256xf32>
    %172 = vector.extract_strided_slice %171 {offsets = [0, 0], sizes = [20, 128], strides = [1, 1]} : vector<20x256xf32> to vector<20x128xf32>
    %173 = math.tanh %172 : vector<20x128xf32>
    %174 = vector.extract_strided_slice %171 {offsets = [0, 128], sizes = [20, 128], strides = [1, 1]} : vector<20x256xf32> to vector<20x128xf32>
    %175 = arith.negf %174 : vector<20x128xf32>
    %176 = math.exp %175 : vector<20x128xf32>
    %cst_78 = arith.constant 1.000000e+00 : f32
    %177 = vector.broadcast %cst_78 : f32 to vector<20x128xf32>
    %178 = arith.addf %177, %176 : vector<20x128xf32>
    %179 = arith.divf %177, %178 : vector<20x128xf32>
    %180 = arith.mulf %173, %179 : vector<20x128xf32>
    %c1_79 = arith.constant 1 : index
    %c0_80 = arith.constant 0 : index
    %c0_81 = arith.constant 0 : index
    %181 = vector.load %arg10[%c1_79, %c0_80, %c0_81] : memref<4x128x256xf32, #tpu.memory_space<vmem>>, vector<1x128x256xf32>
    %182 = vector.shape_cast %181 : vector<1x128x256xf32> to vector<128x256xf32>
    %cst_82 = arith.constant dense<0.000000e+00> : vector<20x256xf32>
    %183 = tpu.matmul %180, %182, %cst_82 {dimension_numbers = #tpu.dot_dimension_numbers<[1], [0], [0], [1], [0, 0, 1, 1], [], []>} : vector<20x128xf32>, vector<128x256xf32>, vector<20x256xf32> -> vector<20x256xf32>
    %c1_83 = arith.constant 1 : index
    %c0_84 = arith.constant 0 : index
    %c0_85 = arith.constant 0 : index
    %184 = vector.load %arg11[%c1_83, %c0_84, %c0_85] : memref<4x1x256xf32, #tpu.memory_space<vmem>>, vector<1x1x256xf32>
    %185 = vector.shape_cast %184 : vector<1x1x256xf32> to vector<1x256xf32>
    %186 = vector.broadcast %185 : vector<1x256xf32> to vector<20x256xf32>
    %187 = arith.addf %183, %186 : vector<20x256xf32>
    %188 = vector.extract_strided_slice %187 {offsets = [0, 0], sizes = [20, 128], strides = [1, 1]} : vector<20x256xf32> to vector<20x128xf32>
    %189 = vector.extract_strided_slice %187 {offsets = [0, 128], sizes = [20, 128], strides = [1, 1]} : vector<20x256xf32> to vector<20x128xf32>
    %190 = vector.extract_strided_slice %94 {offsets = [2, 0], sizes = [10, 128], strides = [1, 1]} : vector<24x128xf32> to vector<10x128xf32>
    %191 = vector.extract_strided_slice %94 {offsets = [14, 0], sizes = [10, 128], strides = [1, 1]} : vector<24x128xf32> to vector<10x128xf32>
    %192 = tpu.concatenate %190, %191 in 0 : vector<10x128xf32>, vector<10x128xf32> -> vector<20x128xf32>
    %193 = arith.addf %188, %192 : vector<20x128xf32>
    %194 = vector.extract_strided_slice %99 {offsets = [2, 0], sizes = [10, 128], strides = [1, 1]} : vector<24x128xf32> to vector<10x128xf32>
    %195 = vector.extract_strided_slice %99 {offsets = [14, 0], sizes = [10, 128], strides = [1, 1]} : vector<24x128xf32> to vector<10x128xf32>
    %196 = tpu.concatenate %194, %195 in 0 : vector<10x128xf32>, vector<10x128xf32> -> vector<20x128xf32>
    %197 = arith.addf %189, %196 : vector<20x128xf32>
    %cst_86 = arith.constant dense<0.000000e+00> : vector<128xf32>
    %198 = vector.multi_reduction <add>, %197, %cst_86 [0] : vector<20x128xf32> to vector<128xf32>
    %199 = vector.shape_cast %198 : vector<128xf32> to vector<1x128xf32>
    %cst_87 = arith.constant 2.000000e+01 : f32
    %200 = vector.broadcast %cst_87 : f32 to vector<1x128xf32>
    %201 = arith.divf %199, %200 : vector<1x128xf32>
    %202 = vector.broadcast %201 : vector<1x128xf32> to vector<20x128xf32>
    %203 = arith.subf %197, %202 : vector<20x128xf32>
    %204 = arith.mulf %203, %203 : vector<20x128xf32>
    %cst_88 = arith.constant dense<0.000000e+00> : vector<128xf32>
    %205 = vector.multi_reduction <add>, %204, %cst_88 [0] : vector<20x128xf32> to vector<128xf32>
    %206 = vector.shape_cast %205 : vector<128xf32> to vector<1x128xf32>
    %cst_89 = arith.constant 2.000000e+01 : f32
    %207 = vector.broadcast %cst_89 : f32 to vector<1x128xf32>
    %208 = arith.divf %206, %207 : vector<1x128xf32>
    %cst_90 = arith.constant 9.99999974E-6 : f32
    %209 = vector.broadcast %cst_90 : f32 to vector<1x128xf32>
    %210 = arith.addf %208, %209 : vector<1x128xf32>
    %211 = math.rsqrt %210 : vector<1x128xf32>
    %212 = vector.broadcast %211 : vector<1x128xf32> to vector<20x128xf32>
    %213 = arith.mulf %203, %212 : vector<20x128xf32>
    %c2 = arith.constant 2 : index
    %c0_91 = arith.constant 0 : index
    %c0_92 = arith.constant 0 : index
    %214 = vector.load %arg4[%c2, %c0_91, %c0_92] : memref<4x1x128xf32, #tpu.memory_space<vmem>>, vector<1x1x128xf32>
    %215 = vector.shape_cast %214 : vector<1x1x128xf32> to vector<1x128xf32>
    %216 = vector.broadcast %215 : vector<1x128xf32> to vector<20x128xf32>
    %217 = arith.mulf %213, %216 : vector<20x128xf32>
    %c2_93 = arith.constant 2 : index
    %c0_94 = arith.constant 0 : index
    %c0_95 = arith.constant 0 : index
    %218 = vector.load %arg5[%c2_93, %c0_94, %c0_95] : memref<4x1x128xf32, #tpu.memory_space<vmem>>, vector<1x1x128xf32>
    %219 = vector.shape_cast %218 : vector<1x1x128xf32> to vector<1x128xf32>
    %220 = vector.broadcast %219 : vector<1x128xf32> to vector<20x128xf32>
    %221 = arith.addf %217, %220 : vector<20x128xf32>
    %c0_96 = arith.constant 0 : index
    %c0_97 = arith.constant 0 : index
    %222 = vector.load %arg3[%c0_96, %c0_97] : memref<128x128xf32, #tpu.memory_space<vmem>>, vector<128x128xf32>
    %cst_98 = arith.constant dense<0.000000e+00> : vector<20x128xf32>
    %223 = tpu.matmul %197, %222, %cst_98 {dimension_numbers = #tpu.dot_dimension_numbers<[1], [0], [0], [1], [0, 0, 1, 1], [], []>} : vector<20x128xf32>, vector<128x128xf32>, vector<20x128xf32> -> vector<20x128xf32>
    %cst_99 = arith.constant 1.250000e-01 : f32
    %224 = vector.broadcast %cst_99 : f32 to vector<20x128xf32>
    %225 = arith.mulf %223, %224 : vector<20x128xf32>
    %226 = arith.subf %197, %225 : vector<20x128xf32>
    %227 = arith.mulf %226, %226 : vector<20x128xf32>
    %c0_100 = arith.constant 0 : index
    %c0_101 = arith.constant 0 : index
    %228 = vector.load %arg3[%c0_100, %c0_101] : memref<128x128xf32, #tpu.memory_space<vmem>>, vector<128x128xf32>
    %cst_102 = arith.constant dense<0.000000e+00> : vector<20x128xf32>
    %229 = tpu.matmul %227, %228, %cst_102 {dimension_numbers = #tpu.dot_dimension_numbers<[1], [0], [0], [1], [0, 0, 1, 1], [], []>} : vector<20x128xf32>, vector<128x128xf32>, vector<20x128xf32> -> vector<20x128xf32>
    %cst_103 = arith.constant 0.142857149 : f32
    %230 = vector.broadcast %cst_103 : f32 to vector<20x128xf32>
    %231 = arith.mulf %229, %230 : vector<20x128xf32>
    %cst_104 = arith.constant 9.99999974E-6 : f32
    %232 = vector.broadcast %cst_104 : f32 to vector<20x128xf32>
    %233 = arith.addf %231, %232 : vector<20x128xf32>
    %234 = math.rsqrt %233 : vector<20x128xf32>
    %235 = arith.mulf %226, %234 : vector<20x128xf32>
    %c2_105 = arith.constant 2 : index
    %c0_106 = arith.constant 0 : index
    %c0_107 = arith.constant 0 : index
    %236 = vector.load %arg6[%c2_105, %c0_106, %c0_107] : memref<4x1x128xf32, #tpu.memory_space<vmem>>, vector<1x1x128xf32>
    %237 = vector.shape_cast %236 : vector<1x1x128xf32> to vector<1x128xf32>
    %238 = vector.broadcast %237 : vector<1x128xf32> to vector<20x128xf32>
    %239 = arith.mulf %235, %238 : vector<20x128xf32>
    %c2_108 = arith.constant 2 : index
    %c0_109 = arith.constant 0 : index
    %c0_110 = arith.constant 0 : index
    %240 = vector.load %arg7[%c2_108, %c0_109, %c0_110] : memref<4x1x128xf32, #tpu.memory_space<vmem>>, vector<1x1x128xf32>
    %241 = vector.shape_cast %240 : vector<1x1x128xf32> to vector<1x128xf32>
    %242 = vector.broadcast %241 : vector<1x128xf32> to vector<20x128xf32>
    %243 = arith.addf %239, %242 : vector<20x128xf32>
    %244 = vector.extract_strided_slice %197 {offsets = [0, 0], sizes = [9, 128], strides = [1, 1]} : vector<20x128xf32> to vector<9x128xf32>
    %245 = vector.extract_strided_slice %197 {offsets = [10, 0], sizes = [9, 128], strides = [1, 1]} : vector<20x128xf32> to vector<9x128xf32>
    %246 = tpu.concatenate %244, %245 in 0 : vector<9x128xf32>, vector<9x128xf32> -> vector<18x128xf32>
    %247 = vector.extract_strided_slice %221 {offsets = [0, 0], sizes = [9, 128], strides = [1, 1]} : vector<20x128xf32> to vector<9x128xf32>
    %248 = vector.extract_strided_slice %221 {offsets = [10, 0], sizes = [9, 128], strides = [1, 1]} : vector<20x128xf32> to vector<9x128xf32>
    %249 = tpu.concatenate %247, %248 in 0 : vector<9x128xf32>, vector<9x128xf32> -> vector<18x128xf32>
    %250 = vector.extract_strided_slice %243 {offsets = [0, 0], sizes = [9, 128], strides = [1, 1]} : vector<20x128xf32> to vector<9x128xf32>
    %251 = vector.extract_strided_slice %243 {offsets = [10, 0], sizes = [9, 128], strides = [1, 1]} : vector<20x128xf32> to vector<9x128xf32>
    %252 = tpu.concatenate %250, %251 in 0 : vector<9x128xf32>, vector<9x128xf32> -> vector<18x128xf32>
    %253 = vector.extract_strided_slice %197 {offsets = [1, 0], sizes = [9, 128], strides = [1, 1]} : vector<20x128xf32> to vector<9x128xf32>
    %254 = vector.extract_strided_slice %197 {offsets = [11, 0], sizes = [9, 128], strides = [1, 1]} : vector<20x128xf32> to vector<9x128xf32>
    %255 = tpu.concatenate %253, %254 in 0 : vector<9x128xf32>, vector<9x128xf32> -> vector<18x128xf32>
    %256 = vector.extract_strided_slice %221 {offsets = [1, 0], sizes = [9, 128], strides = [1, 1]} : vector<20x128xf32> to vector<9x128xf32>
    %257 = vector.extract_strided_slice %221 {offsets = [11, 0], sizes = [9, 128], strides = [1, 1]} : vector<20x128xf32> to vector<9x128xf32>
    %258 = tpu.concatenate %256, %257 in 0 : vector<9x128xf32>, vector<9x128xf32> -> vector<18x128xf32>
    %259 = vector.extract_strided_slice %243 {offsets = [1, 0], sizes = [9, 128], strides = [1, 1]} : vector<20x128xf32> to vector<9x128xf32>
    %260 = vector.extract_strided_slice %243 {offsets = [11, 0], sizes = [9, 128], strides = [1, 1]} : vector<20x128xf32> to vector<9x128xf32>
    %261 = tpu.concatenate %259, %260 in 0 : vector<9x128xf32>, vector<9x128xf32> -> vector<18x128xf32>
    %262 = tpu.concatenate %246, %249, %252, %255, %258, %261 in 1 : vector<18x128xf32>, vector<18x128xf32>, vector<18x128xf32>, vector<18x128xf32>, vector<18x128xf32>, vector<18x128xf32> -> vector<18x768xf32>
    %c2_111 = arith.constant 2 : index
    %c0_112 = arith.constant 0 : index
    %c0_113 = arith.constant 0 : index
    %263 = vector.load %arg8[%c2_111, %c0_112, %c0_113] : memref<4x768x256xf32, #tpu.memory_space<vmem>>, vector<1x768x256xf32>
    %264 = vector.shape_cast %263 : vector<1x768x256xf32> to vector<768x256xf32>
    %cst_114 = arith.constant dense<0.000000e+00> : vector<18x256xf32>
    %265 = tpu.matmul %262, %264, %cst_114 {dimension_numbers = #tpu.dot_dimension_numbers<[1], [0], [0], [1], [0, 0, 1, 1], [], []>} : vector<18x768xf32>, vector<768x256xf32>, vector<18x256xf32> -> vector<18x256xf32>
    %c2_115 = arith.constant 2 : index
    %c0_116 = arith.constant 0 : index
    %c0_117 = arith.constant 0 : index
    %266 = vector.load %arg9[%c2_115, %c0_116, %c0_117] : memref<4x1x256xf32, #tpu.memory_space<vmem>>, vector<1x1x256xf32>
    %267 = vector.shape_cast %266 : vector<1x1x256xf32> to vector<1x256xf32>
    %268 = vector.broadcast %267 : vector<1x256xf32> to vector<18x256xf32>
    %269 = arith.addf %265, %268 : vector<18x256xf32>
    %270 = vector.extract_strided_slice %269 {offsets = [0, 0], sizes = [18, 128], strides = [1, 1]} : vector<18x256xf32> to vector<18x128xf32>
    %271 = math.tanh %270 : vector<18x128xf32>
    %272 = vector.extract_strided_slice %269 {offsets = [0, 128], sizes = [18, 128], strides = [1, 1]} : vector<18x256xf32> to vector<18x128xf32>
    %273 = arith.negf %272 : vector<18x128xf32>
    %274 = math.exp %273 : vector<18x128xf32>
    %cst_118 = arith.constant 1.000000e+00 : f32
    %275 = vector.broadcast %cst_118 : f32 to vector<18x128xf32>
    %276 = arith.addf %275, %274 : vector<18x128xf32>
    %277 = arith.divf %275, %276 : vector<18x128xf32>
    %278 = arith.mulf %271, %277 : vector<18x128xf32>
    %c2_119 = arith.constant 2 : index
    %c0_120 = arith.constant 0 : index
    %c0_121 = arith.constant 0 : index
    %279 = vector.load %arg10[%c2_119, %c0_120, %c0_121] : memref<4x128x256xf32, #tpu.memory_space<vmem>>, vector<1x128x256xf32>
    %280 = vector.shape_cast %279 : vector<1x128x256xf32> to vector<128x256xf32>
    %cst_122 = arith.constant dense<0.000000e+00> : vector<18x256xf32>
    %281 = tpu.matmul %278, %280, %cst_122 {dimension_numbers = #tpu.dot_dimension_numbers<[1], [0], [0], [1], [0, 0, 1, 1], [], []>} : vector<18x128xf32>, vector<128x256xf32>, vector<18x256xf32> -> vector<18x256xf32>
    %c2_123 = arith.constant 2 : index
    %c0_124 = arith.constant 0 : index
    %c0_125 = arith.constant 0 : index
    %282 = vector.load %arg11[%c2_123, %c0_124, %c0_125] : memref<4x1x256xf32, #tpu.memory_space<vmem>>, vector<1x1x256xf32>
    %283 = vector.shape_cast %282 : vector<1x1x256xf32> to vector<1x256xf32>
    %284 = vector.broadcast %283 : vector<1x256xf32> to vector<18x256xf32>
    %285 = arith.addf %281, %284 : vector<18x256xf32>
    %286 = vector.extract_strided_slice %285 {offsets = [0, 0], sizes = [18, 128], strides = [1, 1]} : vector<18x256xf32> to vector<18x128xf32>
    %287 = vector.extract_strided_slice %285 {offsets = [0, 128], sizes = [18, 128], strides = [1, 1]} : vector<18x256xf32> to vector<18x128xf32>
    %288 = vector.extract_strided_slice %193 {offsets = [1, 0], sizes = [9, 128], strides = [1, 1]} : vector<20x128xf32> to vector<9x128xf32>
    %289 = vector.extract_strided_slice %193 {offsets = [11, 0], sizes = [9, 128], strides = [1, 1]} : vector<20x128xf32> to vector<9x128xf32>
    %290 = tpu.concatenate %288, %289 in 0 : vector<9x128xf32>, vector<9x128xf32> -> vector<18x128xf32>
    %291 = arith.addf %286, %290 : vector<18x128xf32>
    %292 = vector.extract_strided_slice %197 {offsets = [1, 0], sizes = [9, 128], strides = [1, 1]} : vector<20x128xf32> to vector<9x128xf32>
    %293 = vector.extract_strided_slice %197 {offsets = [11, 0], sizes = [9, 128], strides = [1, 1]} : vector<20x128xf32> to vector<9x128xf32>
    %294 = tpu.concatenate %292, %293 in 0 : vector<9x128xf32>, vector<9x128xf32> -> vector<18x128xf32>
    %295 = arith.addf %287, %294 : vector<18x128xf32>
    %cst_126 = arith.constant dense<0.000000e+00> : vector<128xf32>
    %296 = vector.multi_reduction <add>, %295, %cst_126 [0] : vector<18x128xf32> to vector<128xf32>
    %297 = vector.shape_cast %296 : vector<128xf32> to vector<1x128xf32>
    %cst_127 = arith.constant 1.800000e+01 : f32
    %298 = vector.broadcast %cst_127 : f32 to vector<1x128xf32>
    %299 = arith.divf %297, %298 : vector<1x128xf32>
    %300 = vector.broadcast %299 : vector<1x128xf32> to vector<18x128xf32>
    %301 = arith.subf %295, %300 : vector<18x128xf32>
    %302 = arith.mulf %301, %301 : vector<18x128xf32>
    %cst_128 = arith.constant dense<0.000000e+00> : vector<128xf32>
    %303 = vector.multi_reduction <add>, %302, %cst_128 [0] : vector<18x128xf32> to vector<128xf32>
    %304 = vector.shape_cast %303 : vector<128xf32> to vector<1x128xf32>
    %cst_129 = arith.constant 1.800000e+01 : f32
    %305 = vector.broadcast %cst_129 : f32 to vector<1x128xf32>
    %306 = arith.divf %304, %305 : vector<1x128xf32>
    %cst_130 = arith.constant 9.99999974E-6 : f32
    %307 = vector.broadcast %cst_130 : f32 to vector<1x128xf32>
    %308 = arith.addf %306, %307 : vector<1x128xf32>
    %309 = math.rsqrt %308 : vector<1x128xf32>
    %310 = vector.broadcast %309 : vector<1x128xf32> to vector<18x128xf32>
    %311 = arith.mulf %301, %310 : vector<18x128xf32>
    %c3 = arith.constant 3 : index
    %c0_131 = arith.constant 0 : index
    %c0_132 = arith.constant 0 : index
    %312 = vector.load %arg4[%c3, %c0_131, %c0_132] : memref<4x1x128xf32, #tpu.memory_space<vmem>>, vector<1x1x128xf32>
    %313 = vector.shape_cast %312 : vector<1x1x128xf32> to vector<1x128xf32>
    %314 = vector.broadcast %313 : vector<1x128xf32> to vector<18x128xf32>
    %315 = arith.mulf %311, %314 : vector<18x128xf32>
    %c3_133 = arith.constant 3 : index
    %c0_134 = arith.constant 0 : index
    %c0_135 = arith.constant 0 : index
    %316 = vector.load %arg5[%c3_133, %c0_134, %c0_135] : memref<4x1x128xf32, #tpu.memory_space<vmem>>, vector<1x1x128xf32>
    %317 = vector.shape_cast %316 : vector<1x1x128xf32> to vector<1x128xf32>
    %318 = vector.broadcast %317 : vector<1x128xf32> to vector<18x128xf32>
    %319 = arith.addf %315, %318 : vector<18x128xf32>
    %c0_136 = arith.constant 0 : index
    %c0_137 = arith.constant 0 : index
    %320 = vector.load %arg3[%c0_136, %c0_137] : memref<128x128xf32, #tpu.memory_space<vmem>>, vector<128x128xf32>
    %cst_138 = arith.constant dense<0.000000e+00> : vector<18x128xf32>
    %321 = tpu.matmul %295, %320, %cst_138 {dimension_numbers = #tpu.dot_dimension_numbers<[1], [0], [0], [1], [0, 0, 1, 1], [], []>} : vector<18x128xf32>, vector<128x128xf32>, vector<18x128xf32> -> vector<18x128xf32>
    %cst_139 = arith.constant 1.250000e-01 : f32
    %322 = vector.broadcast %cst_139 : f32 to vector<18x128xf32>
    %323 = arith.mulf %321, %322 : vector<18x128xf32>
    %324 = arith.subf %295, %323 : vector<18x128xf32>
    %325 = arith.mulf %324, %324 : vector<18x128xf32>
    %c0_140 = arith.constant 0 : index
    %c0_141 = arith.constant 0 : index
    %326 = vector.load %arg3[%c0_140, %c0_141] : memref<128x128xf32, #tpu.memory_space<vmem>>, vector<128x128xf32>
    %cst_142 = arith.constant dense<0.000000e+00> : vector<18x128xf32>
    %327 = tpu.matmul %325, %326, %cst_142 {dimension_numbers = #tpu.dot_dimension_numbers<[1], [0], [0], [1], [0, 0, 1, 1], [], []>} : vector<18x128xf32>, vector<128x128xf32>, vector<18x128xf32> -> vector<18x128xf32>
    %cst_143 = arith.constant 0.142857149 : f32
    %328 = vector.broadcast %cst_143 : f32 to vector<18x128xf32>
    %329 = arith.mulf %327, %328 : vector<18x128xf32>
    %cst_144 = arith.constant 9.99999974E-6 : f32
    %330 = vector.broadcast %cst_144 : f32 to vector<18x128xf32>
    %331 = arith.addf %329, %330 : vector<18x128xf32>
    %332 = math.rsqrt %331 : vector<18x128xf32>
    %333 = arith.mulf %324, %332 : vector<18x128xf32>
    %c3_145 = arith.constant 3 : index
    %c0_146 = arith.constant 0 : index
    %c0_147 = arith.constant 0 : index
    %334 = vector.load %arg6[%c3_145, %c0_146, %c0_147] : memref<4x1x128xf32, #tpu.memory_space<vmem>>, vector<1x1x128xf32>
    %335 = vector.shape_cast %334 : vector<1x1x128xf32> to vector<1x128xf32>
    %336 = vector.broadcast %335 : vector<1x128xf32> to vector<18x128xf32>
    %337 = arith.mulf %333, %336 : vector<18x128xf32>
    %c3_148 = arith.constant 3 : index
    %c0_149 = arith.constant 0 : index
    %c0_150 = arith.constant 0 : index
    %338 = vector.load %arg7[%c3_148, %c0_149, %c0_150] : memref<4x1x128xf32, #tpu.memory_space<vmem>>, vector<1x1x128xf32>
    %339 = vector.shape_cast %338 : vector<1x1x128xf32> to vector<1x128xf32>
    %340 = vector.broadcast %339 : vector<1x128xf32> to vector<18x128xf32>
    %341 = arith.addf %337, %340 : vector<18x128xf32>
    %342 = vector.extract_strided_slice %295 {offsets = [0, 0], sizes = [7, 128], strides = [1, 1]} : vector<18x128xf32> to vector<7x128xf32>
    %343 = vector.extract_strided_slice %295 {offsets = [9, 0], sizes = [7, 128], strides = [1, 1]} : vector<18x128xf32> to vector<7x128xf32>
    %344 = tpu.concatenate %342, %343 in 0 : vector<7x128xf32>, vector<7x128xf32> -> vector<14x128xf32>
    %345 = vector.extract_strided_slice %319 {offsets = [0, 0], sizes = [7, 128], strides = [1, 1]} : vector<18x128xf32> to vector<7x128xf32>
    %346 = vector.extract_strided_slice %319 {offsets = [9, 0], sizes = [7, 128], strides = [1, 1]} : vector<18x128xf32> to vector<7x128xf32>
    %347 = tpu.concatenate %345, %346 in 0 : vector<7x128xf32>, vector<7x128xf32> -> vector<14x128xf32>
    %348 = vector.extract_strided_slice %341 {offsets = [0, 0], sizes = [7, 128], strides = [1, 1]} : vector<18x128xf32> to vector<7x128xf32>
    %349 = vector.extract_strided_slice %341 {offsets = [9, 0], sizes = [7, 128], strides = [1, 1]} : vector<18x128xf32> to vector<7x128xf32>
    %350 = tpu.concatenate %348, %349 in 0 : vector<7x128xf32>, vector<7x128xf32> -> vector<14x128xf32>
    %351 = vector.extract_strided_slice %295 {offsets = [2, 0], sizes = [7, 128], strides = [1, 1]} : vector<18x128xf32> to vector<7x128xf32>
    %352 = vector.extract_strided_slice %295 {offsets = [11, 0], sizes = [7, 128], strides = [1, 1]} : vector<18x128xf32> to vector<7x128xf32>
    %353 = tpu.concatenate %351, %352 in 0 : vector<7x128xf32>, vector<7x128xf32> -> vector<14x128xf32>
    %354 = vector.extract_strided_slice %319 {offsets = [2, 0], sizes = [7, 128], strides = [1, 1]} : vector<18x128xf32> to vector<7x128xf32>
    %355 = vector.extract_strided_slice %319 {offsets = [11, 0], sizes = [7, 128], strides = [1, 1]} : vector<18x128xf32> to vector<7x128xf32>
    %356 = tpu.concatenate %354, %355 in 0 : vector<7x128xf32>, vector<7x128xf32> -> vector<14x128xf32>
    %357 = vector.extract_strided_slice %341 {offsets = [2, 0], sizes = [7, 128], strides = [1, 1]} : vector<18x128xf32> to vector<7x128xf32>
    %358 = vector.extract_strided_slice %341 {offsets = [11, 0], sizes = [7, 128], strides = [1, 1]} : vector<18x128xf32> to vector<7x128xf32>
    %359 = tpu.concatenate %357, %358 in 0 : vector<7x128xf32>, vector<7x128xf32> -> vector<14x128xf32>
    %360 = tpu.concatenate %344, %347, %350, %353, %356, %359 in 1 : vector<14x128xf32>, vector<14x128xf32>, vector<14x128xf32>, vector<14x128xf32>, vector<14x128xf32>, vector<14x128xf32> -> vector<14x768xf32>
    %c3_151 = arith.constant 3 : index
    %c0_152 = arith.constant 0 : index
    %c0_153 = arith.constant 0 : index
    %361 = vector.load %arg8[%c3_151, %c0_152, %c0_153] : memref<4x768x256xf32, #tpu.memory_space<vmem>>, vector<1x768x256xf32>
    %362 = vector.shape_cast %361 : vector<1x768x256xf32> to vector<768x256xf32>
    %cst_154 = arith.constant dense<0.000000e+00> : vector<14x256xf32>
    %363 = tpu.matmul %360, %362, %cst_154 {dimension_numbers = #tpu.dot_dimension_numbers<[1], [0], [0], [1], [0, 0, 1, 1], [], []>} : vector<14x768xf32>, vector<768x256xf32>, vector<14x256xf32> -> vector<14x256xf32>
    %c3_155 = arith.constant 3 : index
    %c0_156 = arith.constant 0 : index
    %c0_157 = arith.constant 0 : index
    %364 = vector.load %arg9[%c3_155, %c0_156, %c0_157] : memref<4x1x256xf32, #tpu.memory_space<vmem>>, vector<1x1x256xf32>
    %365 = vector.shape_cast %364 : vector<1x1x256xf32> to vector<1x256xf32>
    %366 = vector.broadcast %365 : vector<1x256xf32> to vector<14x256xf32>
    %367 = arith.addf %363, %366 : vector<14x256xf32>
    %368 = vector.extract_strided_slice %367 {offsets = [0, 0], sizes = [14, 128], strides = [1, 1]} : vector<14x256xf32> to vector<14x128xf32>
    %369 = math.tanh %368 : vector<14x128xf32>
    %370 = vector.extract_strided_slice %367 {offsets = [0, 128], sizes = [14, 128], strides = [1, 1]} : vector<14x256xf32> to vector<14x128xf32>
    %371 = arith.negf %370 : vector<14x128xf32>
    %372 = math.exp %371 : vector<14x128xf32>
    %cst_158 = arith.constant 1.000000e+00 : f32
    %373 = vector.broadcast %cst_158 : f32 to vector<14x128xf32>
    %374 = arith.addf %373, %372 : vector<14x128xf32>
    %375 = arith.divf %373, %374 : vector<14x128xf32>
    %376 = arith.mulf %369, %375 : vector<14x128xf32>
    %c3_159 = arith.constant 3 : index
    %c0_160 = arith.constant 0 : index
    %c0_161 = arith.constant 0 : index
    %377 = vector.load %arg10[%c3_159, %c0_160, %c0_161] : memref<4x128x256xf32, #tpu.memory_space<vmem>>, vector<1x128x256xf32>
    %378 = vector.shape_cast %377 : vector<1x128x256xf32> to vector<128x256xf32>
    %cst_162 = arith.constant dense<0.000000e+00> : vector<14x256xf32>
    %379 = tpu.matmul %376, %378, %cst_162 {dimension_numbers = #tpu.dot_dimension_numbers<[1], [0], [0], [1], [0, 0, 1, 1], [], []>} : vector<14x128xf32>, vector<128x256xf32>, vector<14x256xf32> -> vector<14x256xf32>
    %c3_163 = arith.constant 3 : index
    %c0_164 = arith.constant 0 : index
    %c0_165 = arith.constant 0 : index
    %380 = vector.load %arg11[%c3_163, %c0_164, %c0_165] : memref<4x1x256xf32, #tpu.memory_space<vmem>>, vector<1x1x256xf32>
    %381 = vector.shape_cast %380 : vector<1x1x256xf32> to vector<1x256xf32>
    %382 = vector.broadcast %381 : vector<1x256xf32> to vector<14x256xf32>
    %383 = arith.addf %379, %382 : vector<14x256xf32>
    %384 = vector.extract_strided_slice %383 {offsets = [0, 0], sizes = [14, 128], strides = [1, 1]} : vector<14x256xf32> to vector<14x128xf32>
    %385 = vector.extract_strided_slice %291 {offsets = [2, 0], sizes = [7, 128], strides = [1, 1]} : vector<18x128xf32> to vector<7x128xf32>
    %386 = vector.extract_strided_slice %291 {offsets = [11, 0], sizes = [7, 128], strides = [1, 1]} : vector<18x128xf32> to vector<7x128xf32>
    %387 = tpu.concatenate %385, %386 in 0 : vector<7x128xf32>, vector<7x128xf32> -> vector<14x128xf32>
    %388 = arith.addf %384, %387 : vector<14x128xf32>
    %cst_166 = arith.constant 0.000000e+00 : f32
    %389 = vector.broadcast %cst_166 : f32 to vector<14x128xf32>
    %390 = arith.maximumf %388, %389 : vector<14x128xf32>
    %c0_167 = arith.constant 0 : index
    %c0_168 = arith.constant 0 : index
    %391 = vector.load %arg12[%c0_167, %c0_168] : memref<128x128xf32, #tpu.memory_space<vmem>>, vector<128x128xf32>
    %cst_169 = arith.constant dense<0.000000e+00> : vector<14x128xf32>
    %392 = tpu.matmul %390, %391, %cst_169 {dimension_numbers = #tpu.dot_dimension_numbers<[1], [0], [0], [1], [0, 0, 1, 1], [], []>} : vector<14x128xf32>, vector<128x128xf32>, vector<14x128xf32> -> vector<14x128xf32>
    %c0_170 = arith.constant 0 : index
    %c0_171 = arith.constant 0 : index
    %393 = vector.load %arg13[%c0_170, %c0_171] : memref<1x128xf32, #tpu.memory_space<vmem>>, vector<1x128xf32>
    %394 = vector.broadcast %393 : vector<1x128xf32> to vector<14x128xf32>
    %395 = arith.addf %392, %394 : vector<14x128xf32>
    %cst_172 = arith.constant 0.000000e+00 : f32
    %396 = vector.broadcast %cst_172 : f32 to vector<14x128xf32>
    %397 = arith.maximumf %395, %396 : vector<14x128xf32>
    %398 = vector.extract_strided_slice %397 {offsets = [0, 0], sizes = [7, 128], strides = [1, 1]} : vector<14x128xf32> to vector<7x128xf32>
    %c0_173 = arith.constant 0 : index
    %c0_174 = arith.constant 0 : index
    %399 = vector.load %arg14[%c0_173, %c0_174] : memref<8x128xf32, #tpu.memory_space<vmem>>, vector<8x128xf32>
    "tpu.trace_start"() <{level = 10 : i32, message = "rk,tk->rt"}> : () -> ()
    %cst_175 = arith.constant dense<0.000000e+00> : vector<8x7xf32>
    %400 = tpu.matmul %399, %398, %cst_175 {dimension_numbers = #tpu.dot_dimension_numbers<[1], [1], [0], [0], [0, 0, 1, 0], [], []>} : vector<8x128xf32>, vector<7x128xf32>, vector<8x7xf32> -> vector<8x7xf32>
    "tpu.trace_stop"() : () -> ()
    %c0_176 = arith.constant 0 : index
    %c0_177 = arith.constant 0 : index
    %401 = vector.load %arg15[%c0_176, %c0_177] : memref<8x1xf32, #tpu.memory_space<vmem>>, vector<8x1xf32>
    %402 = vector.broadcast %401 : vector<8x1xf32> to vector<8x7xf32>
    %403 = arith.addf %400, %402 : vector<8x7xf32>
    %c0_178 = arith.constant 0 : index
    %c0_179 = arith.constant 0 : index
    %c0_180 = arith.constant 0 : index
    %404 = vector.load %arg16[%c0_178, %c0_179, %c0_180] : memref<2x8x7xf32, #tpu.memory_space<vmem>>, vector<1x8x7xf32>
    %405 = vector.shape_cast %404 : vector<1x8x7xf32> to vector<8x7xf32>
    %406 = vector.shape_cast %403 : vector<8x7xf32> to vector<1x8x7xf32>
    tpu.vector_store %arg16[%c0_178, %c0_179, %c0_180], %406 {strides = array<i32>} : memref<2x8x7xf32, #tpu.memory_space<vmem>>, vector<1x8x7xf32>,
    %407 = vector.extract_strided_slice %397 {offsets = [7, 0], sizes = [7, 128], strides = [1, 1]} : vector<14x128xf32> to vector<7x128xf32>
    %c0_181 = arith.constant 0 : index
    %c0_182 = arith.constant 0 : index
    %408 = vector.load %arg14[%c0_181, %c0_182] : memref<8x128xf32, #tpu.memory_space<vmem>>, vector<8x128xf32>
    "tpu.trace_start"() <{level = 10 : i32, message = "rk,tk->rt"}> : () -> ()
    %cst_183 = arith.constant dense<0.000000e+00> : vector<8x7xf32>
    %409 = tpu.matmul %408, %407, %cst_183 {dimension_numbers = #tpu.dot_dimension_numbers<[1], [1], [0], [0], [0, 0, 1, 0], [], []>} : vector<8x128xf32>, vector<7x128xf32>, vector<8x7xf32> -> vector<8x7xf32>
    "tpu.trace_stop"() : () -> ()
    %c0_184 = arith.constant 0 : index
    %c0_185 = arith.constant 0 : index
    %410 = vector.load %arg15[%c0_184, %c0_185] : memref<8x1xf32, #tpu.memory_space<vmem>>, vector<8x1xf32>
    %411 = vector.broadcast %410 : vector<8x1xf32> to vector<8x7xf32>
    %412 = arith.addf %409, %411 : vector<8x7xf32>
    %c1_186 = arith.constant 1 : index
    %c0_187 = arith.constant 0 : index
    %c0_188 = arith.constant 0 : index
    %413 = vector.load %arg16[%c1_186, %c0_187, %c0_188] : memref<2x8x7xf32, #tpu.memory_space<vmem>>, vector<1x8x7xf32>
    %414 = vector.shape_cast %413 : vector<1x8x7xf32> to vector<8x7xf32>
    %415 = vector.shape_cast %412 : vector<8x7xf32> to vector<1x8x7xf32>
    tpu.vector_store %arg16[%c1_186, %c0_187, %c0_188], %415 {strides = array<i32>} : memref<2x8x7xf32, #tpu.memory_space<vmem>>, vector<1x8x7xf32>,
    return
  }
}

</mosaic_0001>

<llo_original>
// kernel: tpu_custom_call.1
$region0: #{tpu_custom_call.1}
  #allocation0 [shape = 'u32[]', space=smem, size = 0x4, offset = 0x4, fixed_abs, tag = 'smem constant byte address 0x4 - core index']
  #allocation1 [shape = 'u32[144,128]{1,0:T(1,128)}', space=vmem, size = 0x12000, scoped, tag = 'internal scratch']
  %s0 = inlined_call_operand.vmem [shape: f32[26,16], index: 0, kind: input, shape index: {}]
  %s1 = inlined_call_operand.hbm [shape: f32[16,128], index: 1, kind: input, shape index: {}]
  %s2 = inlined_call_operand.hbm [shape: f32[1,128], index: 2, kind: input, shape index: {}]
  %s3 = inlined_call_operand.hbm [shape: f32[128,128], index: 3, kind: input, shape index: {}]
  %s4 = inlined_call_operand.hbm [shape: f32[4,1,128], index: 4, kind: input, shape index: {}]
  %s5 = inlined_call_operand.hbm [shape: f32[4,1,128], index: 5, kind: input, shape index: {}]
  %s6 = inlined_call_operand.hbm [shape: f32[4,1,128], index: 6, kind: input, shape index: {}]
  %s7 = inlined_call_operand.hbm [shape: f32[4,1,128], index: 7, kind: input, shape index: {}]
  %s8 = inlined_call_operand.hbm [shape: f32[4,768,256], index: 8, kind: input, shape index: {}]
  %s9 = inlined_call_operand.hbm [shape: f32[4,1,256], index: 9, kind: input, shape index: {}]
  %s10 = inlined_call_operand.hbm [shape: f32[4,128,256], index: 10, kind: input, shape index: {}]
  %s11 = inlined_call_operand.hbm [shape: f32[4,1,256], index: 11, kind: input, shape index: {}]
  %s12 = inlined_call_operand.hbm [shape: f32[128,128], index: 12, kind: input, shape index: {}]
  %s13 = inlined_call_operand.hbm [shape: f32[1,128], index: 13, kind: input, shape index: {}]
  %s14 = inlined_call_operand.hbm [shape: f32[8,128], index: 14, kind: input, shape index: {}]
  %s15 = inlined_call_operand.vmem [shape: f32[8,1], index: 15, kind: input, shape index: {}]
  %s16 = inlined_call_operand.vmem [shape: f32[2,8,7], index: 16, kind: output, shape index: {}]
  %s17 = sld [smem:[#allocation0]]
  $region130: #{tpu_custom_call.1} parent=0
    _
  %s19 = ssub.s32 1, %s17
  %s20 = scalar_select 0, %s19, %s17
  $region1: #{tpu_custom_call.1} parent=0
    #allocation2 [shape = 'u8[8192]{0}', space=vmem, size = 0x2000, scoped, tag = 'input window, operand 1, single buffered']
    #allocation3 [shape = 's32[1]{0}', space=sflag, size = 0x4, scoped, tag = 'scoped memory for tpu_custom_call.1']
    #allocation4 [shape = 'u8[512]{0}', space=vmem, size = 0x400, scoped, tag = 'input window, operand 2, single buffered']
    #allocation5 [shape = 's32[1]{0}', space=sflag, size = 0x4, scoped, tag = 'scoped memory for tpu_custom_call.1']
    #allocation6 [shape = 'u8[65536]{0}', space=vmem, size = 0x10000, scoped, tag = 'input window, operand 3, single buffered']
    #allocation7 [shape = 'u8[2048]{0}', space=vmem, size = 0x800, scoped, tag = 'input window, operand 4, single buffered']
    #allocation8 [shape = 's32[1]{0}', space=sflag, size = 0x4, scoped, tag = 'scoped memory for tpu_custom_call.1']
    #allocation9 [shape = 'u8[2048]{0}', space=vmem, size = 0x800, scoped, tag = 'input window, operand 5, single buffered']
    #allocation10 [shape = 'u8[2048]{0}', space=vmem, size = 0x800, scoped, tag = 'input window, operand 6, single buffered']
    #allocation11 [shape = 's32[1]{0}', space=sflag, size = 0x4, scoped, tag = 'scoped memory for tpu_custom_call.1']
    #allocation12 [shape = 'u8[2048]{0}', space=vmem, size = 0x800, scoped, tag = 'input window, operand 7, single buffered']
    #allocation13 [shape = 'u8[3145728]{0}', space=vmem, size = 0x300000, scoped, tag = 'input window, operand 8, single buffered']
    #allocation14 [shape = 's32[1]{0}', space=sflag, size = 0x4, scoped, tag = 'scoped memory for tpu_custom_call.1']
    #allocation15 [shape = 'u8[4096]{0}', space=vmem, size = 0x1000, scoped, tag = 'input window, operand 9, single buffered']
    #allocation16 [shape = 'u8[524288]{0}', space=vmem, size = 0x80000, scoped, tag = 'input window, operand 10, single buffered']
    #allocation17 [shape = 's32[1]{0}', space=sflag, size = 0x4, scoped, tag = 'scoped memory for tpu_custom_call.1']
    #allocation18 [shape = 'u8[4096]{0}', space=vmem, size = 0x1000, scoped, tag = 'input window, operand 11, single buffered']
    #allocation19 [shape = 'u8[65536]{0}', space=vmem, size = 0x10000, scoped, tag = 'input window, operand 12, single buffered']
    #allocation20 [shape = 's32[1]{0}', space=sflag, size = 0x4, scoped, tag = 'scoped memory for tpu_custom_call.1']
    #allocation21 [shape = 'u8[512]{0}', space=vmem, size = 0x400, scoped, tag = 'input window, operand 13, single buffered']
    #allocation22 [shape = 'u8[4096]{0}', space=vmem, size = 0x1000, scoped, tag = 'input window, operand 14, single buffered']
    #allocation23 [shape = 's32[1]{0}', space=sflag, size = 0x4, scoped, tag = 'scoped memory for tpu_custom_call.1']
    %21 = vsyncpa [#allocation3], 0
    %22 = vsyncpa [#allocation5], 0
    %23 = vsyncpa [#allocation8], 0
    %24 = vsyncpa [#allocation11], 0
    %25 = vsyncpa [#allocation14], 0
    %26 = vsyncpa [#allocation17], 0
    %27 = vsyncpa [#allocation20], 0
    %28 = vsyncpa [#allocation23], 0
    // Predicated region
    $region2: #{tpu_custom_call.1} parent=1 // pred_check
      _
    $region3: #{tpu_custom_call.1} parent=1 // pred_check_branch
      %30 = sbr.rel (0) target = $region5
    $region4: #{tpu_custom_call.1} parent=1 // pred_region
      _
    $region5: #{tpu_custom_call.1} parent=1 // pred_fallthru
      _
    // Predicated region
    $region6: #{tpu_custom_call.1} parent=1 // pred_check
      _
    $region7: #{tpu_custom_call.1} parent=1 // pred_check_branch
      %32 = sbr.rel (0) target = $region9
    $region8: #{tpu_custom_call.1} parent=1 // pred_region
      %s34 = ssub.s32 256, 256
      %35 = vsyncadd [#allocation3], %s34
      %s36 = sshll.u32 [#allocation2], 4
      %s37 = int_to_ptr.vmem [resolvable:$true] %s36
      %42 = dma.hbm_to_vmem [thread:$0]  %s1, 256, %s37, [#allocation3], 128, 128, 8
    $region9: #{tpu_custom_call.1} parent=1 // pred_fallthru
      _
    // Predicated region
    $region10: #{tpu_custom_call.1} parent=1 // pred_check
      _
    $region11: #{tpu_custom_call.1} parent=1 // pred_check_branch
      %44 = sbr.rel (0) target = $region13
    $region12: #{tpu_custom_call.1} parent=1 // pred_region
      %s46 = ssub.s32 16, 16
      %47 = vsyncadd [#allocation5], %s46
      %s49 = sshll.u32 [#allocation4], 4
      %s50 = int_to_ptr.vmem [resolvable:$true] %s49
      %52 = dma.hbm_to_vmem [thread:$0]  %s2, 16, %s50, [#allocation5]
    $region13: #{tpu_custom_call.1} parent=1 // pred_fallthru
      _
    // Predicated region
    $region14: #{tpu_custom_call.1} parent=1 // pred_check
      _
    $region15: #{tpu_custom_call.1} parent=1 // pred_check_branch
      %54 = sbr.rel (0) target = $region17
    $region16: #{tpu_custom_call.1} parent=1 // pred_region
      %s56 = ssub.s32 2048, 2048
      %57 = vsyncadd [#allocation5], %s56
      %s58 = sshll.u32 [#allocation6], 4
      %s59 = int_to_ptr.vmem [resolvable:$true] %s58
      %64 = dma.hbm_to_vmem [thread:$0]  %s3, 2048, %s59, [#allocation5], 128, 128, 8
    $region17: #{tpu_custom_call.1} parent=1 // pred_fallthru
      _
    // Predicated region
    $region18: #{tpu_custom_call.1} parent=1 // pred_check
      _
    $region19: #{tpu_custom_call.1} parent=1 // pred_check_branch
      %66 = sbr.rel (0) target = $region21
    $region20: #{tpu_custom_call.1} parent=1 // pred_region
      %s68 = ssub.s32 64, 64
      %69 = vsyncadd [#allocation8], %s68
      %s70 = sshll.u32 [#allocation7], 4
      %s71 = int_to_ptr.vmem [resolvable:$true] %s70
      %76 = dma.hbm_to_vmem [thread:$0]  %s4, 64, %s71, [#allocation8], 16, 16, 1
    $region21: #{tpu_custom_call.1} parent=1 // pred_fallthru
      _
    // Predicated region
    $region22: #{tpu_custom_call.1} parent=1 // pred_check
      _
    $region23: #{tpu_custom_call.1} parent=1 // pred_check_branch
      %78 = sbr.rel (0) target = $region25
    $region24: #{tpu_custom_call.1} parent=1 // pred_region
      %s80 = ssub.s32 64, 64
      %81 = vsyncadd [#allocation8], %s80
      %s82 = sshll.u32 [#allocation9], 4
      %s83 = int_to_ptr.vmem [resolvable:$true] %s82
      %88 = dma.hbm_to_vmem [thread:$0]  %s5, 64, %s83, [#allocation8], 16, 16, 1
    $region25: #{tpu_custom_call.1} parent=1 // pred_fallthru
      _
    // Predicated region
    $region26: #{tpu_custom_call.1} parent=1 // pred_check
      _
    $region27: #{tpu_custom_call.1} parent=1 // pred_check_branch
      %90 = sbr.rel (0) target = $region29
    $region28: #{tpu_custom_call.1} parent=1 // pred_region
      %s92 = ssub.s32 64, 64
      %93 = vsyncadd [#allocation11], %s92
      %s94 = sshll.u32 [#allocation10], 4
      %s95 = int_to_ptr.vmem [resolvable:$true] %s94
      %100 = dma.hbm_to_vmem [thread:$0]  %s6, 64, %s95, [#allocation11], 16, 16, 1
    $region29: #{tpu_custom_call.1} parent=1 // pred_fallthru
      _
    // Predicated region
    $region30: #{tpu_custom_call.1} parent=1 // pred_check
      _
    $region31: #{tpu_custom_call.1} parent=1 // pred_check_branch
      %102 = sbr.rel (0) target = $region33
    $region32: #{tpu_custom_call.1} parent=1 // pred_region
      %s104 = ssub.s32 64, 64
      %105 = vsyncadd [#allocation11], %s104
      %s106 = sshll.u32 [#allocation12], 4
      %s107 = int_to_ptr.vmem [resolvable:$true] %s106
      %112 = dma.hbm_to_vmem [thread:$0]  %s7, 64, %s107, [#allocation11], 16, 16, 1
    $region33: #{tpu_custom_call.1} parent=1 // pred_fallthru
      _
    // Predicated region
    $region34: #{tpu_custom_call.1} parent=1 // pred_check
      _
    $region35: #{tpu_custom_call.1} parent=1 // pred_check_branch
      %114 = sbr.rel (0) target = $region37
    $region36: #{tpu_custom_call.1} parent=1 // pred_region
      %s116 = ssub.s32 98304, 98304
      %117 = vsyncadd [#allocation14], %s116
      %s118 = sshll.u32 [#allocation13], 4
      %s119 = int_to_ptr.vmem [resolvable:$true] %s118
      %124 = dma.hbm_to_vmem [thread:$0]  %s8, 98304, %s119, [#allocation14], 256, 256, 16
    $region37: #{tpu_custom_call.1} parent=1 // pred_fallthru
      _
    // Predicated region
    $region38: #{tpu_custom_call.1} parent=1 // pred_check
      _
    $region39: #{tpu_custom_call.1} parent=1 // pred_check_branch
      %126 = sbr.rel (0) target = $region41
    $region40: #{tpu_custom_call.1} parent=1 // pred_region
      %s128 = ssub.s32 128, 128
      %129 = vsyncadd [#allocation14], %s128
      %s130 = sshll.u32 [#allocation15], 4
      %s131 = int_to_ptr.vmem [resolvable:$true] %s130
      %136 = dma.hbm_to_vmem [thread:$0]  %s9, 128, %s131, [#allocation14], 32, 32, 2
    $region41: #{tpu_custom_call.1} parent=1 // pred_fallthru
      _
    // Predicated region
    $region42: #{tpu_custom_call.1} parent=1 // pred_check
      _
    $region43: #{tpu_custom_call.1} parent=1 // pred_check_branch
      %138 = sbr.rel (0) target = $region45
    $region44: #{tpu_custom_call.1} parent=1 // pred_region
      %s140 = ssub.s32 16384, 16384
      %141 = vsyncadd [#allocation17], %s140
      %s142 = sshll.u32 [#allocation16], 4
      %s143 = int_to_ptr.vmem [resolvable:$true] %s142
      %148 = dma.hbm_to_vmem [thread:$0]  %s10, 16384, %s143, [#allocation17], 256, 256, 16
    $region45: #{tpu_custom_call.1} parent=1 // pred_fallthru
      _
    // Predicated region
    $region46: #{tpu_custom_call.1} parent=1 // pred_check
      _
    $region47: #{tpu_custom_call.1} parent=1 // pred_check_branch
      %150 = sbr.rel (0) target = $region49
    $region48: #{tpu_custom_call.1} parent=1 // pred_region
      %s152 = ssub.s32 128, 128
      %153 = vsyncadd [#allocation17], %s152
      %s154 = sshll.u32 [#allocation18], 4
      %s155 = int_to_ptr.vmem [resolvable:$true] %s154
      %160 = dma.hbm_to_vmem [thread:$0]  %s11, 128, %s155, [#allocation17], 32, 32, 2
    $region49: #{tpu_custom_call.1} parent=1 // pred_fallthru
      _
    // Predicated region
    $region50: #{tpu_custom_call.1} parent=1 // pred_check
      _
    $region51: #{tpu_custom_call.1} parent=1 // pred_check_branch
      %162 = sbr.rel (0) target = $region53
    $region52: #{tpu_custom_call.1} parent=1 // pred_region
      %s164 = ssub.s32 2048, 2048
      %165 = vsyncadd [#allocation20], %s164
      %s166 = sshll.u32 [#allocation19], 4
      %s167 = int_to_ptr.vmem [resolvable:$true] %s166
      %172 = dma.hbm_to_vmem [thread:$0]  %s12, 2048, %s167, [#allocation20], 128, 128, 8
    $region53: #{tpu_custom_call.1} parent=1 // pred_fallthru
      _
    // Predicated region
    $region54: #{tpu_custom_call.1} parent=1 // pred_check
      _
    $region55: #{tpu_custom_call.1} parent=1 // pred_check_branch
      %174 = sbr.rel (0) target = $region57
    $region56: #{tpu_custom_call.1} parent=1 // pred_region
      %s176 = ssub.s32 16, 16
      %177 = vsyncadd [#allocation20], %s176
      %s179 = sshll.u32 [#allocation21], 4
      %s180 = int_to_ptr.vmem [resolvable:$true] %s179
      %182 = dma.hbm_to_vmem [thread:$0]  %s13, 16, %s180, [#allocation20]
    $region57: #{tpu_custom_call.1} parent=1 // pred_fallthru
      _
    // Predicated region
    $region58: #{tpu_custom_call.1} parent=1 // pred_check
      _
    $region59: #{tpu_custom_call.1} parent=1 // pred_check_branch
      %184 = sbr.rel (0) target = $region61
    $region60: #{tpu_custom_call.1} parent=1 // pred_region
      %s186 = ssub.s32 128, 128
      %187 = vsyncadd [#allocation23], %s186
      %s189 = sshll.u32 [#allocation22], 4
      %s190 = int_to_ptr.vmem [resolvable:$true] %s189
      %192 = dma.hbm_to_vmem [thread:$0]  %s14, 128, %s190, [#allocation23]
    $region61: #{tpu_custom_call.1} parent=1 // pred_fallthru
      _
    // Predicated region
    $region62: #{tpu_custom_call.1} parent=1 // pred_check
      _
    $region63: #{tpu_custom_call.1} parent=1 // pred_check_branch
      %194 = sbr.rel (0) target = $region65
    $region64: #{tpu_custom_call.1} parent=1 // pred_region
      _
    $region65: #{tpu_custom_call.1} parent=1 // pred_fallthru
      _
    // Predicated region
    $region66: #{tpu_custom_call.1} parent=1 // pred_check
      _
    $region67: #{tpu_custom_call.1} parent=1 // pred_check_branch
      %196 = sbr.rel (0) target = $region69
    $region68: #{tpu_custom_call.1} parent=1 // pred_region
      %197 = dma.done [#allocation3], 256
    $region69: #{tpu_custom_call.1} parent=1 // pred_fallthru
      _
    // Predicated region
    $region70: #{tpu_custom_call.1} parent=1 // pred_check
      _
    $region71: #{tpu_custom_call.1} parent=1 // pred_check_branch
      %199 = sbr.rel (0) target = $region73
    $region72: #{tpu_custom_call.1} parent=1 // pred_region
      %200 = dma.done [#allocation5], 16
    $region73: #{tpu_custom_call.1} parent=1 // pred_fallthru
      _
    // Predicated region
    $region74: #{tpu_custom_call.1} parent=1 // pred_check
      _
    $region75: #{tpu_custom_call.1} parent=1 // pred_check_branch
      %202 = sbr.rel (0) target = $region77
    $region76: #{tpu_custom_call.1} parent=1 // pred_region
      %203 = dma.done [#allocation5], 2048
    $region77: #{tpu_custom_call.1} parent=1 // pred_fallthru
      _
    // Predicated region
    $region78: #{tpu_custom_call.1} parent=1 // pred_check
      _
    $region79: #{tpu_custom_call.1} parent=1 // pred_check_branch
      %205 = sbr.rel (0) target = $region81
    $region80: #{tpu_custom_call.1} parent=1 // pred_region
      %206 = dma.done [#allocation8], 64
    $region81: #{tpu_custom_call.1} parent=1 // pred_fallthru
      _
    // Predicated region
    $region82: #{tpu_custom_call.1} parent=1 // pred_check
      _
    $region83: #{tpu_custom_call.1} parent=1 // pred_check_branch
      %208 = sbr.rel (0) target = $region85
    $region84: #{tpu_custom_call.1} parent=1 // pred_region
      %209 = dma.done [#allocation8], 64
    $region85: #{tpu_custom_call.1} parent=1 // pred_fallthru
      _
    // Predicated region
    $region86: #{tpu_custom_call.1} parent=1 // pred_check
      _
    $region87: #{tpu_custom_call.1} parent=1 // pred_check_branch
      %211 = sbr.rel (0) target = $region89
    $region88: #{tpu_custom_call.1} parent=1 // pred_region
      %212 = dma.done [#allocation11], 64
    $region89: #{tpu_custom_call.1} parent=1 // pred_fallthru
      _
    // Predicated region
    $region90: #{tpu_custom_call.1} parent=1 // pred_check
      _
    $region91: #{tpu_custom_call.1} parent=1 // pred_check_branch
      %214 = sbr.rel (0) target = $region93
    $region92: #{tpu_custom_call.1} parent=1 // pred_region
      %215 = dma.done [#allocation11], 64
    $region93: #{tpu_custom_call.1} parent=1 // pred_fallthru
      _
    // Predicated region
    $region94: #{tpu_custom_call.1} parent=1 // pred_check
      _
    $region95: #{tpu_custom_call.1} parent=1 // pred_check_branch
      %217 = sbr.rel (0) target = $region97
    $region96: #{tpu_custom_call.1} parent=1 // pred_region
      %218 = dma.done [#allocation14], 98304
    $region97: #{tpu_custom_call.1} parent=1 // pred_fallthru
      _
    // Predicated region
    $region98: #{tpu_custom_call.1} parent=1 // pred_check
      _
    $region99: #{tpu_custom_call.1} parent=1 // pred_check_branch
      %220 = sbr.rel (0) target = $region101
    $region100: #{tpu_custom_call.1} parent=1 // pred_region
      %221 = dma.done [#allocation14], 128
    $region101: #{tpu_custom_call.1} parent=1 // pred_fallthru
      _
    // Predicated region
    $region102: #{tpu_custom_call.1} parent=1 // pred_check
      _
    $region103: #{tpu_custom_call.1} parent=1 // pred_check_branch
      %223 = sbr.rel (0) target = $region105
    $region104: #{tpu_custom_call.1} parent=1 // pred_region
      %224 = dma.done [#allocation17], 16384
    $region105: #{tpu_custom_call.1} parent=1 // pred_fallthru
      _
    // Predicated region
    $region106: #{tpu_custom_call.1} parent=1 // pred_check
      _
    $region107: #{tpu_custom_call.1} parent=1 // pred_check_branch
      %226 = sbr.rel (0) target = $region109
    $region108: #{tpu_custom_call.1} parent=1 // pred_region
      %227 = dma.done [#allocation17], 128
    $region109: #{tpu_custom_call.1} parent=1 // pred_fallthru
      _
    // Predicated region
    $region110: #{tpu_custom_call.1} parent=1 // pred_check
      _
    $region111: #{tpu_custom_call.1} parent=1 // pred_check_branch
      %229 = sbr.rel (0) target = $region113
    $region112: #{tpu_custom_call.1} parent=1 // pred_region
      %230 = dma.done [#allocation20], 2048
    $region113: #{tpu_custom_call.1} parent=1 // pred_fallthru
      _
    // Predicated region
    $region114: #{tpu_custom_call.1} parent=1 // pred_check
      _
    $region115: #{tpu_custom_call.1} parent=1 // pred_check_branch
      %232 = sbr.rel (0) target = $region117
    $region116: #{tpu_custom_call.1} parent=1 // pred_region
      %233 = dma.done [#allocation20], 16
    $region117: #{tpu_custom_call.1} parent=1 // pred_fallthru
      _
    // Predicated region
    $region118: #{tpu_custom_call.1} parent=1 // pred_check
      _
    $region119: #{tpu_custom_call.1} parent=1 // pred_check_branch
      %235 = sbr.rel (0) target = $region121
    $region120: #{tpu_custom_call.1} parent=1 // pred_region
      %236 = dma.done [#allocation23], 128
    $region121: #{tpu_custom_call.1} parent=1 // pred_fallthru
      _
    %v237 = vld [vmem:[%s0] sm:$0xff]
    %v238 = vld [vmem:[%s0 + $0x8] sm:$0xff]
    %v239 = vld [vmem:[%s0 + $0x10] sm:$0xff]
    %v240 = vld [vmem:[%s0 + $0x18] sm:$0x3]
    %v241 = vld [vmem:[#allocation2] sm:$0xff]
    %v242 = vld [vmem:[#allocation2 + $0x8] sm:$0xff]
    %v243 = vld [vmem:[#allocation4] sm:$0x1]
    %v245 = vlaneseq
    %v246 = vshrl.u32 %v245, 7
    %v247 = vsub.s32 0, %v246
    %v248 = vrot.slane %v243, %v247
    %vm250 = vcmask 130048
    %v252 = vsel %vm250, %v237, 0
    %v255 = vsel %vm250, %v238, 0
    %v258 = vsel %vm250, %v239, 0
    %v261 = vsel %vm250, %v240, 0
    %263 = vmatprep.subr.mxu0 0.0
    %264 = vmatpush1.msra.mxu0 %v241
    %265 = vmatprep.subr.mxu0 0.0
    %266 = vmatpush1.msra.mxu0 %v242
    %267 = vmatprep.subr.mxu0 0.0
    %268 = vmatpush1.msra.mxu0 0.0
    %269 = vmatprep.subr.mxu0 0.0
    %270 = vmatpush1.msra.mxu0 0.0
    %271 = vmatprep.subr.mxu0 0.0
    %272 = vmatpush1.msra.mxu0 0.0
    %273 = vmatprep.subr.mxu0 0.0
    %274 = vmatpush1.msra.mxu0 0.0
    %275 = vmatprep.subr.mxu0 0.0
    %276 = vmatpush1.msra.mxu0 0.0
    %277 = vmatprep.subr.mxu0 0.0
    %278 = vmatpush1.msra.mxu0 0.0
    %279 = vmatprep.subr.mxu0 0.0
    %280 = vmatpush1.msra.mxu0 0.0
    %281 = vmatprep.subr.mxu0 0.0
    %282 = vmatpush1.msra.mxu0 0.0
    %283 = vmatprep.subr.mxu0 0.0
    %284 = vmatpush1.msra.mxu0 0.0
    %285 = vmatprep.subr.mxu0 0.0
    %286 = vmatpush1.msra.mxu0 0.0
    %287 = vmatprep.subr.mxu0 0.0
    %288 = vmatpush1.msra.mxu0 0.0
    %289 = vmatprep.subr.mxu0 0.0
    %290 = vmatpush1.msra.mxu0 0.0
    %291 = vmatprep.subr.mxu0 0.0
    %292 = vmatpush1.msra.mxu0 0.0
    %293 = vmatprep.subr.mxu0 0.0
    %294 = vmatpush1.msra.mxu0 0.0
    %295 = vmatprep.subr.mxu0 0.0
    %296 = vmatpush1.msra.mxu0 0.0
    %297 = vmatprep.subr.mxu0 0.0
    %298 = vmatpush1.msra.mxu0 0.0
    %299 = vmatprep.subr.mxu0 0.0
    %300 = vmatpush1.msra.mxu0 0.0
    %301 = vmatprep.subr.mxu0 0.0
    %302 = vmatpush1.msra.mxu0 0.0
    %303 = vmatprep.subr.mxu0 0.0
    %304 = vmatpush1.msra.mxu0 0.0
    %305 = vmatprep.subr.mxu0 0.0
    %306 = vmatpush1.msra.mxu0 0.0
    %307 = vmatprep.subr.mxu0 0.0
    %308 = vmatpush1.msra.mxu0 0.0
    %309 = vmatprep.subr.mxu0 0.0
    %310 = vmatpush1.msra.mxu0 0.0
    %311 = vmatprep.subr.mxu0 0.0
    %312 = vmatpush1.msra.mxu0 0.0
    %313 = vmatprep.subr.mxu0 0.0
    %314 = vmatpush1.msra.mxu0 0.0
    %315 = vmatprep.subr.mxu0 0.0
    %316 = vmatpush1.msra.mxu0 0.0
    %317 = vmatprep.subr.mxu0 0.0
    %318 = vmatpush1.msra.mxu0 0.0
    %319 = vmatprep.subr.mxu0 0.0
    %320 = vmatpush1.msra.mxu0 0.0
    %321 = vmatprep.subr.mxu0 0.0
    %322 = vmatpush1.msra.mxu0 0.0
    %323 = vmatprep.subr.mxu0 0.0
    %324 = vmatpush1.msra.mxu0 0.0
    %325 = vmatprep.subr.mxu0 0.0
    %326 = vmatpush1.msra.mxu0 0.0
    %327 = vmatprep.mubr.f32.mxu0 0.0
    %328 = vmatmul.mubr.f32.gmra.mrb[0].mxu0 %v252
    %v329 = vpop.f32.mrb[0].mxu0
    %v330 = vadd.f32 %v248, %v329
    %v331 = vpop.f32.mrb[0].mxu0
    %332 = vmatprep.mubr.f32.mxu0 0.0
    %333 = vmatmul.mubr.f32.gmra.mrb[0].mxu0 %v255
    %v334 = vpop.f32.mrb[0].mxu0
    %v335 = vadd.f32 %v248, %v334
    %v336 = vpop.f32.mrb[0].mxu0
    %337 = vmatprep.mubr.f32.mxu0 0.0
    %338 = vmatmul.mubr.f32.gmra.mrb[0].mxu0 %v258
    %v339 = vpop.f32.mrb[0].mxu0
    %v340 = vadd.f32 %v248, %v339
    %v341 = vpop.f32.mrb[0].mxu0
    %342 = vmatprep.mubr.f32.mxu0 0.0
    %343 = vmatmul.mubr.f32.gmra.mrb[0].mxu0 %v261
    %v344 = vpop.f32.mrb[0].mxu0
    %v345 = vadd.f32 %v248, %v344
    %v346 = vpop.f32.mrb[0].mxu0
    %347 = vdwg.mxu0
    %v348 = vadd.f32 %v330, %v335
    %v349 = vadd.f32 %v348, %v340
    %vm350 = vcmask 1041408
    %v351 = vsel %vm350, %v345, 0.0
    %v352 = vadd.f32 %v349, %v351
    %v353 = vrot.slane %v352, 4
    %v354 = vadd.f32 %v352, %v353
    %v355 = vrot.slane %v354, 2
    %v356 = vadd.f32 %v354, %v355
    %v357 = vrot.slane %v356, 1
    %v358 = vadd.f32 %v356, %v357
    %v359 = vrcp.pop 26.0
    %v360 = vmul.f32 %v358, %v359
    %v361 = vsub.f32 %v330, %v360
    %v362 = vsub.f32 %v335, %v360
    %v363 = vsub.f32 %v340, %v360
    %v364 = vsub.f32 %v345, %v360
    %v365 = vmul.f32 %v361, %v361
    %v366 = vmul.f32 %v362, %v362
    %v367 = vmul.f32 %v363, %v363
    %v368 = vmul.f32 %v364, %v364
    %v369 = vadd.f32 %v365, %v366
    %v370 = vadd.f32 %v369, %v367
    %v371 = vsel %vm350, %v368, 0.0
    %v372 = vadd.f32 %v370, %v371
    %v373 = vrot.slane %v372, 4
    %v374 = vadd.f32 %v372, %v373
    %v375 = vrot.slane %v374, 2
    %v376 = vadd.f32 %v374, %v375
    %v377 = vrot.slane %v376, 1
    %v378 = vadd.f32 %v376, %v377
    %v379 = vmul.f32 %v378, %v359
    %v380 = vadd.f32 %v379, 1e-05
    %v381 = vrsqrt.pop %v380
    %v382 = vmul.f32 %v361, %v381
    %v383 = vmul.f32 %v362, %v381
    %v384 = vmul.f32 %v363, %v381
    %v385 = vmul.f32 %v364, %v381
    %v386 = vld [vmem:[#allocation7] sm:$0x1]
    %v388 = vlaneseq
    %v389 = vshrl.u32 %v388, 7
    %v390 = vsub.s32 0, %v389
    %v391 = vrot.slane %v386, %v390
    %v393 = vmul.f32 %v382, %v391
    %v394 = vmul.f32 %v383, %v391
    %v395 = vmul.f32 %v384, %v391
    %v396 = vmul.f32 %v385, %v391
    %v397 = vld [vmem:[#allocation9] sm:$0x1]
    %v399 = vlaneseq
    %v400 = vshrl.u32 %v399, 7
    %v401 = vsub.s32 0, %v400
    %v402 = vrot.slane %v397, %v401
    %v404 = vadd.f32 %v393, %v402
    %v405 = vadd.f32 %v394, %v402
    %v406 = vadd.f32 %v395, %v402
    %v407 = vadd.f32 %v396, %v402
    %v408 = vld [vmem:[#allocation6] sm:$0xff]
    %v409 = vld [vmem:[#allocation6 + $0x8] sm:$0xff]
    %v410 = vld [vmem:[#allocation6 + $0x10] sm:$0xff]
    %v411 = vld [vmem:[#allocation6 + $0x18] sm:$0xff]
    %v412 = vld [vmem:[#allocation6 + $0x20] sm:$0xff]
    %v413 = vld [vmem:[#allocation6 + $0x28] sm:$0xff]
    %v414 = vld [vmem:[#allocation6 + $0x30] sm:$0xff]
    %v415 = vld [vmem:[#allocation6 + $0x38] sm:$0xff]
    %v416 = vld [vmem:[#allocation6 + $0x40] sm:$0xff]
    %v417 = vld [vmem:[#allocation6 + $0x48] sm:$0xff]
    %v418 = vld [vmem:[#allocation6 + $0x50] sm:$0xff]
    %v419 = vld [vmem:[#allocation6 + $0x58] sm:$0xff]
    %v420 = vld [vmem:[#allocation6 + $0x60] sm:$0xff]
    %v421 = vld [vmem:[#allocation6 + $0x68] sm:$0xff]
    %v422 = vld [vmem:[#allocation6 + $0x70] sm:$0xff]
    %v423 = vld [vmem:[#allocation6 + $0x78] sm:$0xff]
    %424 = vmatprep.subr.mxu0 0.0
    %425 = vmatpush1.msra.mxu0 %v408
    %426 = vmatprep.subr.mxu0 0.0
    %427 = vmatpush1.msra.mxu0 %v409
    %428 = vmatprep.subr.mxu0 0.0
    %429 = vmatpush1.msra.mxu0 %v410
    %430 = vmatprep.subr.mxu0 0.0
    %431 = vmatpush1.msra.mxu0 %v411
    %432 = vmatprep.subr.mxu0 0.0
    %433 = vmatpush1.msra.mxu0 %v412
    %434 = vmatprep.subr.mxu0 0.0
    %435 = vmatpush1.msra.mxu0 %v413
    %436 = vmatprep.subr.mxu0 0.0
    %437 = vmatpush1.msra.mxu0 %v414
    %438 = vmatprep.subr.mxu0 0.0
    %439 = vmatpush1.msra.mxu0 %v415
    %440 = vmatprep.subr.mxu0 0.0
    %441 = vmatpush1.msra.mxu0 %v416
    %442 = vmatprep.subr.mxu0 0.0
    %443 = vmatpush1.msra.mxu0 %v417
    %444 = vmatprep.subr.mxu0 0.0
    %445 = vmatpush1.msra.mxu0 %v418
    %446 = vmatprep.subr.mxu0 0.0
    %447 = vmatpush1.msra.mxu0 %v419
    %448 = vmatprep.subr.mxu0 0.0
    %449 = vmatpush1.msra.mxu0 %v420
    %450 = vmatprep.subr.mxu0 0.0
    %451 = vmatpush1.msra.mxu0 %v421
    %452 = vmatprep.subr.mxu0 0.0
    %453 = vmatpush1.msra.mxu0 %v422
    %454 = vmatprep.subr.mxu0 0.0
    %455 = vmatpush1.msra.mxu0 %v423
    %456 = vmatprep.subr.mxu0 0.0
    %457 = vmatpush1.msra.mxu0 0.0
    %458 = vmatprep.subr.mxu0 0.0
    %459 = vmatpush1.msra.mxu0 0.0
    %460 = vmatprep.subr.mxu0 0.0
    %461 = vmatpush1.msra.mxu0 0.0
    %462 = vmatprep.subr.mxu0 0.0
    %463 = vmatpush1.msra.mxu0 0.0
    %464 = vmatprep.subr.mxu0 0.0
    %465 = vmatpush1.msra.mxu0 0.0
    %466 = vmatprep.subr.mxu0 0.0
    %467 = vmatpush1.msra.mxu0 0.0
    %468 = vmatprep.subr.mxu0 0.0
    %469 = vmatpush1.msra.mxu0 0.0
    %470 = vmatprep.subr.mxu0 0.0
    %471 = vmatpush1.msra.mxu0 0.0
    %472 = vmatprep.subr.mxu0 0.0
    %473 = vmatpush1.msra.mxu0 0.0
    %474 = vmatprep.subr.mxu0 0.0
    %475 = vmatpush1.msra.mxu0 0.0
    %476 = vmatprep.subr.mxu0 0.0
    %477 = vmatpush1.msra.mxu0 0.0
    %478 = vmatprep.subr.mxu0 0.0
    %479 = vmatpush1.msra.mxu0 0.0
    %480 = vmatprep.subr.mxu0 0.0
    %481 = vmatpush1.msra.mxu0 0.0
    %482 = vmatprep.subr.mxu0 0.0
    %483 = vmatpush1.msra.mxu0 0.0
    %484 = vmatprep.subr.mxu0 0.0
    %485 = vmatpush1.msra.mxu0 0.0
    %486 = vmatprep.subr.mxu0 0.0
    %487 = vmatpush1.msra.mxu0 0.0
    %488 = vmatprep.mubr.f32.mxu0 0.0
    %489 = vmatmul.mubr.f32.gmra.mrb[0].mxu0 %v330
    %v490 = vpop.f32.mrb[0].mxu0
    %v491 = vadd.f32 0.0, %v490
    %v492 = vpop.f32.mrb[0].mxu0
    %493 = vmatprep.mubr.f32.mxu0 0.0
    %494 = vmatmul.mubr.f32.gmra.mrb[0].mxu0 %v335
    %v495 = vpop.f32.mrb[0].mxu0
    %v496 = vadd.f32 0.0, %v495
    %v497 = vpop.f32.mrb[0].mxu0
    %498 = vmatprep.mubr.f32.mxu0 0.0
    %499 = vmatmul.mubr.f32.gmra.mrb[0].mxu0 %v340
    %v500 = vpop.f32.mrb[0].mxu0
    %v501 = vadd.f32 0.0, %v500
    %v502 = vpop.f32.mrb[0].mxu0
    %503 = vmatprep.mubr.f32.mxu0 0.0
    %504 = vmatmul.mubr.f32.gmra.mrb[0].mxu0 %v345
    %v505 = vpop.f32.mrb[0].mxu0
    %v506 = vadd.f32 0.0, %v505
    %v507 = vpop.f32.mrb[0].mxu0
    %508 = vdwg.mxu0
    %v509 = vmul.f32 %v491, 0.125
    %v510 = vmul.f32 %v496, 0.125
    %v511 = vmul.f32 %v501, 0.125
    %v512 = vmul.f32 %v506, 0.125
    %v513 = vsub.f32 %v330, %v509
    %v514 = vsub.f32 %v335, %v510
    %v515 = vsub.f32 %v340, %v511
    %v516 = vsub.f32 %v345, %v512
    %v517 = vmul.f32 %v513, %v513
    %v518 = vmul.f32 %v514, %v514
    %v519 = vmul.f32 %v515, %v515
    %v520 = vmul.f32 %v516, %v516
    %521 = vmatprep.subr.mxu0 0.0
    %522 = vmatpush1.msra.mxu0 %v408
    %523 = vmatprep.subr.mxu0 0.0
    %524 = vmatpush1.msra.mxu0 %v409
    %525 = vmatprep.subr.mxu0 0.0
    %526 = vmatpush1.msra.mxu0 %v410
    %527 = vmatprep.subr.mxu0 0.0
    %528 = vmatpush1.msra.mxu0 %v411
    %529 = vmatprep.subr.mxu0 0.0
    %530 = vmatpush1.msra.mxu0 %v412
    %531 = vmatprep.subr.mxu0 0.0
    %532 = vmatpush1.msra.mxu0 %v413
    %533 = vmatprep.subr.mxu0 0.0
    %534 = vmatpush1.msra.mxu0 %v414
    %535 = vmatprep.subr.mxu0 0.0
    %536 = vmatpush1.msra.mxu0 %v415
    %537 = vmatprep.subr.mxu0 0.0
    %538 = vmatpush1.msra.mxu0 %v416
    %539 = vmatprep.subr.mxu0 0.0
    %540 = vmatpush1.msra.mxu0 %v417
    %541 = vmatprep.subr.mxu0 0.0
    %542 = vmatpush1.msra.mxu0 %v418
    %543 = vmatprep.subr.mxu0 0.0
    %544 = vmatpush1.msra.mxu0 %v419
    %545 = vmatprep.subr.mxu0 0.0
    %546 = vmatpush1.msra.mxu0 %v420
    %547 = vmatprep.subr.mxu0 0.0
    %548 = vmatpush1.msra.mxu0 %v421
    %549 = vmatprep.subr.mxu0 0.0
    %550 = vmatpush1.msra.mxu0 %v422
    %551 = vmatprep.subr.mxu0 0.0
    %552 = vmatpush1.msra.mxu0 %v423
    %553 = vmatprep.subr.mxu0 0.0
    %554 = vmatpush1.msra.mxu0 0.0
    %555 = vmatprep.subr.mxu0 0.0
    %556 = vmatpush1.msra.mxu0 0.0
    %557 = vmatprep.subr.mxu0 0.0
    %558 = vmatpush1.msra.mxu0 0.0
    %559 = vmatprep.subr.mxu0 0.0
    %560 = vmatpush1.msra.mxu0 0.0
    %561 = vmatprep.subr.mxu0 0.0
    %562 = vmatpush1.msra.mxu0 0.0
    %563 = vmatprep.subr.mxu0 0.0
    %564 = vmatpush1.msra.mxu0 0.0
    %565 = vmatprep.subr.mxu0 0.0
    %566 = vmatpush1.msra.mxu0 0.0
    %567 = vmatprep.subr.mxu0 0.0
    %568 = vmatpush1.msra.mxu0 0.0
    %569 = vmatprep.subr.mxu0 0.0
    %570 = vmatpush1.msra.mxu0 0.0
    %571 = vmatprep.subr.mxu0 0.0
    %572 = vmatpush1.msra.mxu0 0.0
    %573 = vmatprep.subr.mxu0 0.0
    %574 = vmatpush1.msra.mxu0 0.0
    %575 = vmatprep.subr.mxu0 0.0
    %576 = vmatpush1.msra.mxu0 0.0
    %577 = vmatprep.subr.mxu0 0.0
    %578 = vmatpush1.msra.mxu0 0.0
    %579 = vmatprep.subr.mxu0 0.0
    %580 = vmatpush1.msra.mxu0 0.0
    %581 = vmatprep.subr.mxu0 0.0
    %582 = vmatpush1.msra.mxu0 0.0
    %583 = vmatprep.subr.mxu0 0.0
    %584 = vmatpush1.msra.mxu0 0.0
    %585 = vmatprep.mubr.f32.mxu0 0.0
    %586 = vmatmul.mubr.f32.gmra.mrb[0].mxu0 %v517
    %v587 = vpop.f32.mrb[0].mxu0
    %v588 = vadd.f32 0.0, %v587
    %v589 = vpop.f32.mrb[0].mxu0
    %590 = vmatprep.mubr.f32.mxu0 0.0
    %591 = vmatmul.mubr.f32.gmra.mrb[0].mxu0 %v518
    %v592 = vpop.f32.mrb[0].mxu0
    %v593 = vadd.f32 0.0, %v592
    %v594 = vpop.f32.mrb[0].mxu0
    %595 = vmatprep.mubr.f32.mxu0 0.0
    %596 = vmatmul.mubr.f32.gmra.mrb[0].mxu0 %v519
    %v597 = vpop.f32.mrb[0].mxu0
    %v598 = vadd.f32 0.0, %v597
    %v599 = vpop.f32.mrb[0].mxu0
    %600 = vmatprep.mubr.f32.mxu0 0.0
    %601 = vmatmul.mubr.f32.gmra.mrb[0].mxu0 %v520
    %v602 = vpop.f32.mrb[0].mxu0
    %v603 = vadd.f32 0.0, %v602
    %v604 = vpop.f32.mrb[0].mxu0
    %605 = vdwg.mxu0
    %v606 = vmul.f32 %v588, 0.14285715
    %v607 = vmul.f32 %v593, 0.14285715
    %v608 = vmul.f32 %v598, 0.14285715
    %v609 = vmul.f32 %v603, 0.14285715
    %v610 = vadd.f32 %v606, 1e-05
    %v611 = vadd.f32 %v607, 1e-05
    %v612 = vadd.f32 %v608, 1e-05
    %v613 = vadd.f32 %v609, 1e-05
    %v614 = vrsqrt.pop %v610
    %v615 = vrsqrt.pop %v611
    %v616 = vrsqrt.pop %v612
    %v617 = vrsqrt.pop %v613
    %v618 = vmul.f32 %v513, %v614
    %v619 = vmul.f32 %v514, %v615
    %v620 = vmul.f32 %v515, %v616
    %v621 = vmul.f32 %v516, %v617
    %v622 = vld [vmem:[#allocation10] sm:$0x1]
    %v624 = vlaneseq
    %v625 = vshrl.u32 %v624, 7
    %v626 = vsub.s32 0, %v625
    %v627 = vrot.slane %v622, %v626
    %v629 = vmul.f32 %v618, %v627
    %v630 = vmul.f32 %v619, %v627
    %v631 = vmul.f32 %v620, %v627
    %v632 = vmul.f32 %v621, %v627
    %v633 = vld [vmem:[#allocation12] sm:$0x1]
    %v635 = vlaneseq
    %v636 = vshrl.u32 %v635, 7
    %v637 = vsub.s32 0, %v636
    %v638 = vrot.slane %v633, %v637
    %v640 = vadd.f32 %v629, %v638
    %v641 = vadd.f32 %v630, %v638
    %v642 = vadd.f32 %v631, %v638
    %v643 = vadd.f32 %v632, %v638
    %vm647 = vcmask 1046528
    %v648 = vrot.slane %v335, 1
    %v649 = vrot.slane %v340, 1
    %v650 = vsel %vm647, %v648, %v649
    %v651 = vrot.slane %v345, 1
    %v652 = vsel %vm647, %v649, %v651
    %vm655 = vcmask 1043456
    %v656 = vsel %vm655, %v335, %v650
    %v660 = vrot.slane %v405, 1
    %v661 = vrot.slane %v406, 1
    %v662 = vsel %vm647, %v660, %v661
    %v663 = vrot.slane %v407, 1
    %v664 = vsel %vm647, %v661, %v663
    %v667 = vsel %vm655, %v405, %v662
    %v671 = vrot.slane %v641, 1
    %v672 = vrot.slane %v642, 1
    %v673 = vsel %vm647, %v671, %v672
    %v674 = vrot.slane %v643, 1
    %v675 = vsel %vm647, %v672, %v674
    %v678 = vsel %vm655, %v641, %v673
    %v680 = vrot.slane %v330, 1
    %v681 = vsel %vm647, %v680, %v648
    %vm684 = vcmask 1045504
    %v685 = vrot.slane %v335, 2
    %v686 = vrot.slane %v340, 2
    %v687 = vsel %vm684, %v685, %v686
    %v688 = vrot.slane %v345, 2
    %v689 = vsel %vm684, %v686, %v688
    %v692 = vsel %vm655, %v648, %v687
    %v694 = vrot.slane %v404, 1
    %v695 = vsel %vm647, %v694, %v660
    %v698 = vrot.slane %v405, 2
    %v699 = vrot.slane %v406, 2
    %v700 = vsel %vm684, %v698, %v699
    %v701 = vrot.slane %v407, 2
    %v702 = vsel %vm684, %v699, %v701
    %v705 = vsel %vm655, %v660, %v700
    %v707 = vrot.slane %v640, 1
    %v708 = vsel %vm647, %v707, %v671
    %v711 = vrot.slane %v641, 2
    %v712 = vrot.slane %v642, 2
    %v713 = vsel %vm684, %v711, %v712
    %v714 = vrot.slane %v643, 2
    %v715 = vsel %vm684, %v712, %v714
    %v718 = vsel %vm655, %v671, %v713
    %v719 = vld [vmem:[#allocation13] sm:$0xff]
    %v720 = vld [vmem:[#allocation13 + $0x8] sm:$0xff]
    %v721 = vld [vmem:[#allocation13 + $0x10] sm:$0xff]
    %v722 = vld [vmem:[#allocation13 + $0x18] sm:$0xff]
    %v723 = vld [vmem:[#allocation13 + $0x20] sm:$0xff]
    %v724 = vld [vmem:[#allocation13 + $0x28] sm:$0xff]
    %v725 = vld [vmem:[#allocation13 + $0x30] sm:$0xff]
    %v726 = vld [vmem:[#allocation13 + $0x38] sm:$0xff]
    %v727 = vld [vmem:[#allocation13 + $0x40] sm:$0xff]
    %v728 = vld [vmem:[#allocation13 + $0x48] sm:$0xff]
    %v729 = vld [vmem:[#allocation13 + $0x50] sm:$0xff]
    %v730 = vld [vmem:[#allocation13 + $0x58] sm:$0xff]
    %v731 = vld [vmem:[#allocation13 + $0x60] sm:$0xff]
    %v732 = vld [vmem:[#allocation13 + $0x68] sm:$0xff]
    %v733 = vld [vmem:[#allocation13 + $0x70] sm:$0xff]
    %v734 = vld [vmem:[#allocation13 + $0x78] sm:$0xff]
    %v735 = vld [vmem:[#allocation13 + $0x80] sm:$0xff]
    %v736 = vld [vmem:[#allocation13 + $0x88] sm:$0xff]
    %v737 = vld [vmem:[#allocation13 + $0x90] sm:$0xff]
    %v738 = vld [vmem:[#allocation13 + $0x98] sm:$0xff]
    %v739 = vld [vmem:[#allocation13 + $0xa0] sm:$0xff]
    %v740 = vld [vmem:[#allocation13 + $0xa8] sm:$0xff]
    %v741 = vld [vmem:[#allocation13 + $0xb0] sm:$0xff]
    %v742 = vld [vmem:[#allocation13 + $0xb8] sm:$0xff]
    %v743 = vld [vmem:[#allocation13 + $0xc0] sm:$0xff]
    %v744 = vld [vmem:[#allocation13 + $0xc8] sm:$0xff]
    %v745 = vld [vmem:[#allocation13 + $0xd0] sm:$0xff]
    %v746 = vld [vmem:[#allocation13 + $0xd8] sm:$0xff]
    %v747 = vld [vmem:[#allocation13 + $0xe0] sm:$0xff]
    %v748 = vld [vmem:[#allocation13 + $0xe8] sm:$0xff]
    %v749 = vld [vmem:[#allocation13 + $0xf0] sm:$0xff]
    %v750 = vld [vmem:[#allocation13 + $0xf8] sm:$0xff]
    %v751 = vld [vmem:[#allocation13 + $0x100] sm:$0xff]
    %v752 = vld [vmem:[#allocation13 + $0x108] sm:$0xff]
    %v753 = vld [vmem:[#allocation13 + $0x110] sm:$0xff]
    %v754 = vld [vmem:[#allocation13 + $0x118] sm:$0xff]
    %v755 = vld [vmem:[#allocation13 + $0x120] sm:$0xff]
    %v756 = vld [vmem:[#allocation13 + $0x128] sm:$0xff]
    %v757 = vld [vmem:[#allocation13 + $0x130] sm:$0xff]
    %v758 = vld [vmem:[#allocation13 + $0x138] sm:$0xff]
    %v759 = vld [vmem:[#allocation13 + $0x140] sm:$0xff]
    %v760 = vld [vmem:[#allocation13 + $0x148] sm:$0xff]
    %v761 = vld [vmem:[#allocation13 + $0x150] sm:$0xff]
    %v762 = vld [vmem:[#allocation13 + $0x158] sm:$0xff]
    %v763 = vld [vmem:[#allocation13 + $0x160] sm:$0xff]
    %v764 = vld [vmem:[#allocation13 + $0x168] sm:$0xff]
    %v765 = vld [vmem:[#allocation13 + $0x170] sm:$0xff]
    %v766 = vld [vmem:[#allocation13 + $0x178] sm:$0xff]
    %v767 = vld [vmem:[#allocation13 + $0x180] sm:$0xff]
    %v768 = vld [vmem:[#allocation13 + $0x188] sm:$0xff]
    %v769 = vld [vmem:[#allocation13 + $0x190] sm:$0xff]
    %v770 = vld [vmem:[#allocation13 + $0x198] sm:$0xff]
    %v771 = vld [vmem:[#allocation13 + $0x1a0] sm:$0xff]
    %v772 = vld [vmem:[#allocation13 + $0x1a8] sm:$0xff]
    %v773 = vld [vmem:[#allocation13 + $0x1b0] sm:$0xff]
    %v774 = vld [vmem:[#allocation13 + $0x1b8] sm:$0xff]
    %v775 = vld [vmem:[#allocation13 + $0x1c0] sm:$0xff]
    %v776 = vld [vmem:[#allocation13 + $0x1c8] sm:$0xff]
    %v777 = vld [vmem:[#allocation13 + $0x1d0] sm:$0xff]
    %v778 = vld [vmem:[#allocation13 + $0x1d8] sm:$0xff]
    %v779 = vld [vmem:[#allocation13 + $0x1e0] sm:$0xff]
    %v780 = vld [vmem:[#allocation13 + $0x1e8] sm:$0xff]
    %v781 = vld [vmem:[#allocation13 + $0x1f0] sm:$0xff]
    %v782 = vld [vmem:[#allocation13 + $0x1f8] sm:$0xff]
    %v783 = vld [vmem:[#allocation13 + $0x200] sm:$0xff]
    %v784 = vld [vmem:[#allocation13 + $0x208] sm:$0xff]
    %v785 = vld [vmem:[#allocation13 + $0x210] sm:$0xff]
    %v786 = vld [vmem:[#allocation13 + $0x218] sm:$0xff]
    %v787 = vld [vmem:[#allocation13 + $0x220] sm:$0xff]
    %v788 = vld [vmem:[#allocation13 + $0x228] sm:$0xff]
    %v789 = vld [vmem:[#allocation13 + $0x230] sm:$0xff]
    %v790 = vld [vmem:[#allocation13 + $0x238] sm:$0xff]
    %v791 = vld [vmem:[#allocation13 + $0x240] sm:$0xff]
    %v792 = vld [vmem:[#allocation13 + $0x248] sm:$0xff]
    %v793 = vld [vmem:[#allocation13 + $0x250] sm:$0xff]
    %v794 = vld [vmem:[#allocation13 + $0x258] sm:$0xff]
    %v795 = vld [vmem:[#allocation13 + $0x260] sm:$0xff]
    %v796 = vld [vmem:[#allocation13 + $0x268] sm:$0xff]
    %v797 = vld [vmem:[#allocation13 + $0x270] sm:$0xff]
    %v798 = vld [vmem:[#allocation13 + $0x278] sm:$0xff]
    %v799 = vld [vmem:[#allocation13 + $0x280] sm:$0xff]
    %v800 = vld [vmem:[#allocation13 + $0x288] sm:$0xff]
    %v801 = vld [vmem:[#allocation13 + $0x290] sm:$0xff]
    %v802 = vld [vmem:[#allocation13 + $0x298] sm:$0xff]
    %v803 = vld [vmem:[#allocation13 + $0x2a0] sm:$0xff]
    %v804 = vld [vmem:[#allocation13 + $0x2a8] sm:$0xff]
    %v805 = vld [vmem:[#allocation13 + $0x2b0] sm:$0xff]
    %v806 = vld [vmem:[#allocation13 + $0x2b8] sm:$0xff]
    %v807 = vld [vmem:[#allocation13 + $0x2c0] sm:$0xff]
    %v808 = vld [vmem:[#allocation13 + $0x2c8] sm:$0xff]
    %v809 = vld [vmem:[#allocation13 + $0x2d0] sm:$0xff]
    %v810 = vld [vmem:[#allocation13 + $0x2d8] sm:$0xff]
    %v811 = vld [vmem:[#allocation13 + $0x2e0] sm:$0xff]
    %v812 = vld [vmem:[#allocation13 + $0x2e8] sm:$0xff]
    %v813 = vld [vmem:[#allocation13 + $0x2f0] sm:$0xff]
    %v814 = vld [vmem:[#allocation13 + $0x2f8] sm:$0xff]
    %v815 = vld [vmem:[#allocation13 + $0x300] sm:$0xff]
    %v816 = vld [vmem:[#allocation13 + $0x308] sm:$0xff]
    %v817 = vld [vmem:[#allocation13 + $0x310] sm:$0xff]
    %v818 = vld [vmem:[#allocation13 + $0x318] sm:$0xff]
    %v819 = vld [vmem:[#allocation13 + $0x320] sm:$0xff]
    %v820 = vld [vmem:[#allocation13 + $0x328] sm:$0xff]
    %v821 = vld [vmem:[#allocation13 + $0x330] sm:$0xff]
    %v822 = vld [vmem:[#allocation13 + $0x338] sm:$0xff]
    %v823 = vld [vmem:[#allocation13 + $0x340] sm:$0xff]
    %v824 = vld [vmem:[#allocation13 + $0x348] sm:$0xff]
    %v825 = vld [vmem:[#allocation13 + $0x350] sm:$0xff]
    %v826 = vld [vmem:[#allocation13 + $0x358] sm:$0xff]
    %v827 = vld [vmem:[#allocation13 + $0x360] sm:$0xff]
    %v828 = vld [vmem:[#allocation13 + $0x368] sm:$0xff]
    %v829 = vld [vmem:[#allocation13 + $0x370] sm:$0xff]
    %v830 = vld [vmem:[#allocation13 + $0x378] sm:$0xff]
    %v831 = vld [vmem:[#allocation13 + $0x380] sm:$0xff]
    %v832 = vld [vmem:[#allocation13 + $0x388] sm:$0xff]
    %v833 = vld [vmem:[#allocation13 + $0x390] sm:$0xff]
    %v834 = vld [vmem:[#allocation13 + $0x398] sm:$0xff]
    %v835 = vld [vmem:[#allocation13 + $0x3a0] sm:$0xff]
    %v836 = vld [vmem:[#allocation13 + $0x3a8] sm:$0xff]
    %v837 = vld [vmem:[#allocation13 + $0x3b0] sm:$0xff]
    %v838 = vld [vmem:[#allocation13 + $0x3b8] sm:$0xff]
    %v839 = vld [vmem:[#allocation13 + $0x3c0] sm:$0xff]
    %v840 = vld [vmem:[#allocation13 + $0x3c8] sm:$0xff]
    %v841 = vld [vmem:[#allocation13 + $0x3d0] sm:$0xff]
    %v842 = vld [vmem:[#allocation13 + $0x3d8] sm:$0xff]
    %v843 = vld [vmem:[#allocation13 + $0x3e0] sm:$0xff]
    %v844 = vld [vmem:[#allocation13 + $0x3e8] sm:$0xff]
    %v845 = vld [vmem:[#allocation13 + $0x3f0] sm:$0xff]
    %v846 = vld [vmem:[#allocation13 + $0x3f8] sm:$0xff]
    %v847 = vld [vmem:[#allocation13 + $0x400] sm:$0xff]
    %v848 = vld [vmem:[#allocation13 + $0x408] sm:$0xff]
    %v849 = vld [vmem:[#allocation13 + $0x410] sm:$0xff]
    %v850 = vld [vmem:[#allocation13 + $0x418] sm:$0xff]
    %v851 = vld [vmem:[#allocation13 + $0x420] sm:$0xff]
    %v852 = vld [vmem:[#allocation13 + $0x428] sm:$0xff]
    %v853 = vld [vmem:[#allocation13 + $0x430] sm:$0xff]
    %v854 = vld [vmem:[#allocation13 + $0x438] sm:$0xff]
    %v855 = vld [vmem:[#allocation13 + $0x440] sm:$0xff]
    %v856 = vld [vmem:[#allocation13 + $0x448] sm:$0xff]
    %v857 = vld [vmem:[#allocation13 + $0x450] sm:$0xff]
    %v858 = vld [vmem:[#allocation13 + $0x458] sm:$0xff]
    %v859 = vld [vmem:[#allocation13 + $0x460] sm:$0xff]
    %v860 = vld [vmem:[#allocation13 + $0x468] sm:$0xff]
    %v861 = vld [vmem:[#allocation13 + $0x470] sm:$0xff]
    %v862 = vld [vmem:[#allocation13 + $0x478] sm:$0xff]
    %v863 = vld [vmem:[#allocation13 + $0x480] sm:$0xff]
    %v864 = vld [vmem:[#allocation13 + $0x488] sm:$0xff]
    %v865 = vld [vmem:[#allocation13 + $0x490] sm:$0xff]
    %v866 = vld [vmem:[#allocation13 + $0x498] sm:$0xff]
    %v867 = vld [vmem:[#allocation13 + $0x4a0] sm:$0xff]
    %v868 = vld [vmem:[#allocation13 + $0x4a8] sm:$0xff]
    %v869 = vld [vmem:[#allocation13 + $0x4b0] sm:$0xff]
    %v870 = vld [vmem:[#allocation13 + $0x4b8] sm:$0xff]
    %v871 = vld [vmem:[#allocation13 + $0x4c0] sm:$0xff]
    %v872 = vld [vmem:[#allocation13 + $0x4c8] sm:$0xff]
    %v873 = vld [vmem:[#allocation13 + $0x4d0] sm:$0xff]
    %v874 = vld [vmem:[#allocation13 + $0x4d8] sm:$0xff]
    %v875 = vld [vmem:[#allocation13 + $0x4e0] sm:$0xff]
    %v876 = vld [vmem:[#allocation13 + $0x4e8] sm:$0xff]
    %v877 = vld [vmem:[#allocation13 + $0x4f0] sm:$0xff]
    %v878 = vld [vmem:[#allocation13 + $0x4f8] sm:$0xff]
    %v879 = vld [vmem:[#allocation13 + $0x500] sm:$0xff]
    %v880 = vld [vmem:[#allocation13 + $0x508] sm:$0xff]
    %v881 = vld [vmem:[#allocation13 + $0x510] sm:$0xff]
    %v882 = vld [vmem:[#allocation13 + $0x518] sm:$0xff]
    %v883 = vld [vmem:[#allocation13 + $0x520] sm:$0xff]
    %v884 = vld [vmem:[#allocation13 + $0x528] sm:$0xff]
    %v885 = vld [vmem:[#allocation13 + $0x530] sm:$0xff]
    %v886 = vld [vmem:[#allocation13 + $0x538] sm:$0xff]
    %v887 = vld [vmem:[#allocation13 + $0x540] sm:$0xff]
    %v888 = vld [vmem:[#allocation13 + $0x548] sm:$0xff]
    %v889 = vld [vmem:[#allocation13 + $0x550] sm:$0xff]
    %v890 = vld [vmem:[#allocation13 + $0x558] sm:$0xff]
    %v891 = vld [vmem:[#allocation13 + $0x560] sm:$0xff]
    %v892 = vld [vmem:[#allocation13 + $0x568] sm:$0xff]
    %v893 = vld [vmem:[#allocation13 + $0x570] sm:$0xff]
    %v894 = vld [vmem:[#allocation13 + $0x578] sm:$0xff]
    %v895 = vld [vmem:[#allocation13 + $0x580] sm:$0xff]
    %v896 = vld [vmem:[#allocation13 + $0x588] sm:$0xff]
    %v897 = vld [vmem:[#allocation13 + $0x590] sm:$0xff]
    %v898 = vld [vmem:[#allocation13 + $0x598] sm:$0xff]
    %v899 = vld [vmem:[#allocation13 + $0x5a0] sm:$0xff]
    %v900 = vld [vmem:[#allocation13 + $0x5a8] sm:$0xff]
    %v901 = vld [vmem:[#allocation13 + $0x5b0] sm:$0xff]
    %v902 = vld [vmem:[#allocation13 + $0x5b8] sm:$0xff]
    %v903 = vld [vmem:[#allocation13 + $0x5c0] sm:$0xff]
    %v904 = vld [vmem:[#allocation13 + $0x5c8] sm:$0xff]
    %v905 = vld [vmem:[#allocation13 + $0x5d0] sm:$0xff]
    %v906 = vld [vmem:[#allocation13 + $0x5d8] sm:$0xff]
    %v907 = vld [vmem:[#allocation13 + $0x5e0] sm:$0xff]
    %v908 = vld [vmem:[#allocation13 + $0x5e8] sm:$0xff]
    %v909 = vld [vmem:[#allocation13 + $0x5f0] sm:$0xff]
    %v910 = vld [vmem:[#allocation13 + $0x5f8] sm:$0xff]
    %v911 = vld [vmem:[#allocation15] sm:$0x3]
    %v913 = vlaneseq
    %v914 = vshrl.u32 %v913, 7
    %v915 = vsub.s32 0, %v914
    %v916 = vrot.slane %v911, %v915
    %v917 = vlaneseq
    %v918 = vshrl.u32 %v917, 7
    %v919 = vsub.s32 1, %v918
    %v920 = vrot.slane %v911, %v919
    %923 = vmatprep.subr.mxu0 %v720
    %924 = vmatpush1.msra.mxu0 %v719
    %925 = vmatprep.subr.mxu0 %v722
    %926 = vmatpush1.msra.mxu0 %v721
    %927 = vmatprep.subr.mxu0 %v724
    %928 = vmatpush1.msra.mxu0 %v723
    %929 = vmatprep.subr.mxu0 %v726
    %930 = vmatpush1.msra.mxu0 %v725
    %931 = vmatprep.subr.mxu0 %v728
    %932 = vmatpush1.msra.mxu0 %v727
    %933 = vmatprep.subr.mxu0 %v730
    %934 = vmatpush1.msra.mxu0 %v729
    %935 = vmatprep.subr.mxu0 %v732
    %936 = vmatpush1.msra.mxu0 %v731
    %937 = vmatprep.subr.mxu0 %v734
    %938 = vmatpush1.msra.mxu0 %v733
    %939 = vmatprep.subr.mxu0 %v736
    %940 = vmatpush1.msra.mxu0 %v735
    %941 = vmatprep.subr.mxu0 %v738
    %942 = vmatpush1.msra.mxu0 %v737
    %943 = vmatprep.subr.mxu0 %v740
    %944 = vmatpush1.msra.mxu0 %v739
    %945 = vmatprep.subr.mxu0 %v742
    %946 = vmatpush1.msra.mxu0 %v741
    %947 = vmatprep.subr.mxu0 %v744
    %948 = vmatpush1.msra.mxu0 %v743
    %949 = vmatprep.subr.mxu0 %v746
    %950 = vmatpush1.msra.mxu0 %v745
    %951 = vmatprep.subr.mxu0 %v748
    %952 = vmatpush1.msra.mxu0 %v747
    %953 = vmatprep.subr.mxu0 %v750
    %954 = vmatpush1.msra.mxu0 %v749
    %955 = vmatprep.subr.mxu0 %v752
    %956 = vmatpush1.msra.mxu0 %v751
    %957 = vmatprep.subr.mxu0 %v754
    %958 = vmatpush1.msra.mxu0 %v753
    %959 = vmatprep.subr.mxu0 %v756
    %960 = vmatpush1.msra.mxu0 %v755
    %961 = vmatprep.subr.mxu0 %v758
    %962 = vmatpush1.msra.mxu0 %v757
    %963 = vmatprep.subr.mxu0 %v760
    %964 = vmatpush1.msra.mxu0 %v759
    %965 = vmatprep.subr.mxu0 %v762
    %966 = vmatpush1.msra.mxu0 %v761
    %967 = vmatprep.subr.mxu0 %v764
    %968 = vmatpush1.msra.mxu0 %v763
    %969 = vmatprep.subr.mxu0 %v766
    %970 = vmatpush1.msra.mxu0 %v765
    %971 = vmatprep.subr.mxu0 %v768
    %972 = vmatpush1.msra.mxu0 %v767
    %973 = vmatprep.subr.mxu0 %v770
    %974 = vmatpush1.msra.mxu0 %v769
    %975 = vmatprep.subr.mxu0 %v772
    %976 = vmatpush1.msra.mxu0 %v771
    %977 = vmatprep.subr.mxu0 %v774
    %978 = vmatpush1.msra.mxu0 %v773
    %979 = vmatprep.subr.mxu0 %v776
    %980 = vmatpush1.msra.mxu0 %v775
    %981 = vmatprep.subr.mxu0 %v778
    %982 = vmatpush1.msra.mxu0 %v777
    %983 = vmatprep.subr.mxu0 %v780
    %984 = vmatpush1.msra.mxu0 %v779
    %985 = vmatprep.subr.mxu0 %v782
    %986 = vmatpush1.msra.mxu0 %v781
    %987 = vmatprep.mubr.f32.mxu0 %v404
    %988 = vmatmul.mubr.f32.gmra.mrb[0].mxu0 %v330
    %v989 = vpop.f32.mrb[0].mxu0
    %v990 = vadd.f32 %v916, %v989
    %v991 = vpop.f32.mrb[0].mxu0
    %v992 = vadd.f32 %v920, %v991
    %993 = vmatprep.mubr.f32.mxu0 %v667
    %994 = vmatmul.mubr.f32.gmra.mrb[0].mxu0 %v656
    %v995 = vpop.f32.mrb[0].mxu0
    %v996 = vadd.f32 %v916, %v995
    %v997 = vpop.f32.mrb[0].mxu0
    %v998 = vadd.f32 %v920, %v997
    %999 = vmatprep.mubr.f32.mxu0 %v664
    %1000 = vmatmul.mubr.f32.gmra.mrb[0].mxu0 %v652
    %v1001 = vpop.f32.mrb[0].mxu0
    %v1002 = vadd.f32 %v916, %v1001
    %v1003 = vpop.f32.mrb[0].mxu0
    %v1004 = vadd.f32 %v920, %v1003
    %1005 = vdwg.mxu0
    %1006 = vmatprep.subr.mxu0 %v784
    %1007 = vmatpush1.msra.mxu0 %v783
    %1008 = vmatprep.subr.mxu0 %v786
    %1009 = vmatpush1.msra.mxu0 %v785
    %1010 = vmatprep.subr.mxu0 %v788
    %1011 = vmatpush1.msra.mxu0 %v787
    %1012 = vmatprep.subr.mxu0 %v790
    %1013 = vmatpush1.msra.mxu0 %v789
    %1014 = vmatprep.subr.mxu0 %v792
    %1015 = vmatpush1.msra.mxu0 %v791
    %1016 = vmatprep.subr.mxu0 %v794
    %1017 = vmatpush1.msra.mxu0 %v793
    %1018 = vmatprep.subr.mxu0 %v796
    %1019 = vmatpush1.msra.mxu0 %v795
    %1020 = vmatprep.subr.mxu0 %v798
    %1021 = vmatpush1.msra.mxu0 %v797
    %1022 = vmatprep.subr.mxu0 %v800
    %1023 = vmatpush1.msra.mxu0 %v799
    %1024 = vmatprep.subr.mxu0 %v802
    %1025 = vmatpush1.msra.mxu0 %v801
    %1026 = vmatprep.subr.mxu0 %v804
    %1027 = vmatpush1.msra.mxu0 %v803
    %1028 = vmatprep.subr.mxu0 %v806
    %1029 = vmatpush1.msra.mxu0 %v805
    %1030 = vmatprep.subr.mxu0 %v808
    %1031 = vmatpush1.msra.mxu0 %v807
    %1032 = vmatprep.subr.mxu0 %v810
    %1033 = vmatpush1.msra.mxu0 %v809
    %1034 = vmatprep.subr.mxu0 %v812
    %1035 = vmatpush1.msra.mxu0 %v811
    %1036 = vmatprep.subr.mxu0 %v814
    %1037 = vmatpush1.msra.mxu0 %v813
    %1038 = vmatprep.subr.mxu0 %v816
    %1039 = vmatpush1.msra.mxu0 %v815
    %1040 = vmatprep.subr.mxu0 %v818
    %1041 = vmatpush1.msra.mxu0 %v817
    %1042 = vmatprep.subr.mxu0 %v820
    %1043 = vmatpush1.msra.mxu0 %v819
    %1044 = vmatprep.subr.mxu0 %v822
    %1045 = vmatpush1.msra.mxu0 %v821
    %1046 = vmatprep.subr.mxu0 %v824
    %1047 = vmatpush1.msra.mxu0 %v823
    %1048 = vmatprep.subr.mxu0 %v826
    %1049 = vmatpush1.msra.mxu0 %v825
    %1050 = vmatprep.subr.mxu0 %v828
    %1051 = vmatpush1.msra.mxu0 %v827
    %1052 = vmatprep.subr.mxu0 %v830
    %1053 = vmatpush1.msra.mxu0 %v829
    %1054 = vmatprep.subr.mxu0 %v832
    %1055 = vmatpush1.msra.mxu0 %v831
    %1056 = vmatprep.subr.mxu0 %v834
    %1057 = vmatpush1.msra.mxu0 %v833
    %1058 = vmatprep.subr.mxu0 %v836
    %1059 = vmatpush1.msra.mxu0 %v835
    %1060 = vmatprep.subr.mxu0 %v838
    %1061 = vmatpush1.msra.mxu0 %v837
    %1062 = vmatprep.subr.mxu0 %v840
    %1063 = vmatpush1.msra.mxu0 %v839
    %1064 = vmatprep.subr.mxu0 %v842
    %1065 = vmatpush1.msra.mxu0 %v841
    %1066 = vmatprep.subr.mxu0 %v844
    %1067 = vmatpush1.msra.mxu0 %v843
    %1068 = vmatprep.subr.mxu0 %v846
    %1069 = vmatpush1.msra.mxu0 %v845
    %1070 = vmatprep.mubr.f32.mxu0 %v681
    %1071 = vmatmul.mubr.f32.gmra.mrb[0].mxu0 %v640
    %v1072 = vpop.f32.mrb[0].mxu0
    %v1073 = vadd.f32 %v990, %v1072
    %v1074 = vpop.f32.mrb[0].mxu0
    %v1075 = vadd.f32 %v992, %v1074
    %1076 = vmatprep.mubr.f32.mxu0 %v692
    %1077 = vmatmul.mubr.f32.gmra.mrb[0].mxu0 %v678
    %v1078 = vpop.f32.mrb[0].mxu0
    %v1079 = vadd.f32 %v996, %v1078
    %v1080 = vpop.f32.mrb[0].mxu0
    %v1081 = vadd.f32 %v998, %v1080
    %1082 = vmatprep.mubr.f32.mxu0 %v689
    %1083 = vmatmul.mubr.f32.gmra.mrb[0].mxu0 %v675
    %v1084 = vpop.f32.mrb[0].mxu0
    %v1085 = vadd.f32 %v1002, %v1084
    %v1086 = vpop.f32.mrb[0].mxu0
    %v1087 = vadd.f32 %v1004, %v1086
    %1088 = vdwg.mxu0
    %1089 = vmatprep.subr.mxu0 %v848
    %1090 = vmatpush1.msra.mxu0 %v847
    %1091 = vmatprep.subr.mxu0 %v850
    %1092 = vmatpush1.msra.mxu0 %v849
    %1093 = vmatprep.subr.mxu0 %v852
    %1094 = vmatpush1.msra.mxu0 %v851
    %1095 = vmatprep.subr.mxu0 %v854
    %1096 = vmatpush1.msra.mxu0 %v853
    %1097 = vmatprep.subr.mxu0 %v856
    %1098 = vmatpush1.msra.mxu0 %v855
    %1099 = vmatprep.subr.mxu0 %v858
    %1100 = vmatpush1.msra.mxu0 %v857
    %1101 = vmatprep.subr.mxu0 %v860
    %1102 = vmatpush1.msra.mxu0 %v859
    %1103 = vmatprep.subr.mxu0 %v862
    %1104 = vmatpush1.msra.mxu0 %v861
    %1105 = vmatprep.subr.mxu0 %v864
    %1106 = vmatpush1.msra.mxu0 %v863
    %1107 = vmatprep.subr.mxu0 %v866
    %1108 = vmatpush1.msra.mxu0 %v865
    %1109 = vmatprep.subr.mxu0 %v868
    %1110 = vmatpush1.msra.mxu0 %v867
    %1111 = vmatprep.subr.mxu0 %v870
    %1112 = vmatpush1.msra.mxu0 %v869
    %1113 = vmatprep.subr.mxu0 %v872
    %1114 = vmatpush1.msra.mxu0 %v871
    %1115 = vmatprep.subr.mxu0 %v874
    %1116 = vmatpush1.msra.mxu0 %v873
    %1117 = vmatprep.subr.mxu0 %v876
    %1118 = vmatpush1.msra.mxu0 %v875
    %1119 = vmatprep.subr.mxu0 %v878
    %1120 = vmatpush1.msra.mxu0 %v877
    %1121 = vmatprep.subr.mxu0 %v880
    %1122 = vmatpush1.msra.mxu0 %v879
    %1123 = vmatprep.subr.mxu0 %v882
    %1124 = vmatpush1.msra.mxu0 %v881
    %1125 = vmatprep.subr.mxu0 %v884
    %1126 = vmatpush1.msra.mxu0 %v883
    %1127 = vmatprep.subr.mxu0 %v886
    %1128 = vmatpush1.msra.mxu0 %v885
    %1129 = vmatprep.subr.mxu0 %v888
    %1130 = vmatpush1.msra.mxu0 %v887
    %1131 = vmatprep.subr.mxu0 %v890
    %1132 = vmatpush1.msra.mxu0 %v889
    %1133 = vmatprep.subr.mxu0 %v892
    %1134 = vmatpush1.msra.mxu0 %v891
    %1135 = vmatprep.subr.mxu0 %v894
    %1136 = vmatpush1.msra.mxu0 %v893
    %1137 = vmatprep.subr.mxu0 %v896
    %1138 = vmatpush1.msra.mxu0 %v895
    %1139 = vmatprep.subr.mxu0 %v898
    %1140 = vmatpush1.msra.mxu0 %v897
    %1141 = vmatprep.subr.mxu0 %v900
    %1142 = vmatpush1.msra.mxu0 %v899
    %1143 = vmatprep.subr.mxu0 %v902
    %1144 = vmatpush1.msra.mxu0 %v901
    %1145 = vmatprep.subr.mxu0 %v904
    %1146 = vmatpush1.msra.mxu0 %v903
    %1147 = vmatprep.subr.mxu0 %v906
    %1148 = vmatpush1.msra.mxu0 %v905
    %1149 = vmatprep.subr.mxu0 %v908
    %1150 = vmatpush1.msra.mxu0 %v907
    %1151 = vmatprep.subr.mxu0 %v910
    %1152 = vmatpush1.msra.mxu0 %v909
    %1153 = vmatprep.mubr.f32.mxu0 %v708
    %1154 = vmatmul.mubr.f32.gmra.mrb[0].mxu0 %v695
    %v1155 = vpop.f32.mrb[0].mxu0
    %v1156 = vadd.f32 %v1073, %v1155
    %v1157 = vpop.f32.mrb[0].mxu0
    %v1158 = vadd.f32 %v1075, %v1157
    %1159 = vmatprep.mubr.f32.mxu0 %v718
    %1160 = vmatmul.mubr.f32.gmra.mrb[0].mxu0 %v705
    %v1161 = vpop.f32.mrb[0].mxu0
    %v1162 = vadd.f32 %v1079, %v1161
    %v1163 = vpop.f32.mrb[0].mxu0
    %v1164 = vadd.f32 %v1081, %v1163
    %1165 = vmatprep.mubr.f32.mxu0 %v715
    %1166 = vmatmul.mubr.f32.gmra.mrb[0].mxu0 %v702
    %v1167 = vpop.f32.mrb[0].mxu0
    %v1168 = vadd.f32 %v1085, %v1167
    %v1169 = vpop.f32.mrb[0].mxu0
    %v1170 = vadd.f32 %v1087, %v1169
    %1171 = vdwg.mxu0
    %v1172 = vtanh.pop %v1156
    %v1173 = vtanh.pop %v1162
    %v1174 = vtanh.pop %v1168
    %v1175 = vxor.u32 %v1158, 2147483648
    %v1176 = vxor.u32 %v1164, 2147483648
    %v1177 = vxor.u32 %v1170, 2147483648
    %v1178 = vmul.f32 %v1175, 1.442695
    %v1179 = vpow.pop %v1178
    %v1180 = vmul.f32 %v1176, 1.442695
    %v1181 = vpow.pop %v1180
    %v1182 = vmul.f32 %v1177, 1.442695
    %v1183 = vpow.pop %v1182
    %v1184 = vadd.f32 %v1179, 1.0
    %v1185 = vadd.f32 %v1181, 1.0
    %v1186 = vadd.f32 %v1183, 1.0
    %v1187 = vrcp.pop %v1184
    %v1188 = vmul.f32 1.0, %v1187
    %v1189 = vrcp.pop %v1185
    %v1190 = vmul.f32 1.0, %v1189
    %v1191 = vrcp.pop %v1186
    %v1192 = vmul.f32 1.0, %v1191
    %v1193 = vmul.f32 %v1172, %v1188
    %v1194 = vmul.f32 %v1173, %v1190
    %v1195 = vmul.f32 %v1174, %v1192
    %v1196 = vld [vmem:[#allocation16] sm:$0xff]
    %v1197 = vld [vmem:[#allocation16 + $0x8] sm:$0xff]
    %v1198 = vld [vmem:[#allocation16 + $0x10] sm:$0xff]
    %v1199 = vld [vmem:[#allocation16 + $0x18] sm:$0xff]
    %v1200 = vld [vmem:[#allocation16 + $0x20] sm:$0xff]
    %v1201 = vld [vmem:[#allocation16 + $0x28] sm:$0xff]
    %v1202 = vld [vmem:[#allocation16 + $0x30] sm:$0xff]
    %v1203 = vld [vmem:[#allocation16 + $0x38] sm:$0xff]
    %v1204 = vld [vmem:[#allocation16 + $0x40] sm:$0xff]
    %v1205 = vld [vmem:[#allocation16 + $0x48] sm:$0xff]
    %v1206 = vld [vmem:[#allocation16 + $0x50] sm:$0xff]
    %v1207 = vld [vmem:[#allocation16 + $0x58] sm:$0xff]
    %v1208 = vld [vmem:[#allocation16 + $0x60] sm:$0xff]
    %v1209 = vld [vmem:[#allocation16 + $0x68] sm:$0xff]
    %v1210 = vld [vmem:[#allocation16 + $0x70] sm:$0xff]
    %v1211 = vld [vmem:[#allocation16 + $0x78] sm:$0xff]
    %v1212 = vld [vmem:[#allocation16 + $0x80] sm:$0xff]
    %v1213 = vld [vmem:[#allocation16 + $0x88] sm:$0xff]
    %v1214 = vld [vmem:[#allocation16 + $0x90] sm:$0xff]
    %v1215 = vld [vmem:[#allocation16 + $0x98] sm:$0xff]
    %v1216 = vld [vmem:[#allocation16 + $0xa0] sm:$0xff]
    %v1217 = vld [vmem:[#allocation16 + $0xa8] sm:$0xff]
    %v1218 = vld [vmem:[#allocation16 + $0xb0] sm:$0xff]
    %v1219 = vld [vmem:[#allocation16 + $0xb8] sm:$0xff]
    %v1220 = vld [vmem:[#allocation16 + $0xc0] sm:$0xff]
    %v1221 = vld [vmem:[#allocation16 + $0xc8] sm:$0xff]
    %v1222 = vld [vmem:[#allocation16 + $0xd0] sm:$0xff]
    %v1223 = vld [vmem:[#allocation16 + $0xd8] sm:$0xff]
    %v1224 = vld [vmem:[#allocation16 + $0xe0] sm:$0xff]
    %v1225 = vld [vmem:[#allocation16 + $0xe8] sm:$0xff]
    %v1226 = vld [vmem:[#allocation16 + $0xf0] sm:$0xff]
    %v1227 = vld [vmem:[#allocation16 + $0xf8] sm:$0xff]
    %v1228 = vld [vmem:[#allocation18] sm:$0x3]
    %v1230 = vlaneseq
    %v1231 = vshrl.u32 %v1230, 7
    %v1232 = vsub.s32 0, %v1231
    %v1233 = vrot.slane %v1228, %v1232
    %v1234 = vlaneseq
    %v1235 = vshrl.u32 %v1234, 7
    %v1236 = vsub.s32 1, %v1235
    %v1237 = vrot.slane %v1228, %v1236
    %1240 = vmatprep.subr.mxu0 %v1197
    %1241 = vmatpush1.msra.mxu0 %v1196
    %1242 = vmatprep.subr.mxu0 %v1199
    %1243 = vmatpush1.msra.mxu0 %v1198
    %1244 = vmatprep.subr.mxu0 %v1201
    %1245 = vmatpush1.msra.mxu0 %v1200
    %1246 = vmatprep.subr.mxu0 %v1203
    %1247 = vmatpush1.msra.mxu0 %v1202
    %1248 = vmatprep.subr.mxu0 %v1205
    %1249 = vmatpush1.msra.mxu0 %v1204
    %1250 = vmatprep.subr.mxu0 %v1207
    %1251 = vmatpush1.msra.mxu0 %v1206
    %1252 = vmatprep.subr.mxu0 %v1209
    %1253 = vmatpush1.msra.mxu0 %v1208
    %1254 = vmatprep.subr.mxu0 %v1211
    %1255 = vmatpush1.msra.mxu0 %v1210
    %1256 = vmatprep.subr.mxu0 %v1213
    %1257 = vmatpush1.msra.mxu0 %v1212
    %1258 = vmatprep.subr.mxu0 %v1215
    %1259 = vmatpush1.msra.mxu0 %v1214
    %1260 = vmatprep.subr.mxu0 %v1217
    %1261 = vmatpush1.msra.mxu0 %v1216
    %1262 = vmatprep.subr.mxu0 %v1219
    %1263 = vmatpush1.msra.mxu0 %v1218
    %1264 = vmatprep.subr.mxu0 %v1221
    %1265 = vmatpush1.msra.mxu0 %v1220
    %1266 = vmatprep.subr.mxu0 %v1223
    %1267 = vmatpush1.msra.mxu0 %v1222
    %1268 = vmatprep.subr.mxu0 %v1225
    %1269 = vmatpush1.msra.mxu0 %v1224
    %1270 = vmatprep.subr.mxu0 %v1227
    %1271 = vmatpush1.msra.mxu0 %v1226
    %1272 = vmatprep.subr.mxu0 0.0
    %1273 = vmatpush1.msra.mxu0 0.0
    %1274 = vmatprep.subr.mxu0 0.0
    %1275 = vmatpush1.msra.mxu0 0.0
    %1276 = vmatprep.subr.mxu0 0.0
    %1277 = vmatpush1.msra.mxu0 0.0
    %1278 = vmatprep.subr.mxu0 0.0
    %1279 = vmatpush1.msra.mxu0 0.0
    %1280 = vmatprep.subr.mxu0 0.0
    %1281 = vmatpush1.msra.mxu0 0.0
    %1282 = vmatprep.subr.mxu0 0.0
    %1283 = vmatpush1.msra.mxu0 0.0
    %1284 = vmatprep.subr.mxu0 0.0
    %1285 = vmatpush1.msra.mxu0 0.0
    %1286 = vmatprep.subr.mxu0 0.0
    %1287 = vmatpush1.msra.mxu0 0.0
    %1288 = vmatprep.subr.mxu0 0.0
    %1289 = vmatpush1.msra.mxu0 0.0
    %1290 = vmatprep.subr.mxu0 0.0
    %1291 = vmatpush1.msra.mxu0 0.0
    %1292 = vmatprep.subr.mxu0 0.0
    %1293 = vmatpush1.msra.mxu0 0.0
    %1294 = vmatprep.subr.mxu0 0.0
    %1295 = vmatpush1.msra.mxu0 0.0
    %1296 = vmatprep.subr.mxu0 0.0
    %1297 = vmatpush1.msra.mxu0 0.0
    %1298 = vmatprep.subr.mxu0 0.0
    %1299 = vmatpush1.msra.mxu0 0.0
    %1300 = vmatprep.subr.mxu0 0.0
    %1301 = vmatpush1.msra.mxu0 0.0
    %1302 = vmatprep.subr.mxu0 0.0
    %1303 = vmatpush1.msra.mxu0 0.0
    %1304 = vmatprep.mubr.f32.mxu0 0.0
    %1305 = vmatmul.mubr.f32.gmra.mrb[0].mxu0 %v1193
    %v1306 = vpop.f32.mrb[0].mxu0
    %v1307 = vadd.f32 %v1233, %v1306
    %v1308 = vpop.f32.mrb[0].mxu0
    %v1309 = vadd.f32 %v1237, %v1308
    %1310 = vmatprep.mubr.f32.mxu0 0.0
    %1311 = vmatmul.mubr.f32.gmra.mrb[0].mxu0 %v1194
    %v1312 = vpop.f32.mrb[0].mxu0
    %v1313 = vadd.f32 %v1233, %v1312
    %v1314 = vpop.f32.mrb[0].mxu0
    %v1315 = vadd.f32 %v1237, %v1314
    %1316 = vmatprep.mubr.f32.mxu0 0.0
    %1317 = vmatmul.mubr.f32.gmra.mrb[0].mxu0 %v1195
    %v1318 = vpop.f32.mrb[0].mxu0
    %v1319 = vadd.f32 %v1233, %v1318
    %v1320 = vpop.f32.mrb[0].mxu0
    %v1321 = vadd.f32 %v1237, %v1320
    %1322 = vdwg.mxu0
    %v1323 = vadd.f32 %v1309, %v681
    %v1324 = vadd.f32 %v1315, %v692
    %v1325 = vadd.f32 %v1321, %v689
    %v1326 = vadd.f32 %v1323, %v1324
    %v1327 = vadd.f32 %v1326, %v1325
    %v1328 = vrot.slane %v1327, 4
    %v1329 = vadd.f32 %v1327, %v1328
    %v1330 = vrot.slane %v1329, 2
    %v1331 = vadd.f32 %v1329, %v1330
    %v1332 = vrot.slane %v1331, 1
    %v1333 = vadd.f32 %v1331, %v1332
    %v1334 = vrcp.pop 24.0
    %v1335 = vmul.f32 %v1333, %v1334
    %v1336 = vsub.f32 %v1323, %v1335
    %v1337 = vsub.f32 %v1324, %v1335
    %v1338 = vsub.f32 %v1325, %v1335
    %v1339 = vmul.f32 %v1336, %v1336
    %v1340 = vmul.f32 %v1337, %v1337
    %v1341 = vmul.f32 %v1338, %v1338
    %v1342 = vadd.f32 %v1339, %v1340
    %v1343 = vadd.f32 %v1342, %v1341
    %v1344 = vrot.slane %v1343, 4
    %v1345 = vadd.f32 %v1343, %v1344
    %v1346 = vrot.slane %v1345, 2
    %v1347 = vadd.f32 %v1345, %v1346
    %v1348 = vrot.slane %v1347, 1
    %v1349 = vadd.f32 %v1347, %v1348
    %v1350 = vmul.f32 %v1349, %v1334
    %v1351 = vadd.f32 %v1350, 1e-05
    %v1352 = vrsqrt.pop %v1351
    %v1353 = vmul.f32 %v1336, %v1352
    %v1354 = vmul.f32 %v1337, %v1352
    %v1355 = vmul.f32 %v1338, %v1352
    %s1356 = scalar_lea.vmem [#allocation7], 1
    %v1357 = vld [vmem:[%s1356] sm:$0x1]
    %v1359 = vlaneseq
    %v1360 = vshrl.u32 %v1359, 7
    %v1361 = vsub.s32 0, %v1360
    %v1362 = vrot.slane %v1357, %v1361
    %v1364 = vmul.f32 %v1353, %v1362
    %v1365 = vmul.f32 %v1354, %v1362
    %v1366 = vmul.f32 %v1355, %v1362
    %s1367 = scalar_lea.vmem [#allocation9], 1
    %v1368 = vld [vmem:[%s1367] sm:$0x1]
    %v1370 = vlaneseq
    %v1371 = vshrl.u32 %v1370, 7
    %v1372 = vsub.s32 0, %v1371
    %v1373 = vrot.slane %v1368, %v1372
    %v1375 = vadd.f32 %v1364, %v1373
    %v1376 = vadd.f32 %v1365, %v1373
    %v1377 = vadd.f32 %v1366, %v1373
    %1378 = vmatprep.subr.mxu0 0.0
    %1379 = vmatpush1.msra.mxu0 %v408
    %1380 = vmatprep.subr.mxu0 0.0
    %1381 = vmatpush1.msra.mxu0 %v409
    %1382 = vmatprep.subr.mxu0 0.0
    %1383 = vmatpush1.msra.mxu0 %v410
    %1384 = vmatprep.subr.mxu0 0.0
    %1385 = vmatpush1.msra.mxu0 %v411
    %1386 = vmatprep.subr.mxu0 0.0
    %1387 = vmatpush1.msra.mxu0 %v412
    %1388 = vmatprep.subr.mxu0 0.0
    %1389 = vmatpush1.msra.mxu0 %v413
    %1390 = vmatprep.subr.mxu0 0.0
    %1391 = vmatpush1.msra.mxu0 %v414
    %1392 = vmatprep.subr.mxu0 0.0
    %1393 = vmatpush1.msra.mxu0 %v415
    %1394 = vmatprep.subr.mxu0 0.0
    %1395 = vmatpush1.msra.mxu0 %v416
    %1396 = vmatprep.subr.mxu0 0.0
    %1397 = vmatpush1.msra.mxu0 %v417
    %1398 = vmatprep.subr.mxu0 0.0
    %1399 = vmatpush1.msra.mxu0 %v418
    %1400 = vmatprep.subr.mxu0 0.0
    %1401 = vmatpush1.msra.mxu0 %v419
    %1402 = vmatprep.subr.mxu0 0.0
    %1403 = vmatpush1.msra.mxu0 %v420
    %1404 = vmatprep.subr.mxu0 0.0
    %1405 = vmatpush1.msra.mxu0 %v421
    %1406 = vmatprep.subr.mxu0 0.0
    %1407 = vmatpush1.msra.mxu0 %v422
    %1408 = vmatprep.subr.mxu0 0.0
    %1409 = vmatpush1.msra.mxu0 %v423
    %1410 = vmatprep.subr.mxu0 0.0
    %1411 = vmatpush1.msra.mxu0 0.0
    %1412 = vmatprep.subr.mxu0 0.0
    %1413 = vmatpush1.msra.mxu0 0.0
    %1414 = vmatprep.subr.mxu0 0.0
    %1415 = vmatpush1.msra.mxu0 0.0
    %1416 = vmatprep.subr.mxu0 0.0
    %1417 = vmatpush1.msra.mxu0 0.0
    %1418 = vmatprep.subr.mxu0 0.0
    %1419 = vmatpush1.msra.mxu0 0.0
    %1420 = vmatprep.subr.mxu0 0.0
    %1421 = vmatpush1.msra.mxu0 0.0
    %1422 = vmatprep.subr.mxu0 0.0
    %1423 = vmatpush1.msra.mxu0 0.0
    %1424 = vmatprep.subr.mxu0 0.0
    %1425 = vmatpush1.msra.mxu0 0.0
    %1426 = vmatprep.subr.mxu0 0.0
    %1427 = vmatpush1.msra.mxu0 0.0
    %1428 = vmatprep.subr.mxu0 0.0
    %1429 = vmatpush1.msra.mxu0 0.0
    %1430 = vmatprep.subr.mxu0 0.0
    %1431 = vmatpush1.msra.mxu0 0.0
    %1432 = vmatprep.subr.mxu0 0.0
    %1433 = vmatpush1.msra.mxu0 0.0
    %1434 = vmatprep.subr.mxu0 0.0
    %1435 = vmatpush1.msra.mxu0 0.0
    %1436 = vmatprep.subr.mxu0 0.0
    %1437 = vmatpush1.msra.mxu0 0.0
    %1438 = vmatprep.subr.mxu0 0.0
    %1439 = vmatpush1.msra.mxu0 0.0
    %1440 = vmatprep.subr.mxu0 0.0
    %1441 = vmatpush1.msra.mxu0 0.0
    %1442 = vmatprep.mubr.f32.mxu0 0.0
    %1443 = vmatmul.mubr.f32.gmra.mrb[0].mxu0 %v1323
    %v1444 = vpop.f32.mrb[0].mxu0
    %v1445 = vadd.f32 0.0, %v1444
    %v1446 = vpop.f32.mrb[0].mxu0
    %1447 = vmatprep.mubr.f32.mxu0 0.0
    %1448 = vmatmul.mubr.f32.gmra.mrb[0].mxu0 %v1324
    %v1449 = vpop.f32.mrb[0].mxu0
    %v1450 = vadd.f32 0.0, %v1449
    %v1451 = vpop.f32.mrb[0].mxu0
    %1452 = vmatprep.mubr.f32.mxu0 0.0
    %1453 = vmatmul.mubr.f32.gmra.mrb[0].mxu0 %v1325
    %v1454 = vpop.f32.mrb[0].mxu0
    %v1455 = vadd.f32 0.0, %v1454
    %v1456 = vpop.f32.mrb[0].mxu0
    %1457 = vdwg.mxu0
    %v1458 = vmul.f32 %v1445, 0.125
    %v1459 = vmul.f32 %v1450, 0.125
    %v1460 = vmul.f32 %v1455, 0.125
    %v1461 = vsub.f32 %v1323, %v1458
    %v1462 = vsub.f32 %v1324, %v1459
    %v1463 = vsub.f32 %v1325, %v1460
    %v1464 = vmul.f32 %v1461, %v1461
    %v1465 = vmul.f32 %v1462, %v1462
    %v1466 = vmul.f32 %v1463, %v1463
    %1467 = vmatprep.subr.mxu0 0.0
    %1468 = vmatpush1.msra.mxu0 %v408
    %1469 = vmatprep.subr.mxu0 0.0
    %1470 = vmatpush1.msra.mxu0 %v409
    %1471 = vmatprep.subr.mxu0 0.0
    %1472 = vmatpush1.msra.mxu0 %v410
    %1473 = vmatprep.subr.mxu0 0.0
    %1474 = vmatpush1.msra.mxu0 %v411
    %1475 = vmatprep.subr.mxu0 0.0
    %1476 = vmatpush1.msra.mxu0 %v412
    %1477 = vmatprep.subr.mxu0 0.0
    %1478 = vmatpush1.msra.mxu0 %v413
    %1479 = vmatprep.subr.mxu0 0.0
    %1480 = vmatpush1.msra.mxu0 %v414
    %1481 = vmatprep.subr.mxu0 0.0
    %1482 = vmatpush1.msra.mxu0 %v415
    %1483 = vmatprep.subr.mxu0 0.0
    %1484 = vmatpush1.msra.mxu0 %v416
    %1485 = vmatprep.subr.mxu0 0.0
    %1486 = vmatpush1.msra.mxu0 %v417
    %1487 = vmatprep.subr.mxu0 0.0
    %1488 = vmatpush1.msra.mxu0 %v418
    %1489 = vmatprep.subr.mxu0 0.0
    %1490 = vmatpush1.msra.mxu0 %v419
    %1491 = vmatprep.subr.mxu0 0.0
    %1492 = vmatpush1.msra.mxu0 %v420
    %1493 = vmatprep.subr.mxu0 0.0
    %1494 = vmatpush1.msra.mxu0 %v421
    %1495 = vmatprep.subr.mxu0 0.0
    %1496 = vmatpush1.msra.mxu0 %v422
    %1497 = vmatprep.subr.mxu0 0.0
    %1498 = vmatpush1.msra.mxu0 %v423
    %1499 = vmatprep.subr.mxu0 0.0
    %1500 = vmatpush1.msra.mxu0 0.0
    %1501 = vmatprep.subr.mxu0 0.0
    %1502 = vmatpush1.msra.mxu0 0.0
    %1503 = vmatprep.subr.mxu0 0.0
    %1504 = vmatpush1.msra.mxu0 0.0
    %1505 = vmatprep.subr.mxu0 0.0
    %1506 = vmatpush1.msra.mxu0 0.0
    %1507 = vmatprep.subr.mxu0 0.0
    %1508 = vmatpush1.msra.mxu0 0.0
    %1509 = vmatprep.subr.mxu0 0.0
    %1510 = vmatpush1.msra.mxu0 0.0
    %1511 = vmatprep.subr.mxu0 0.0
    %1512 = vmatpush1.msra.mxu0 0.0
    %1513 = vmatprep.subr.mxu0 0.0
    %1514 = vmatpush1.msra.mxu0 0.0
    %1515 = vmatprep.subr.mxu0 0.0
    %1516 = vmatpush1.msra.mxu0 0.0
    %1517 = vmatprep.subr.mxu0 0.0
    %1518 = vmatpush1.msra.mxu0 0.0
    %1519 = vmatprep.subr.mxu0 0.0
    %1520 = vmatpush1.msra.mxu0 0.0
    %1521 = vmatprep.subr.mxu0 0.0
    %1522 = vmatpush1.msra.mxu0 0.0
    %1523 = vmatprep.subr.mxu0 0.0
    %1524 = vmatpush1.msra.mxu0 0.0
    %1525 = vmatprep.subr.mxu0 0.0
    %1526 = vmatpush1.msra.mxu0 0.0
    %1527 = vmatprep.subr.mxu0 0.0
    %1528 = vmatpush1.msra.mxu0 0.0
    %1529 = vmatprep.subr.mxu0 0.0
    %1530 = vmatpush1.msra.mxu0 0.0
    %1531 = vmatprep.mubr.f32.mxu0 0.0
    %1532 = vmatmul.mubr.f32.gmra.mrb[0].mxu0 %v1464
    %v1533 = vpop.f32.mrb[0].mxu0
    %v1534 = vadd.f32 0.0, %v1533
    %v1535 = vpop.f32.mrb[0].mxu0
    %1536 = vmatprep.mubr.f32.mxu0 0.0
    %1537 = vmatmul.mubr.f32.gmra.mrb[0].mxu0 %v1465
    %v1538 = vpop.f32.mrb[0].mxu0
    %v1539 = vadd.f32 0.0, %v1538
    %v1540 = vpop.f32.mrb[0].mxu0
    %1541 = vmatprep.mubr.f32.mxu0 0.0
    %1542 = vmatmul.mubr.f32.gmra.mrb[0].mxu0 %v1466
    %v1543 = vpop.f32.mrb[0].mxu0
    %v1544 = vadd.f32 0.0, %v1543
    %v1545 = vpop.f32.mrb[0].mxu0
    %1546 = vdwg.mxu0
    %v1547 = vmul.f32 %v1534, 0.14285715
    %v1548 = vmul.f32 %v1539, 0.14285715
    %v1549 = vmul.f32 %v1544, 0.14285715
    %v1550 = vadd.f32 %v1547, 1e-05
    %v1551 = vadd.f32 %v1548, 1e-05
    %v1552 = vadd.f32 %v1549, 1e-05
    %v1553 = vrsqrt.pop %v1550
    %v1554 = vrsqrt.pop %v1551
    %v1555 = vrsqrt.pop %v1552
    %v1556 = vmul.f32 %v1461, %v1553
    %v1557 = vmul.f32 %v1462, %v1554
    %v1558 = vmul.f32 %v1463, %v1555
    %s1559 = scalar_lea.vmem [#allocation10], 1
    %v1560 = vld [vmem:[%s1559] sm:$0x1]
    %v1562 = vlaneseq
    %v1563 = vshrl.u32 %v1562, 7
    %v1564 = vsub.s32 0, %v1563
    %v1565 = vrot.slane %v1560, %v1564
    %v1567 = vmul.f32 %v1556, %v1565
    %v1568 = vmul.f32 %v1557, %v1565
    %v1569 = vmul.f32 %v1558, %v1565
    %s1570 = scalar_lea.vmem [#allocation12], 1
    %v1571 = vld [vmem:[%s1570] sm:$0x1]
    %v1573 = vlaneseq
    %v1574 = vshrl.u32 %v1573, 7
    %v1575 = vsub.s32 0, %v1574
    %v1576 = vrot.slane %v1571, %v1575
    %v1578 = vadd.f32 %v1567, %v1576
    %v1579 = vadd.f32 %v1568, %v1576
    %v1580 = vadd.f32 %v1569, %v1576
    %v1583 = vrot.slane %v1324, 2
    %v1584 = vrot.slane %v1325, 2
    %v1585 = vsel %vm684, %v1583, %v1584
    %v1588 = vsel %vm350, %v1324, %v1585
    %v1591 = vrot.slane %v1376, 2
    %v1592 = vrot.slane %v1377, 2
    %v1593 = vsel %vm684, %v1591, %v1592
    %v1596 = vsel %vm350, %v1376, %v1593
    %v1599 = vrot.slane %v1579, 2
    %v1600 = vrot.slane %v1580, 2
    %v1601 = vsel %vm684, %v1599, %v1600
    %v1604 = vsel %vm350, %v1579, %v1601
    %v1606 = vrot.slane %v1323, 2
    %v1607 = vsel %vm684, %v1606, %v1583
    %v1610 = vrot.slane %v1324, 4
    %v1611 = vrot.slane %v1325, 4
    %v1612 = vsel %vm655, %v1610, %v1611
    %v1615 = vsel %vm350, %v1583, %v1612
    %v1617 = vrot.slane %v1375, 2
    %v1618 = vsel %vm684, %v1617, %v1591
    %v1621 = vrot.slane %v1376, 4
    %v1622 = vrot.slane %v1377, 4
    %v1623 = vsel %vm655, %v1621, %v1622
    %v1626 = vsel %vm350, %v1591, %v1623
    %v1628 = vrot.slane %v1578, 2
    %v1629 = vsel %vm684, %v1628, %v1599
    %v1632 = vrot.slane %v1579, 4
    %v1633 = vrot.slane %v1580, 4
    %v1634 = vsel %vm655, %v1632, %v1633
    %v1637 = vsel %vm350, %v1599, %v1634
    %s1638 = scalar_lea.vmem [#allocation13], 1536
    %v1639 = vld [vmem:[%s1638] sm:$0xff]
    %v1640 = vld [vmem:[%s1638 + $0x8] sm:$0xff]
    %v1641 = vld [vmem:[%s1638 + $0x10] sm:$0xff]
    %v1642 = vld [vmem:[%s1638 + $0x18] sm:$0xff]
    %v1643 = vld [vmem:[%s1638 + $0x20] sm:$0xff]
    %v1644 = vld [vmem:[%s1638 + $0x28] sm:$0xff]
    %v1645 = vld [vmem:[%s1638 + $0x30] sm:$0xff]
    %v1646 = vld [vmem:[%s1638 + $0x38] sm:$0xff]
    %v1647 = vld [vmem:[%s1638 + $0x40] sm:$0xff]
    %v1648 = vld [vmem:[%s1638 + $0x48] sm:$0xff]
    %v1649 = vld [vmem:[%s1638 + $0x50] sm:$0xff]
    %v1650 = vld [vmem:[%s1638 + $0x58] sm:$0xff]
    %v1651 = vld [vmem:[%s1638 + $0x60] sm:$0xff]
    %v1652 = vld [vmem:[%s1638 + $0x68] sm:$0xff]
    %v1653 = vld [vmem:[%s1638 + $0x70] sm:$0xff]
    %v1654 = vld [vmem:[%s1638 + $0x78] sm:$0xff]
    %v1655 = vld [vmem:[%s1638 + $0x80] sm:$0xff]
    %v1656 = vld [vmem:[%s1638 + $0x88] sm:$0xff]
    %v1657 = vld [vmem:[%s1638 + $0x90] sm:$0xff]
    %v1658 = vld [vmem:[%s1638 + $0x98] sm:$0xff]
    %v1659 = vld [vmem:[%s1638 + $0xa0] sm:$0xff]
    %v1660 = vld [vmem:[%s1638 + $0xa8] sm:$0xff]
    %v1661 = vld [vmem:[%s1638 + $0xb0] sm:$0xff]
    %v1662 = vld [vmem:[%s1638 + $0xb8] sm:$0xff]
    %v1663 = vld [vmem:[%s1638 + $0xc0] sm:$0xff]
    %v1664 = vld [vmem:[%s1638 + $0xc8] sm:$0xff]
    %v1665 = vld [vmem:[%s1638 + $0xd0] sm:$0xff]
    %v1666 = vld [vmem:[%s1638 + $0xd8] sm:$0xff]
    %v1667 = vld [vmem:[%s1638 + $0xe0] sm:$0xff]
    %v1668 = vld [vmem:[%s1638 + $0xe8] sm:$0xff]
    %v1669 = vld [vmem:[%s1638 + $0xf0] sm:$0xff]
    %v1670 = vld [vmem:[%s1638 + $0xf8] sm:$0xff]
    %v1671 = vld [vmem:[%s1638 + $0x100] sm:$0xff]
    %v1672 = vld [vmem:[%s1638 + $0x108] sm:$0xff]
    %v1673 = vld [vmem:[%s1638 + $0x110] sm:$0xff]
    %v1674 = vld [vmem:[%s1638 + $0x118] sm:$0xff]
    %v1675 = vld [vmem:[%s1638 + $0x120] sm:$0xff]
    %v1676 = vld [vmem:[%s1638 + $0x128] sm:$0xff]
    %v1677 = vld [vmem:[%s1638 + $0x130] sm:$0xff]
    %v1678 = vld [vmem:[%s1638 + $0x138] sm:$0xff]
    %v1679 = vld [vmem:[%s1638 + $0x140] sm:$0xff]
    %v1680 = vld [vmem:[%s1638 + $0x148] sm:$0xff]
    %v1681 = vld [vmem:[%s1638 + $0x150] sm:$0xff]
    %v1682 = vld [vmem:[%s1638 + $0x158] sm:$0xff]
    %v1683 = vld [vmem:[%s1638 + $0x160] sm:$0xff]
    %v1684 = vld [vmem:[%s1638 + $0x168] sm:$0xff]
    %v1685 = vld [vmem:[%s1638 + $0x170] sm:$0xff]
    %v1686 = vld [vmem:[%s1638 + $0x178] sm:$0xff]
    %v1687 = vld [vmem:[%s1638 + $0x180] sm:$0xff]
    %v1688 = vld [vmem:[%s1638 + $0x188] sm:$0xff]
    %v1689 = vld [vmem:[%s1638 + $0x190] sm:$0xff]
    %v1690 = vld [vmem:[%s1638 + $0x198] sm:$0xff]
    %v1691 = vld [vmem:[%s1638 + $0x1a0] sm:$0xff]
    %v1692 = vld [vmem:[%s1638 + $0x1a8] sm:$0xff]
    %v1693 = vld [vmem:[%s1638 + $0x1b0] sm:$0xff]
    %v1694 = vld [vmem:[%s1638 + $0x1b8] sm:$0xff]
    %v1695 = vld [vmem:[%s1638 + $0x1c0] sm:$0xff]
    %v1696 = vld [vmem:[%s1638 + $0x1c8] sm:$0xff]
    %v1697 = vld [vmem:[%s1638 + $0x1d0] sm:$0xff]
    %v1698 = vld [vmem:[%s1638 + $0x1d8] sm:$0xff]
    %v1699 = vld [vmem:[%s1638 + $0x1e0] sm:$0xff]
    %v1700 = vld [vmem:[%s1638 + $0x1e8] sm:$0xff]
    %v1701 = vld [vmem:[%s1638 + $0x1f0] sm:$0xff]
    %v1702 = vld [vmem:[%s1638 + $0x1f8] sm:$0xff]
    %v1703 = vld [vmem:[%s1638 + $0x200] sm:$0xff]
    %v1704 = vld [vmem:[%s1638 + $0x208] sm:$0xff]
    %v1705 = vld [vmem:[%s1638 + $0x210] sm:$0xff]
    %v1706 = vld [vmem:[%s1638 + $0x218] sm:$0xff]
    %v1707 = vld [vmem:[%s1638 + $0x220] sm:$0xff]
    %v1708 = vld [vmem:[%s1638 + $0x228] sm:$0xff]
    %v1709 = vld [vmem:[%s1638 + $0x230] sm:$0xff]
    %v1710 = vld [vmem:[%s1638 + $0x238] sm:$0xff]
    %v1711 = vld [vmem:[%s1638 + $0x240] sm:$0xff]
    %v1712 = vld [vmem:[%s1638 + $0x248] sm:$0xff]
    %v1713 = vld [vmem:[%s1638 + $0x250] sm:$0xff]
    %v1714 = vld [vmem:[%s1638 + $0x258] sm:$0xff]
    %v1715 = vld [vmem:[%s1638 + $0x260] sm:$0xff]
    %v1716 = vld [vmem:[%s1638 + $0x268] sm:$0xff]
    %v1717 = vld [vmem:[%s1638 + $0x270] sm:$0xff]
    %v1718 = vld [vmem:[%s1638 + $0x278] sm:$0xff]
    %v1719 = vld [vmem:[%s1638 + $0x280] sm:$0xff]
    %v1720 = vld [vmem:[%s1638 + $0x288] sm:$0xff]
    %v1721 = vld [vmem:[%s1638 + $0x290] sm:$0xff]
    %v1722 = vld [vmem:[%s1638 + $0x298] sm:$0xff]
    %v1723 = vld [vmem:[%s1638 + $0x2a0] sm:$0xff]
    %v1724 = vld [vmem:[%s1638 + $0x2a8] sm:$0xff]
    %v1725 = vld [vmem:[%s1638 + $0x2b0] sm:$0xff]
    %v1726 = vld [vmem:[%s1638 + $0x2b8] sm:$0xff]
    %v1727 = vld [vmem:[%s1638 + $0x2c0] sm:$0xff]
    %v1728 = vld [vmem:[%s1638 + $0x2c8] sm:$0xff]
    %v1729 = vld [vmem:[%s1638 + $0x2d0] sm:$0xff]
    %v1730 = vld [vmem:[%s1638 + $0x2d8] sm:$0xff]
    %v1731 = vld [vmem:[%s1638 + $0x2e0] sm:$0xff]
    %v1732 = vld [vmem:[%s1638 + $0x2e8] sm:$0xff]
    %v1733 = vld [vmem:[%s1638 + $0x2f0] sm:$0xff]
    %v1734 = vld [vmem:[%s1638 + $0x2f8] sm:$0xff]
    %v1735 = vld [vmem:[%s1638 + $0x300] sm:$0xff]
    %v1736 = vld [vmem:[%s1638 + $0x308] sm:$0xff]
    %v1737 = vld [vmem:[%s1638 + $0x310] sm:$0xff]
    %v1738 = vld [vmem:[%s1638 + $0x318] sm:$0xff]
    %v1739 = vld [vmem:[%s1638 + $0x320] sm:$0xff]
    %v1740 = vld [vmem:[%s1638 + $0x328] sm:$0xff]
    %v1741 = vld [vmem:[%s1638 + $0x330] sm:$0xff]
    %v1742 = vld [vmem:[%s1638 + $0x338] sm:$0xff]
    %v1743 = vld [vmem:[%s1638 + $0x340] sm:$0xff]
    %v1744 = vld [vmem:[%s1638 + $0x348] sm:$0xff]
    %v1745 = vld [vmem:[%s1638 + $0x350] sm:$0xff]
    %v1746 = vld [vmem:[%s1638 + $0x358] sm:$0xff]
    %v1747 = vld [vmem:[%s1638 + $0x360] sm:$0xff]
    %v1748 = vld [vmem:[%s1638 + $0x368] sm:$0xff]
    %v1749 = vld [vmem:[%s1638 + $0x370] sm:$0xff]
    %v1750 = vld [vmem:[%s1638 + $0x378] sm:$0xff]
    %v1751 = vld [vmem:[%s1638 + $0x380] sm:$0xff]
    %v1752 = vld [vmem:[%s1638 + $0x388] sm:$0xff]
    %v1753 = vld [vmem:[%s1638 + $0x390] sm:$0xff]
    %v1754 = vld [vmem:[%s1638 + $0x398] sm:$0xff]
    %v1755 = vld [vmem:[%s1638 + $0x3a0] sm:$0xff]
    %v1756 = vld [vmem:[%s1638 + $0x3a8] sm:$0xff]
    %v1757 = vld [vmem:[%s1638 + $0x3b0] sm:$0xff]
    %v1758 = vld [vmem:[%s1638 + $0x3b8] sm:$0xff]
    %v1759 = vld [vmem:[%s1638 + $0x3c0] sm:$0xff]
    %v1760 = vld [vmem:[%s1638 + $0x3c8] sm:$0xff]
    %v1761 = vld [vmem:[%s1638 + $0x3d0] sm:$0xff]
    %v1762 = vld [vmem:[%s1638 + $0x3d8] sm:$0xff]
    %v1763 = vld [vmem:[%s1638 + $0x3e0] sm:$0xff]
    %v1764 = vld [vmem:[%s1638 + $0x3e8] sm:$0xff]
    %v1765 = vld [vmem:[%s1638 + $0x3f0] sm:$0xff]
    %v1766 = vld [vmem:[%s1638 + $0x3f8] sm:$0xff]
    %v1767 = vld [vmem:[%s1638 + $0x400] sm:$0xff]
    %v1768 = vld [vmem:[%s1638 + $0x408] sm:$0xff]
    %v1769 = vld [vmem:[%s1638 + $0x410] sm:$0xff]
    %v1770 = vld [vmem:[%s1638 + $0x418] sm:$0xff]
    %v1771 = vld [vmem:[%s1638 + $0x420] sm:$0xff]
    %v1772 = vld [vmem:[%s1638 + $0x428] sm:$0xff]
    %v1773 = vld [vmem:[%s1638 + $0x430] sm:$0xff]
    %v1774 = vld [vmem:[%s1638 + $0x438] sm:$0xff]
    %v1775 = vld [vmem:[%s1638 + $0x440] sm:$0xff]
    %v1776 = vld [vmem:[%s1638 + $0x448] sm:$0xff]
    %v1777 = vld [vmem:[%s1638 + $0x450] sm:$0xff]
    %v1778 = vld [vmem:[%s1638 + $0x458] sm:$0xff]
    %v1779 = vld [vmem:[%s1638 + $0x460] sm:$0xff]
    %v1780 = vld [vmem:[%s1638 + $0x468] sm:$0xff]
    %v1781 = vld [vmem:[%s1638 + $0x470] sm:$0xff]
    %v1782 = vld [vmem:[%s1638 + $0x478] sm:$0xff]
    %v1783 = vld [vmem:[%s1638 + $0x480] sm:$0xff]
    %v1784 = vld [vmem:[%s1638 + $0x488] sm:$0xff]
    %v1785 = vld [vmem:[%s1638 + $0x490] sm:$0xff]
    %v1786 = vld [vmem:[%s1638 + $0x498] sm:$0xff]
    %v1787 = vld [vmem:[%s1638 + $0x4a0] sm:$0xff]
    %v1788 = vld [vmem:[%s1638 + $0x4a8] sm:$0xff]
    %v1789 = vld [vmem:[%s1638 + $0x4b0] sm:$0xff]
    %v1790 = vld [vmem:[%s1638 + $0x4b8] sm:$0xff]
    %v1791 = vld [vmem:[%s1638 + $0x4c0] sm:$0xff]
    %v1792 = vld [vmem:[%s1638 + $0x4c8] sm:$0xff]
    %v1793 = vld [vmem:[%s1638 + $0x4d0] sm:$0xff]
    %v1794 = vld [vmem:[%s1638 + $0x4d8] sm:$0xff]
    %v1795 = vld [vmem:[%s1638 + $0x4e0] sm:$0xff]
    %v1796 = vld [vmem:[%s1638 + $0x4e8] sm:$0xff]
    %v1797 = vld [vmem:[%s1638 + $0x4f0] sm:$0xff]
    %v1798 = vld [vmem:[%s1638 + $0x4f8] sm:$0xff]
    %v1799 = vld [vmem:[%s1638 + $0x500] sm:$0xff]
    %v1800 = vld [vmem:[%s1638 + $0x508] sm:$0xff]
    %v1801 = vld [vmem:[%s1638 + $0x510] sm:$0xff]
    %v1802 = vld [vmem:[%s1638 + $0x518] sm:$0xff]
    %v1803 = vld [vmem:[%s1638 + $0x520] sm:$0xff]
    %v1804 = vld [vmem:[%s1638 + $0x528] sm:$0xff]
    %v1805 = vld [vmem:[%s1638 + $0x530] sm:$0xff]
    %v1806 = vld [vmem:[%s1638 + $0x538] sm:$0xff]
    %v1807 = vld [vmem:[%s1638 + $0x540] sm:$0xff]
    %v1808 = vld [vmem:[%s1638 + $0x548] sm:$0xff]
    %v1809 = vld [vmem:[%s1638 + $0x550] sm:$0xff]
    %v1810 = vld [vmem:[%s1638 + $0x558] sm:$0xff]
    %v1811 = vld [vmem:[%s1638 + $0x560] sm:$0xff]
    %v1812 = vld [vmem:[%s1638 + $0x568] sm:$0xff]
    %v1813 = vld [vmem:[%s1638 + $0x570] sm:$0xff]
    %v1814 = vld [vmem:[%s1638 + $0x578] sm:$0xff]
    %v1815 = vld [vmem:[%s1638 + $0x580] sm:$0xff]
    %v1816 = vld [vmem:[%s1638 + $0x588] sm:$0xff]
    %v1817 = vld [vmem:[%s1638 + $0x590] sm:$0xff]
    %v1818 = vld [vmem:[%s1638 + $0x598] sm:$0xff]
    %v1819 = vld [vmem:[%s1638 + $0x5a0] sm:$0xff]
    %v1820 = vld [vmem:[%s1638 + $0x5a8] sm:$0xff]
    %v1821 = vld [vmem:[%s1638 + $0x5b0] sm:$0xff]
    %v1822 = vld [vmem:[%s1638 + $0x5b8] sm:$0xff]
    %v1823 = vld [vmem:[%s1638 + $0x5c0] sm:$0xff]
    %v1824 = vld [vmem:[%s1638 + $0x5c8] sm:$0xff]
    %v1825 = vld [vmem:[%s1638 + $0x5d0] sm:$0xff]
    %v1826 = vld [vmem:[%s1638 + $0x5d8] sm:$0xff]
    %v1827 = vld [vmem:[%s1638 + $0x5e0] sm:$0xff]
    %v1828 = vld [vmem:[%s1638 + $0x5e8] sm:$0xff]
    %v1829 = vld [vmem:[%s1638 + $0x5f0] sm:$0xff]
    %v1830 = vld [vmem:[%s1638 + $0x5f8] sm:$0xff]
    %s1831 = scalar_lea.vmem [#allocation15], 2
    %v1832 = vld [vmem:[%s1831] sm:$0x3]
    %v1834 = vlaneseq
    %v1835 = vshrl.u32 %v1834, 7
    %v1836 = vsub.s32 0, %v1835
    %v1837 = vrot.slane %v1832, %v1836
    %v1838 = vlaneseq
    %v1839 = vshrl.u32 %v1838, 7
    %v1840 = vsub.s32 1, %v1839
    %v1841 = vrot.slane %v1832, %v1840
    %1844 = vmatprep.subr.mxu0 %v1640
    %1845 = vmatpush1.msra.mxu0 %v1639
    %1846 = vmatprep.subr.mxu0 %v1642
    %1847 = vmatpush1.msra.mxu0 %v1641
    %1848 = vmatprep.subr.mxu0 %v1644
    %1849 = vmatpush1.msra.mxu0 %v1643
    %1850 = vmatprep.subr.mxu0 %v1646
    %1851 = vmatpush1.msra.mxu0 %v1645
    %1852 = vmatprep.subr.mxu0 %v1648
    %1853 = vmatpush1.msra.mxu0 %v1647
    %1854 = vmatprep.subr.mxu0 %v1650
    %1855 = vmatpush1.msra.mxu0 %v1649
    %1856 = vmatprep.subr.mxu0 %v1652
    %1857 = vmatpush1.msra.mxu0 %v1651
    %1858 = vmatprep.subr.mxu0 %v1654
    %1859 = vmatpush1.msra.mxu0 %v1653
    %1860 = vmatprep.subr.mxu0 %v1656
    %1861 = vmatpush1.msra.mxu0 %v1655
    %1862 = vmatprep.subr.mxu0 %v1658
    %1863 = vmatpush1.msra.mxu0 %v1657
    %1864 = vmatprep.subr.mxu0 %v1660
    %1865 = vmatpush1.msra.mxu0 %v1659
    %1866 = vmatprep.subr.mxu0 %v1662
    %1867 = vmatpush1.msra.mxu0 %v1661
    %1868 = vmatprep.subr.mxu0 %v1664
    %1869 = vmatpush1.msra.mxu0 %v1663
    %1870 = vmatprep.subr.mxu0 %v1666
    %1871 = vmatpush1.msra.mxu0 %v1665
    %1872 = vmatprep.subr.mxu0 %v1668
    %1873 = vmatpush1.msra.mxu0 %v1667
    %1874 = vmatprep.subr.mxu0 %v1670
    %1875 = vmatpush1.msra.mxu0 %v1669
    %1876 = vmatprep.subr.mxu0 %v1672
    %1877 = vmatpush1.msra.mxu0 %v1671
    %1878 = vmatprep.subr.mxu0 %v1674
    %1879 = vmatpush1.msra.mxu0 %v1673
    %1880 = vmatprep.subr.mxu0 %v1676
    %1881 = vmatpush1.msra.mxu0 %v1675
    %1882 = vmatprep.subr.mxu0 %v1678
    %1883 = vmatpush1.msra.mxu0 %v1677
    %1884 = vmatprep.subr.mxu0 %v1680
    %1885 = vmatpush1.msra.mxu0 %v1679
    %1886 = vmatprep.subr.mxu0 %v1682
    %1887 = vmatpush1.msra.mxu0 %v1681
    %1888 = vmatprep.subr.mxu0 %v1684
    %1889 = vmatpush1.msra.mxu0 %v1683
    %1890 = vmatprep.subr.mxu0 %v1686
    %1891 = vmatpush1.msra.mxu0 %v1685
    %1892 = vmatprep.subr.mxu0 %v1688
    %1893 = vmatpush1.msra.mxu0 %v1687
    %1894 = vmatprep.subr.mxu0 %v1690
    %1895 = vmatpush1.msra.mxu0 %v1689
    %1896 = vmatprep.subr.mxu0 %v1692
    %1897 = vmatpush1.msra.mxu0 %v1691
    %1898 = vmatprep.subr.mxu0 %v1694
    %1899 = vmatpush1.msra.mxu0 %v1693
    %1900 = vmatprep.subr.mxu0 %v1696
    %1901 = vmatpush1.msra.mxu0 %v1695
    %1902 = vmatprep.subr.mxu0 %v1698
    %1903 = vmatpush1.msra.mxu0 %v1697
    %1904 = vmatprep.subr.mxu0 %v1700
    %1905 = vmatpush1.msra.mxu0 %v1699
    %1906 = vmatprep.subr.mxu0 %v1702
    %1907 = vmatpush1.msra.mxu0 %v1701
    %1908 = vmatprep.mubr.f32.mxu0 %v1375
    %1909 = vmatmul.mubr.f32.gmra.mrb[0].mxu0 %v1323
    %v1910 = vpop.f32.mrb[0].mxu0
    %v1911 = vadd.f32 %v1837, %v1910
    %v1912 = vpop.f32.mrb[0].mxu0
    %v1913 = vadd.f32 %v1841, %v1912
    %1914 = vmatprep.mubr.f32.mxu0 %v1596
    %1915 = vmatmul.mubr.f32.gmra.mrb[0].mxu0 %v1588
    %v1916 = vpop.f32.mrb[0].mxu0
    %v1917 = vadd.f32 %v1837, %v1916
    %v1918 = vpop.f32.mrb[0].mxu0
    %v1919 = vadd.f32 %v1841, %v1918
    %1920 = vmatprep.mubr.f32.mxu0 %v1592
    %1921 = vmatmul.mubr.f32.gmra.mrb[0].mxu0 %v1584
    %v1922 = vpop.f32.mrb[0].mxu0
    %v1923 = vadd.f32 %v1837, %v1922
    %v1924 = vpop.f32.mrb[0].mxu0
    %v1925 = vadd.f32 %v1841, %v1924
    %1926 = vdwg.mxu0
    %1927 = vmatprep.subr.mxu0 %v1704
    %1928 = vmatpush1.msra.mxu0 %v1703
    %1929 = vmatprep.subr.mxu0 %v1706
    %1930 = vmatpush1.msra.mxu0 %v1705
    %1931 = vmatprep.subr.mxu0 %v1708
    %1932 = vmatpush1.msra.mxu0 %v1707
    %1933 = vmatprep.subr.mxu0 %v1710
    %1934 = vmatpush1.msra.mxu0 %v1709
    %1935 = vmatprep.subr.mxu0 %v1712
    %1936 = vmatpush1.msra.mxu0 %v1711
    %1937 = vmatprep.subr.mxu0 %v1714
    %1938 = vmatpush1.msra.mxu0 %v1713
    %1939 = vmatprep.subr.mxu0 %v1716
    %1940 = vmatpush1.msra.mxu0 %v1715
    %1941 = vmatprep.subr.mxu0 %v1718
    %1942 = vmatpush1.msra.mxu0 %v1717
    %1943 = vmatprep.subr.mxu0 %v1720
    %1944 = vmatpush1.msra.mxu0 %v1719
    %1945 = vmatprep.subr.mxu0 %v1722
    %1946 = vmatpush1.msra.mxu0 %v1721
    %1947 = vmatprep.subr.mxu0 %v1724
    %1948 = vmatpush1.msra.mxu0 %v1723
    %1949 = vmatprep.subr.mxu0 %v1726
    %1950 = vmatpush1.msra.mxu0 %v1725
    %1951 = vmatprep.subr.mxu0 %v1728
    %1952 = vmatpush1.msra.mxu0 %v1727
    %1953 = vmatprep.subr.mxu0 %v1730
    %1954 = vmatpush1.msra.mxu0 %v1729
    %1955 = vmatprep.subr.mxu0 %v1732
    %1956 = vmatpush1.msra.mxu0 %v1731
    %1957 = vmatprep.subr.mxu0 %v1734
    %1958 = vmatpush1.msra.mxu0 %v1733
    %1959 = vmatprep.subr.mxu0 %v1736
    %1960 = vmatpush1.msra.mxu0 %v1735
    %1961 = vmatprep.subr.mxu0 %v1738
    %1962 = vmatpush1.msra.mxu0 %v1737
    %1963 = vmatprep.subr.mxu0 %v1740
    %1964 = vmatpush1.msra.mxu0 %v1739
    %1965 = vmatprep.subr.mxu0 %v1742
    %1966 = vmatpush1.msra.mxu0 %v1741
    %1967 = vmatprep.subr.mxu0 %v1744
    %1968 = vmatpush1.msra.mxu0 %v1743
    %1969 = vmatprep.subr.mxu0 %v1746
    %1970 = vmatpush1.msra.mxu0 %v1745
    %1971 = vmatprep.subr.mxu0 %v1748
    %1972 = vmatpush1.msra.mxu0 %v1747
    %1973 = vmatprep.subr.mxu0 %v1750
    %1974 = vmatpush1.msra.mxu0 %v1749
    %1975 = vmatprep.subr.mxu0 %v1752
    %1976 = vmatpush1.msra.mxu0 %v1751
    %1977 = vmatprep.subr.mxu0 %v1754
    %1978 = vmatpush1.msra.mxu0 %v1753
    %1979 = vmatprep.subr.mxu0 %v1756
    %1980 = vmatpush1.msra.mxu0 %v1755
    %1981 = vmatprep.subr.mxu0 %v1758
    %1982 = vmatpush1.msra.mxu0 %v1757
    %1983 = vmatprep.subr.mxu0 %v1760
    %1984 = vmatpush1.msra.mxu0 %v1759
    %1985 = vmatprep.subr.mxu0 %v1762
    %1986 = vmatpush1.msra.mxu0 %v1761
    %1987 = vmatprep.subr.mxu0 %v1764
    %1988 = vmatpush1.msra.mxu0 %v1763
    %1989 = vmatprep.subr.mxu0 %v1766
    %1990 = vmatpush1.msra.mxu0 %v1765
    %1991 = vmatprep.mubr.f32.mxu0 %v1607
    %1992 = vmatmul.mubr.f32.gmra.mrb[0].mxu0 %v1578
    %v1993 = vpop.f32.mrb[0].mxu0
    %v1994 = vadd.f32 %v1911, %v1993
    %v1995 = vpop.f32.mrb[0].mxu0
    %v1996 = vadd.f32 %v1913, %v1995
    %1997 = vmatprep.mubr.f32.mxu0 %v1615
    %1998 = vmatmul.mubr.f32.gmra.mrb[0].mxu0 %v1604
    %v1999 = vpop.f32.mrb[0].mxu0
    %v2000 = vadd.f32 %v1917, %v1999
    %v2001 = vpop.f32.mrb[0].mxu0
    %v2002 = vadd.f32 %v1919, %v2001
    %2003 = vmatprep.mubr.f32.mxu0 %v1611
    %2004 = vmatmul.mubr.f32.gmra.mrb[0].mxu0 %v1600
    %v2005 = vpop.f32.mrb[0].mxu0
    %v2006 = vadd.f32 %v1923, %v2005
    %v2007 = vpop.f32.mrb[0].mxu0
    %v2008 = vadd.f32 %v1925, %v2007
    %2009 = vdwg.mxu0
    %2010 = vmatprep.subr.mxu0 %v1768
    %2011 = vmatpush1.msra.mxu0 %v1767
    %2012 = vmatprep.subr.mxu0 %v1770
    %2013 = vmatpush1.msra.mxu0 %v1769
    %2014 = vmatprep.subr.mxu0 %v1772
    %2015 = vmatpush1.msra.mxu0 %v1771
    %2016 = vmatprep.subr.mxu0 %v1774
    %2017 = vmatpush1.msra.mxu0 %v1773
    %2018 = vmatprep.subr.mxu0 %v1776
    %2019 = vmatpush1.msra.mxu0 %v1775
    %2020 = vmatprep.subr.mxu0 %v1778
    %2021 = vmatpush1.msra.mxu0 %v1777
    %2022 = vmatprep.subr.mxu0 %v1780
    %2023 = vmatpush1.msra.mxu0 %v1779
    %2024 = vmatprep.subr.mxu0 %v1782
    %2025 = vmatpush1.msra.mxu0 %v1781
    %2026 = vmatprep.subr.mxu0 %v1784
    %2027 = vmatpush1.msra.mxu0 %v1783
    %2028 = vmatprep.subr.mxu0 %v1786
    %2029 = vmatpush1.msra.mxu0 %v1785
    %2030 = vmatprep.subr.mxu0 %v1788
    %2031 = vmatpush1.msra.mxu0 %v1787
    %2032 = vmatprep.subr.mxu0 %v1790
    %2033 = vmatpush1.msra.mxu0 %v1789
    %2034 = vmatprep.subr.mxu0 %v1792
    %2035 = vmatpush1.msra.mxu0 %v1791
    %2036 = vmatprep.subr.mxu0 %v1794
    %2037 = vmatpush1.msra.mxu0 %v1793
    %2038 = vmatprep.subr.mxu0 %v1796
    %2039 = vmatpush1.msra.mxu0 %v1795
    %2040 = vmatprep.subr.mxu0 %v1798
    %2041 = vmatpush1.msra.mxu0 %v1797
    %2042 = vmatprep.subr.mxu0 %v1800
    %2043 = vmatpush1.msra.mxu0 %v1799
    %2044 = vmatprep.subr.mxu0 %v1802
    %2045 = vmatpush1.msra.mxu0 %v1801
    %2046 = vmatprep.subr.mxu0 %v1804
    %2047 = vmatpush1.msra.mxu0 %v1803
    %2048 = vmatprep.subr.mxu0 %v1806
    %2049 = vmatpush1.msra.mxu0 %v1805
    %2050 = vmatprep.subr.mxu0 %v1808
    %2051 = vmatpush1.msra.mxu0 %v1807
    %2052 = vmatprep.subr.mxu0 %v1810
    %2053 = vmatpush1.msra.mxu0 %v1809
    %2054 = vmatprep.subr.mxu0 %v1812
    %2055 = vmatpush1.msra.mxu0 %v1811
    %2056 = vmatprep.subr.mxu0 %v1814
    %2057 = vmatpush1.msra.mxu0 %v1813
    %2058 = vmatprep.subr.mxu0 %v1816
    %2059 = vmatpush1.msra.mxu0 %v1815
    %2060 = vmatprep.subr.mxu0 %v1818
    %2061 = vmatpush1.msra.mxu0 %v1817
    %2062 = vmatprep.subr.mxu0 %v1820
    %2063 = vmatpush1.msra.mxu0 %v1819
    %2064 = vmatprep.subr.mxu0 %v1822
    %2065 = vmatpush1.msra.mxu0 %v1821
    %2066 = vmatprep.subr.mxu0 %v1824
    %2067 = vmatpush1.msra.mxu0 %v1823
    %2068 = vmatprep.subr.mxu0 %v1826
    %2069 = vmatpush1.msra.mxu0 %v1825
    %2070 = vmatprep.subr.mxu0 %v1828
    %2071 = vmatpush1.msra.mxu0 %v1827
    %2072 = vmatprep.subr.mxu0 %v1830
    %2073 = vmatpush1.msra.mxu0 %v1829
    %2074 = vmatprep.mubr.f32.mxu0 %v1629
    %2075 = vmatmul.mubr.f32.gmra.mrb[0].mxu0 %v1618
    %v2076 = vpop.f32.mrb[0].mxu0
    %v2077 = vadd.f32 %v1994, %v2076
    %v2078 = vpop.f32.mrb[0].mxu0
    %v2079 = vadd.f32 %v1996, %v2078
    %2080 = vmatprep.mubr.f32.mxu0 %v1637
    %2081 = vmatmul.mubr.f32.gmra.mrb[0].mxu0 %v1626
    %v2082 = vpop.f32.mrb[0].mxu0
    %v2083 = vadd.f32 %v2000, %v2082
    %v2084 = vpop.f32.mrb[0].mxu0
    %v2085 = vadd.f32 %v2002, %v2084
    %2086 = vmatprep.mubr.f32.mxu0 %v1633
    %2087 = vmatmul.mubr.f32.gmra.mrb[0].mxu0 %v1622
    %v2088 = vpop.f32.mrb[0].mxu0
    %v2089 = vadd.f32 %v2006, %v2088
    %v2090 = vpop.f32.mrb[0].mxu0
    %v2091 = vadd.f32 %v2008, %v2090
    %2092 = vdwg.mxu0
    %v2093 = vtanh.pop %v2077
    %v2094 = vtanh.pop %v2083
    %v2095 = vtanh.pop %v2089
    %v2096 = vxor.u32 %v2079, 2147483648
    %v2097 = vxor.u32 %v2085, 2147483648
    %v2098 = vxor.u32 %v2091, 2147483648
    %v2099 = vmul.f32 %v2096, 1.442695
    %v2100 = vpow.pop %v2099
    %v2101 = vmul.f32 %v2097, 1.442695
    %v2102 = vpow.pop %v2101
    %v2103 = vmul.f32 %v2098, 1.442695
    %v2104 = vpow.pop %v2103
    %v2105 = vadd.f32 %v2100, 1.0
    %v2106 = vadd.f32 %v2102, 1.0
    %v2107 = vadd.f32 %v2104, 1.0
    %v2108 = vrcp.pop %v2105
    %v2109 = vmul.f32 1.0, %v2108
    %v2110 = vrcp.pop %v2106
    %v2111 = vmul.f32 1.0, %v2110
    %v2112 = vrcp.pop %v2107
    %v2113 = vmul.f32 1.0, %v2112
    %v2114 = vmul.f32 %v2093, %v2109
    %v2115 = vmul.f32 %v2094, %v2111
    %v2116 = vmul.f32 %v2095, %v2113
    %s2117 = scalar_lea.vmem [#allocation16], 256
    %v2118 = vld [vmem:[%s2117] sm:$0xff]
    %v2119 = vld [vmem:[%s2117 + $0x8] sm:$0xff]
    %v2120 = vld [vmem:[%s2117 + $0x10] sm:$0xff]
    %v2121 = vld [vmem:[%s2117 + $0x18] sm:$0xff]
    %v2122 = vld [vmem:[%s2117 + $0x20] sm:$0xff]
    %v2123 = vld [vmem:[%s2117 + $0x28] sm:$0xff]
    %v2124 = vld [vmem:[%s2117 + $0x30] sm:$0xff]
    %v2125 = vld [vmem:[%s2117 + $0x38] sm:$0xff]
    %v2126 = vld [vmem:[%s2117 + $0x40] sm:$0xff]
    %v2127 = vld [vmem:[%s2117 + $0x48] sm:$0xff]
    %v2128 = vld [vmem:[%s2117 + $0x50] sm:$0xff]
    %v2129 = vld [vmem:[%s2117 + $0x58] sm:$0xff]
    %v2130 = vld [vmem:[%s2117 + $0x60] sm:$0xff]
    %v2131 = vld [vmem:[%s2117 + $0x68] sm:$0xff]
    %v2132 = vld [vmem:[%s2117 + $0x70] sm:$0xff]
    %v2133 = vld [vmem:[%s2117 + $0x78] sm:$0xff]
    %v2134 = vld [vmem:[%s2117 + $0x80] sm:$0xff]
    %v2135 = vld [vmem:[%s2117 + $0x88] sm:$0xff]
    %v2136 = vld [vmem:[%s2117 + $0x90] sm:$0xff]
    %v2137 = vld [vmem:[%s2117 + $0x98] sm:$0xff]
    %v2138 = vld [vmem:[%s2117 + $0xa0] sm:$0xff]
    %v2139 = vld [vmem:[%s2117 + $0xa8] sm:$0xff]
    %v2140 = vld [vmem:[%s2117 + $0xb0] sm:$0xff]
    %v2141 = vld [vmem:[%s2117 + $0xb8] sm:$0xff]
    %v2142 = vld [vmem:[%s2117 + $0xc0] sm:$0xff]
    %v2143 = vld [vmem:[%s2117 + $0xc8] sm:$0xff]
    %v2144 = vld [vmem:[%s2117 + $0xd0] sm:$0xff]
    %v2145 = vld [vmem:[%s2117 + $0xd8] sm:$0xff]
    %v2146 = vld [vmem:[%s2117 + $0xe0] sm:$0xff]
    %v2147 = vld [vmem:[%s2117 + $0xe8] sm:$0xff]
    %v2148 = vld [vmem:[%s2117 + $0xf0] sm:$0xff]
    %v2149 = vld [vmem:[%s2117 + $0xf8] sm:$0xff]
    %s2150 = scalar_lea.vmem [#allocation18], 2
    %v2151 = vld [vmem:[%s2150] sm:$0x3]
    %v2153 = vlaneseq
    %v2154 = vshrl.u32 %v2153, 7
    %v2155 = vsub.s32 0, %v2154
    %v2156 = vrot.slane %v2151, %v2155
    %v2157 = vlaneseq
    %v2158 = vshrl.u32 %v2157, 7
    %v2159 = vsub.s32 1, %v2158
    %v2160 = vrot.slane %v2151, %v2159
    %2163 = vmatprep.subr.mxu0 %v2119
    %2164 = vmatpush1.msra.mxu0 %v2118
    %2165 = vmatprep.subr.mxu0 %v2121
    %2166 = vmatpush1.msra.mxu0 %v2120
    %2167 = vmatprep.subr.mxu0 %v2123
    %2168 = vmatpush1.msra.mxu0 %v2122
    %2169 = vmatprep.subr.mxu0 %v2125
    %2170 = vmatpush1.msra.mxu0 %v2124
    %2171 = vmatprep.subr.mxu0 %v2127
    %2172 = vmatpush1.msra.mxu0 %v2126
    %2173 = vmatprep.subr.mxu0 %v2129
    %2174 = vmatpush1.msra.mxu0 %v2128
    %2175 = vmatprep.subr.mxu0 %v2131
    %2176 = vmatpush1.msra.mxu0 %v2130
    %2177 = vmatprep.subr.mxu0 %v2133
    %2178 = vmatpush1.msra.mxu0 %v2132
    %2179 = vmatprep.subr.mxu0 %v2135
    %2180 = vmatpush1.msra.mxu0 %v2134
    %2181 = vmatprep.subr.mxu0 %v2137
    %2182 = vmatpush1.msra.mxu0 %v2136
    %2183 = vmatprep.subr.mxu0 %v2139
    %2184 = vmatpush1.msra.mxu0 %v2138
    %2185 = vmatprep.subr.mxu0 %v2141
    %2186 = vmatpush1.msra.mxu0 %v2140
    %2187 = vmatprep.subr.mxu0 %v2143
    %2188 = vmatpush1.msra.mxu0 %v2142
    %2189 = vmatprep.subr.mxu0 %v2145
    %2190 = vmatpush1.msra.mxu0 %v2144
    %2191 = vmatprep.subr.mxu0 %v2147
    %2192 = vmatpush1.msra.mxu0 %v2146
    %2193 = vmatprep.subr.mxu0 %v2149
    %2194 = vmatpush1.msra.mxu0 %v2148
    %2195 = vmatprep.subr.mxu0 0.0
    %2196 = vmatpush1.msra.mxu0 0.0
    %2197 = vmatprep.subr.mxu0 0.0
    %2198 = vmatpush1.msra.mxu0 0.0
    %2199 = vmatprep.subr.mxu0 0.0
    %2200 = vmatpush1.msra.mxu0 0.0
    %2201 = vmatprep.subr.mxu0 0.0
    %2202 = vmatpush1.msra.mxu0 0.0
    %2203 = vmatprep.subr.mxu0 0.0
    %2204 = vmatpush1.msra.mxu0 0.0
    %2205 = vmatprep.subr.mxu0 0.0
    %2206 = vmatpush1.msra.mxu0 0.0
    %2207 = vmatprep.subr.mxu0 0.0
    %2208 = vmatpush1.msra.mxu0 0.0
    %2209 = vmatprep.subr.mxu0 0.0
    %2210 = vmatpush1.msra.mxu0 0.0
    %2211 = vmatprep.subr.mxu0 0.0
    %2212 = vmatpush1.msra.mxu0 0.0
    %2213 = vmatprep.subr.mxu0 0.0
    %2214 = vmatpush1.msra.mxu0 0.0
    %2215 = vmatprep.subr.mxu0 0.0
    %2216 = vmatpush1.msra.mxu0 0.0
    %2217 = vmatprep.subr.mxu0 0.0
    %2218 = vmatpush1.msra.mxu0 0.0
    %2219 = vmatprep.subr.mxu0 0.0
    %2220 = vmatpush1.msra.mxu0 0.0
    %2221 = vmatprep.subr.mxu0 0.0
    %2222 = vmatpush1.msra.mxu0 0.0
    %2223 = vmatprep.subr.mxu0 0.0
    %2224 = vmatpush1.msra.mxu0 0.0
    %2225 = vmatprep.subr.mxu0 0.0
    %2226 = vmatpush1.msra.mxu0 0.0
    %2227 = vmatprep.mubr.f32.mxu0 0.0
    %2228 = vmatmul.mubr.f32.gmra.mrb[0].mxu0 %v2114
    %v2229 = vpop.f32.mrb[0].mxu0
    %v2230 = vadd.f32 %v2156, %v2229
    %v2231 = vpop.f32.mrb[0].mxu0
    %v2232 = vadd.f32 %v2160, %v2231
    %2233 = vmatprep.mubr.f32.mxu0 0.0
    %2234 = vmatmul.mubr.f32.gmra.mrb[0].mxu0 %v2115
    %v2235 = vpop.f32.mrb[0].mxu0
    %v2236 = vadd.f32 %v2156, %v2235
    %v2237 = vpop.f32.mrb[0].mxu0
    %v2238 = vadd.f32 %v2160, %v2237
    %2239 = vmatprep.mubr.f32.mxu0 0.0
    %2240 = vmatmul.mubr.f32.gmra.mrb[0].mxu0 %v2116
    %v2241 = vpop.f32.mrb[0].mxu0
    %v2242 = vadd.f32 %v2156, %v2241
    %v2243 = vpop.f32.mrb[0].mxu0
    %v2244 = vadd.f32 %v2160, %v2243
    %2245 = vdwg.mxu0
    %v2248 = vrot.slane %v1307, 2
    %v2249 = vrot.slane %v1313, 2
    %v2250 = vsel %vm684, %v2248, %v2249
    %v2254 = vrot.slane %v1313, 4
    %v2255 = vrot.slane %v1319, 4
    %v2256 = vsel %vm655, %v2254, %v2255
    %v2259 = vsel %vm350, %v2249, %v2256
    %v2260 = vadd.f32 %v2230, %v2250
    %v2261 = vadd.f32 %v2236, %v2259
    %v2262 = vadd.f32 %v2242, %v2255
    %v2263 = vadd.f32 %v2232, %v1607
    %v2264 = vadd.f32 %v2238, %v1615
    %v2265 = vadd.f32 %v2244, %v1611
    %v2266 = vadd.f32 %v2263, %v2264
    %v2267 = vsel %vm655, %v2265, 0.0
    %v2268 = vadd.f32 %v2266, %v2267
    %v2269 = vrot.slane %v2268, 4
    %v2270 = vadd.f32 %v2268, %v2269
    %v2271 = vrot.slane %v2270, 2
    %v2272 = vadd.f32 %v2270, %v2271
    %v2273 = vrot.slane %v2272, 1
    %v2274 = vadd.f32 %v2272, %v2273
    %v2275 = vrcp.pop 20.0
    %v2276 = vmul.f32 %v2274, %v2275
    %v2277 = vsub.f32 %v2263, %v2276
    %v2278 = vsub.f32 %v2264, %v2276
    %v2279 = vsub.f32 %v2265, %v2276
    %v2280 = vmul.f32 %v2277, %v2277
    %v2281 = vmul.f32 %v2278, %v2278
    %v2282 = vmul.f32 %v2279, %v2279
    %v2283 = vadd.f32 %v2280, %v2281
    %v2284 = vsel %vm655, %v2282, 0.0
    %v2285 = vadd.f32 %v2283, %v2284
    %v2286 = vrot.slane %v2285, 4
    %v2287 = vadd.f32 %v2285, %v2286
    %v2288 = vrot.slane %v2287, 2
    %v2289 = vadd.f32 %v2287, %v2288
    %v2290 = vrot.slane %v2289, 1
    %v2291 = vadd.f32 %v2289, %v2290
    %v2292 = vmul.f32 %v2291, %v2275
    %v2293 = vadd.f32 %v2292, 1e-05
    %v2294 = vrsqrt.pop %v2293
    %v2295 = vmul.f32 %v2277, %v2294
    %v2296 = vmul.f32 %v2278, %v2294
    %v2297 = vmul.f32 %v2279, %v2294
    %s2298 = scalar_lea.vmem [#allocation7], 2
    %v2299 = vld [vmem:[%s2298] sm:$0x1]
    %v2301 = vlaneseq
    %v2302 = vshrl.u32 %v2301, 7
    %v2303 = vsub.s32 0, %v2302
    %v2304 = vrot.slane %v2299, %v2303
    %v2306 = vmul.f32 %v2295, %v2304
    %v2307 = vmul.f32 %v2296, %v2304
    %v2308 = vmul.f32 %v2297, %v2304
    %s2309 = scalar_lea.vmem [#allocation9], 2
    %v2310 = vld [vmem:[%s2309] sm:$0x1]
    %v2312 = vlaneseq
    %v2313 = vshrl.u32 %v2312, 7
    %v2314 = vsub.s32 0, %v2313
    %v2315 = vrot.slane %v2310, %v2314
    %v2317 = vadd.f32 %v2306, %v2315
    %v2318 = vadd.f32 %v2307, %v2315
    %v2319 = vadd.f32 %v2308, %v2315
    %2320 = vmatprep.subr.mxu0 0.0
    %2321 = vmatpush1.msra.mxu0 %v408
    %2322 = vmatprep.subr.mxu0 0.0
    %2323 = vmatpush1.msra.mxu0 %v409
    %2324 = vmatprep.subr.mxu0 0.0
    %2325 = vmatpush1.msra.mxu0 %v410
    %2326 = vmatprep.subr.mxu0 0.0
    %2327 = vmatpush1.msra.mxu0 %v411
    %2328 = vmatprep.subr.mxu0 0.0
    %2329 = vmatpush1.msra.mxu0 %v412
    %2330 = vmatprep.subr.mxu0 0.0
    %2331 = vmatpush1.msra.mxu0 %v413
    %2332 = vmatprep.subr.mxu0 0.0
    %2333 = vmatpush1.msra.mxu0 %v414
    %2334 = vmatprep.subr.mxu0 0.0
    %2335 = vmatpush1.msra.mxu0 %v415
    %2336 = vmatprep.subr.mxu0 0.0
    %2337 = vmatpush1.msra.mxu0 %v416
    %2338 = vmatprep.subr.mxu0 0.0
    %2339 = vmatpush1.msra.mxu0 %v417
    %2340 = vmatprep.subr.mxu0 0.0
    %2341 = vmatpush1.msra.mxu0 %v418
    %2342 = vmatprep.subr.mxu0 0.0
    %2343 = vmatpush1.msra.mxu0 %v419
    %2344 = vmatprep.subr.mxu0 0.0
    %2345 = vmatpush1.msra.mxu0 %v420
    %2346 = vmatprep.subr.mxu0 0.0
    %2347 = vmatpush1.msra.mxu0 %v421
    %2348 = vmatprep.subr.mxu0 0.0
    %2349 = vmatpush1.msra.mxu0 %v422
    %2350 = vmatprep.subr.mxu0 0.0
    %2351 = vmatpush1.msra.mxu0 %v423
    %2352 = vmatprep.subr.mxu0 0.0
    %2353 = vmatpush1.msra.mxu0 0.0
    %2354 = vmatprep.subr.mxu0 0.0
    %2355 = vmatpush1.msra.mxu0 0.0
    %2356 = vmatprep.subr.mxu0 0.0
    %2357 = vmatpush1.msra.mxu0 0.0
    %2358 = vmatprep.subr.mxu0 0.0
    %2359 = vmatpush1.msra.mxu0 0.0
    %2360 = vmatprep.subr.mxu0 0.0
    %2361 = vmatpush1.msra.mxu0 0.0
    %2362 = vmatprep.subr.mxu0 0.0
    %2363 = vmatpush1.msra.mxu0 0.0
    %2364 = vmatprep.subr.mxu0 0.0
    %2365 = vmatpush1.msra.mxu0 0.0
    %2366 = vmatprep.subr.mxu0 0.0
    %2367 = vmatpush1.msra.mxu0 0.0
    %2368 = vmatprep.subr.mxu0 0.0
    %2369 = vmatpush1.msra.mxu0 0.0
    %2370 = vmatprep.subr.mxu0 0.0
    %2371 = vmatpush1.msra.mxu0 0.0
    %2372 = vmatprep.subr.mxu0 0.0
    %2373 = vmatpush1.msra.mxu0 0.0
    %2374 = vmatprep.subr.mxu0 0.0
    %2375 = vmatpush1.msra.mxu0 0.0
    %2376 = vmatprep.subr.mxu0 0.0
    %2377 = vmatpush1.msra.mxu0 0.0
    %2378 = vmatprep.subr.mxu0 0.0
    %2379 = vmatpush1.msra.mxu0 0.0
    %2380 = vmatprep.subr.mxu0 0.0
    %2381 = vmatpush1.msra.mxu0 0.0
    %2382 = vmatprep.subr.mxu0 0.0
    %2383 = vmatpush1.msra.mxu0 0.0
    %2384 = vmatprep.mubr.f32.mxu0 0.0
    %2385 = vmatmul.mubr.f32.gmra.mrb[0].mxu0 %v2263
    %v2386 = vpop.f32.mrb[0].mxu0
    %v2387 = vadd.f32 0.0, %v2386
    %v2388 = vpop.f32.mrb[0].mxu0
    %2389 = vmatprep.mubr.f32.mxu0 0.0
    %2390 = vmatmul.mubr.f32.gmra.mrb[0].mxu0 %v2264
    %v2391 = vpop.f32.mrb[0].mxu0
    %v2392 = vadd.f32 0.0, %v2391
    %v2393 = vpop.f32.mrb[0].mxu0
    %2394 = vmatprep.mubr.f32.mxu0 0.0
    %2395 = vmatmul.mubr.f32.gmra.mrb[0].mxu0 %v2265
    %v2396 = vpop.f32.mrb[0].mxu0
    %v2397 = vadd.f32 0.0, %v2396
    %v2398 = vpop.f32.mrb[0].mxu0
    %2399 = vdwg.mxu0
    %v2400 = vmul.f32 %v2387, 0.125
    %v2401 = vmul.f32 %v2392, 0.125
    %v2402 = vmul.f32 %v2397, 0.125
    %v2403 = vsub.f32 %v2263, %v2400
    %v2404 = vsub.f32 %v2264, %v2401
    %v2405 = vsub.f32 %v2265, %v2402
    %v2406 = vmul.f32 %v2403, %v2403
    %v2407 = vmul.f32 %v2404, %v2404
    %v2408 = vmul.f32 %v2405, %v2405
    %2409 = vmatprep.subr.mxu0 0.0
    %2410 = vmatpush1.msra.mxu0 %v408
    %2411 = vmatprep.subr.mxu0 0.0
    %2412 = vmatpush1.msra.mxu0 %v409
    %2413 = vmatprep.subr.mxu0 0.0
    %2414 = vmatpush1.msra.mxu0 %v410
    %2415 = vmatprep.subr.mxu0 0.0
    %2416 = vmatpush1.msra.mxu0 %v411
    %2417 = vmatprep.subr.mxu0 0.0
    %2418 = vmatpush1.msra.mxu0 %v412
    %2419 = vmatprep.subr.mxu0 0.0
    %2420 = vmatpush1.msra.mxu0 %v413
    %2421 = vmatprep.subr.mxu0 0.0
    %2422 = vmatpush1.msra.mxu0 %v414
    %2423 = vmatprep.subr.mxu0 0.0
    %2424 = vmatpush1.msra.mxu0 %v415
    %2425 = vmatprep.subr.mxu0 0.0
    %2426 = vmatpush1.msra.mxu0 %v416
    %2427 = vmatprep.subr.mxu0 0.0
    %2428 = vmatpush1.msra.mxu0 %v417
    %2429 = vmatprep.subr.mxu0 0.0
    %2430 = vmatpush1.msra.mxu0 %v418
    %2431 = vmatprep.subr.mxu0 0.0
    %2432 = vmatpush1.msra.mxu0 %v419
    %2433 = vmatprep.subr.mxu0 0.0
    %2434 = vmatpush1.msra.mxu0 %v420
    %2435 = vmatprep.subr.mxu0 0.0
    %2436 = vmatpush1.msra.mxu0 %v421
    %2437 = vmatprep.subr.mxu0 0.0
    %2438 = vmatpush1.msra.mxu0 %v422
    %2439 = vmatprep.subr.mxu0 0.0
    %2440 = vmatpush1.msra.mxu0 %v423
    %2441 = vmatprep.subr.mxu0 0.0
    %2442 = vmatpush1.msra.mxu0 0.0
    %2443 = vmatprep.subr.mxu0 0.0
    %2444 = vmatpush1.msra.mxu0 0.0
    %2445 = vmatprep.subr.mxu0 0.0
    %2446 = vmatpush1.msra.mxu0 0.0
    %2447 = vmatprep.subr.mxu0 0.0
    %2448 = vmatpush1.msra.mxu0 0.0
    %2449 = vmatprep.subr.mxu0 0.0
    %2450 = vmatpush1.msra.mxu0 0.0
    %2451 = vmatprep.subr.mxu0 0.0
    %2452 = vmatpush1.msra.mxu0 0.0
    %2453 = vmatprep.subr.mxu0 0.0
    %2454 = vmatpush1.msra.mxu0 0.0
    %2455 = vmatprep.subr.mxu0 0.0
    %2456 = vmatpush1.msra.mxu0 0.0
    %2457 = vmatprep.subr.mxu0 0.0
    %2458 = vmatpush1.msra.mxu0 0.0
    %2459 = vmatprep.subr.mxu0 0.0
    %2460 = vmatpush1.msra.mxu0 0.0
    %2461 = vmatprep.subr.mxu0 0.0
    %2462 = vmatpush1.msra.mxu0 0.0
    %2463 = vmatprep.subr.mxu0 0.0
    %2464 = vmatpush1.msra.mxu0 0.0
    %2465 = vmatprep.subr.mxu0 0.0
    %2466 = vmatpush1.msra.mxu0 0.0
    %2467 = vmatprep.subr.mxu0 0.0
    %2468 = vmatpush1.msra.mxu0 0.0
    %2469 = vmatprep.subr.mxu0 0.0
    %2470 = vmatpush1.msra.mxu0 0.0
    %2471 = vmatprep.subr.mxu0 0.0
    %2472 = vmatpush1.msra.mxu0 0.0
    %2473 = vmatprep.mubr.f32.mxu0 0.0
    %2474 = vmatmul.mubr.f32.gmra.mrb[0].mxu0 %v2406
    %v2475 = vpop.f32.mrb[0].mxu0
    %v2476 = vadd.f32 0.0, %v2475
    %v2477 = vpop.f32.mrb[0].mxu0
    %2478 = vmatprep.mubr.f32.mxu0 0.0
    %2479 = vmatmul.mubr.f32.gmra.mrb[0].mxu0 %v2407
    %v2480 = vpop.f32.mrb[0].mxu0
    %v2481 = vadd.f32 0.0, %v2480
    %v2482 = vpop.f32.mrb[0].mxu0
    %2483 = vmatprep.mubr.f32.mxu0 0.0
    %2484 = vmatmul.mubr.f32.gmra.mrb[0].mxu0 %v2408
    %v2485 = vpop.f32.mrb[0].mxu0
    %v2486 = vadd.f32 0.0, %v2485
    %v2487 = vpop.f32.mrb[0].mxu0
    %2488 = vdwg.mxu0
    %v2489 = vmul.f32 %v2476, 0.14285715
    %v2490 = vmul.f32 %v2481, 0.14285715
    %v2491 = vmul.f32 %v2486, 0.14285715
    %v2492 = vadd.f32 %v2489, 1e-05
    %v2493 = vadd.f32 %v2490, 1e-05
    %v2494 = vadd.f32 %v2491, 1e-05
    %v2495 = vrsqrt.pop %v2492
    %v2496 = vrsqrt.pop %v2493
    %v2497 = vrsqrt.pop %v2494
    %v2498 = vmul.f32 %v2403, %v2495
    %v2499 = vmul.f32 %v2404, %v2496
    %v2500 = vmul.f32 %v2405, %v2497
    %s2501 = scalar_lea.vmem [#allocation10], 2
    %v2502 = vld [vmem:[%s2501] sm:$0x1]
    %v2504 = vlaneseq
    %v2505 = vshrl.u32 %v2504, 7
    %v2506 = vsub.s32 0, %v2505
    %v2507 = vrot.slane %v2502, %v2506
    %v2509 = vmul.f32 %v2498, %v2507
    %v2510 = vmul.f32 %v2499, %v2507
    %v2511 = vmul.f32 %v2500, %v2507
    %s2512 = scalar_lea.vmem [#allocation12], 2
    %v2513 = vld [vmem:[%s2512] sm:$0x1]
    %v2515 = vlaneseq
    %v2516 = vshrl.u32 %v2515, 7
    %v2517 = vsub.s32 0, %v2516
    %v2518 = vrot.slane %v2513, %v2517
    %v2520 = vadd.f32 %v2509, %v2518
    %v2521 = vadd.f32 %v2510, %v2518
    %v2522 = vadd.f32 %v2511, %v2518
    %v2525 = vrot.slane %v2264, 1
    %v2526 = vrot.slane %v2265, 1
    %v2527 = vsel %vm647, %v2525, %v2526
    %vm2530 = vcmask 1040384
    %v2531 = vsel %vm2530, %v2264, %v2527
    %v2534 = vrot.slane %v2318, 1
    %v2535 = vrot.slane %v2319, 1
    %v2536 = vsel %vm647, %v2534, %v2535
    %v2539 = vsel %vm2530, %v2318, %v2536
    %v2542 = vrot.slane %v2521, 1
    %v2543 = vrot.slane %v2522, 1
    %v2544 = vsel %vm647, %v2542, %v2543
    %v2547 = vsel %vm2530, %v2521, %v2544
    %v2549 = vrot.slane %v2263, 1
    %v2550 = vsel %vm647, %v2549, %v2525
    %v2553 = vrot.slane %v2264, 2
    %v2554 = vrot.slane %v2265, 2
    %v2555 = vsel %vm684, %v2553, %v2554
    %v2558 = vsel %vm2530, %v2525, %v2555
    %v2560 = vrot.slane %v2317, 1
    %v2561 = vsel %vm647, %v2560, %v2534
    %v2564 = vrot.slane %v2318, 2
    %v2565 = vrot.slane %v2319, 2
    %v2566 = vsel %vm684, %v2564, %v2565
    %v2569 = vsel %vm2530, %v2534, %v2566
    %v2571 = vrot.slane %v2520, 1
    %v2572 = vsel %vm647, %v2571, %v2542
    %v2575 = vrot.slane %v2521, 2
    %v2576 = vrot.slane %v2522, 2
    %v2577 = vsel %vm684, %v2575, %v2576
    %v2580 = vsel %vm2530, %v2542, %v2577
    %s2581 = scalar_lea.vmem [#allocation13], 3072
    %v2582 = vld [vmem:[%s2581] sm:$0xff]
    %v2583 = vld [vmem:[%s2581 + $0x8] sm:$0xff]
    %v2584 = vld [vmem:[%s2581 + $0x10] sm:$0xff]
    %v2585 = vld [vmem:[%s2581 + $0x18] sm:$0xff]
    %v2586 = vld [vmem:[%s2581 + $0x20] sm:$0xff]
    %v2587 = vld [vmem:[%s2581 + $0x28] sm:$0xff]
    %v2588 = vld [vmem:[%s2581 + $0x30] sm:$0xff]
    %v2589 = vld [vmem:[%s2581 + $0x38] sm:$0xff]
    %v2590 = vld [vmem:[%s2581 + $0x40] sm:$0xff]
    %v2591 = vld [vmem:[%s2581 + $0x48] sm:$0xff]
    %v2592 = vld [vmem:[%s2581 + $0x50] sm:$0xff]
    %v2593 = vld [vmem:[%s2581 + $0x58] sm:$0xff]
    %v2594 = vld [vmem:[%s2581 + $0x60] sm:$0xff]
    %v2595 = vld [vmem:[%s2581 + $0x68] sm:$0xff]
    %v2596 = vld [vmem:[%s2581 + $0x70] sm:$0xff]
    %v2597 = vld [vmem:[%s2581 + $0x78] sm:$0xff]
    %v2598 = vld [vmem:[%s2581 + $0x80] sm:$0xff]
    %v2599 = vld [vmem:[%s2581 + $0x88] sm:$0xff]
    %v2600 = vld [vmem:[%s2581 + $0x90] sm:$0xff]
    %v2601 = vld [vmem:[%s2581 + $0x98] sm:$0xff]
    %v2602 = vld [vmem:[%s2581 + $0xa0] sm:$0xff]
    %v2603 = vld [vmem:[%s2581 + $0xa8] sm:$0xff]
    %v2604 = vld [vmem:[%s2581 + $0xb0] sm:$0xff]
    %v2605 = vld [vmem:[%s2581 + $0xb8] sm:$0xff]
    %v2606 = vld [vmem:[%s2581 + $0xc0] sm:$0xff]
    %v2607 = vld [vmem:[%s2581 + $0xc8] sm:$0xff]
    %v2608 = vld [vmem:[%s2581 + $0xd0] sm:$0xff]
    %v2609 = vld [vmem:[%s2581 + $0xd8] sm:$0xff]
    %v2610 = vld [vmem:[%s2581 + $0xe0] sm:$0xff]
    %v2611 = vld [vmem:[%s2581 + $0xe8] sm:$0xff]
    %v2612 = vld [vmem:[%s2581 + $0xf0] sm:$0xff]
    %v2613 = vld [vmem:[%s2581 + $0xf8] sm:$0xff]
    %v2614 = vld [vmem:[%s2581 + $0x100] sm:$0xff]
    %v2615 = vld [vmem:[%s2581 + $0x108] sm:$0xff]
    %v2616 = vld [vmem:[%s2581 + $0x110] sm:$0xff]
    %v2617 = vld [vmem:[%s2581 + $0x118] sm:$0xff]
    %v2618 = vld [vmem:[%s2581 + $0x120] sm:$0xff]
    %v2619 = vld [vmem:[%s2581 + $0x128] sm:$0xff]
    %v2620 = vld [vmem:[%s2581 + $0x130] sm:$0xff]
    %v2621 = vld [vmem:[%s2581 + $0x138] sm:$0xff]
    %v2622 = vld [vmem:[%s2581 + $0x140] sm:$0xff]
    %v2623 = vld [vmem:[%s2581 + $0x148] sm:$0xff]
    %v2624 = vld [vmem:[%s2581 + $0x150] sm:$0xff]
    %v2625 = vld [vmem:[%s2581 + $0x158] sm:$0xff]
    %v2626 = vld [vmem:[%s2581 + $0x160] sm:$0xff]
    %v2627 = vld [vmem:[%s2581 + $0x168] sm:$0xff]
    %v2628 = vld [vmem:[%s2581 + $0x170] sm:$0xff]
    %v2629 = vld [vmem:[%s2581 + $0x178] sm:$0xff]
    %v2630 = vld [vmem:[%s2581 + $0x180] sm:$0xff]
    %v2631 = vld [vmem:[%s2581 + $0x188] sm:$0xff]
    %v2632 = vld [vmem:[%s2581 + $0x190] sm:$0xff]
    %v2633 = vld [vmem:[%s2581 + $0x198] sm:$0xff]
    %v2634 = vld [vmem:[%s2581 + $0x1a0] sm:$0xff]
    %v2635 = vld [vmem:[%s2581 + $0x1a8] sm:$0xff]
    %v2636 = vld [vmem:[%s2581 + $0x1b0] sm:$0xff]
    %v2637 = vld [vmem:[%s2581 + $0x1b8] sm:$0xff]
    %v2638 = vld [vmem:[%s2581 + $0x1c0] sm:$0xff]
    %v2639 = vld [vmem:[%s2581 + $0x1c8] sm:$0xff]
    %v2640 = vld [vmem:[%s2581 + $0x1d0] sm:$0xff]
    %v2641 = vld [vmem:[%s2581 + $0x1d8] sm:$0xff]
    %v2642 = vld [vmem:[%s2581 + $0x1e0] sm:$0xff]
    %v2643 = vld [vmem:[%s2581 + $0x1e8] sm:$0xff]
    %v2644 = vld [vmem:[%s2581 + $0x1f0] sm:$0xff]
    %v2645 = vld [vmem:[%s2581 + $0x1f8] sm:$0xff]
    %v2646 = vld [vmem:[%s2581 + $0x200] sm:$0xff]
    %v2647 = vld [vmem:[%s2581 + $0x208] sm:$0xff]
    %v2648 = vld [vmem:[%s2581 + $0x210] sm:$0xff]
    %v2649 = vld [vmem:[%s2581 + $0x218] sm:$0xff]
    %v2650 = vld [vmem:[%s2581 + $0x220] sm:$0xff]
    %v2651 = vld [vmem:[%s2581 + $0x228] sm:$0xff]
    %v2652 = vld [vmem:[%s2581 + $0x230] sm:$0xff]
    %v2653 = vld [vmem:[%s2581 + $0x238] sm:$0xff]
    %v2654 = vld [vmem:[%s2581 + $0x240] sm:$0xff]
    %v2655 = vld [vmem:[%s2581 + $0x248] sm:$0xff]
    %v2656 = vld [vmem:[%s2581 + $0x250] sm:$0xff]
    %v2657 = vld [vmem:[%s2581 + $0x258] sm:$0xff]
    %v2658 = vld [vmem:[%s2581 + $0x260] sm:$0xff]
    %v2659 = vld [vmem:[%s2581 + $0x268] sm:$0xff]
    %v2660 = vld [vmem:[%s2581 + $0x270] sm:$0xff]
    %v2661 = vld [vmem:[%s2581 + $0x278] sm:$0xff]
    %v2662 = vld [vmem:[%s2581 + $0x280] sm:$0xff]
    %v2663 = vld [vmem:[%s2581 + $0x288] sm:$0xff]
    %v2664 = vld [vmem:[%s2581 + $0x290] sm:$0xff]
    %v2665 = vld [vmem:[%s2581 + $0x298] sm:$0xff]
    %v2666 = vld [vmem:[%s2581 + $0x2a0] sm:$0xff]
    %v2667 = vld [vmem:[%s2581 + $0x2a8] sm:$0xff]
    %v2668 = vld [vmem:[%s2581 + $0x2b0] sm:$0xff]
    %v2669 = vld [vmem:[%s2581 + $0x2b8] sm:$0xff]
    %v2670 = vld [vmem:[%s2581 + $0x2c0] sm:$0xff]
    %v2671 = vld [vmem:[%s2581 + $0x2c8] sm:$0xff]
    %v2672 = vld [vmem:[%s2581 + $0x2d0] sm:$0xff]
    %v2673 = vld [vmem:[%s2581 + $0x2d8] sm:$0xff]
    %v2674 = vld [vmem:[%s2581 + $0x2e0] sm:$0xff]
    %v2675 = vld [vmem:[%s2581 + $0x2e8] sm:$0xff]
    %v2676 = vld [vmem:[%s2581 + $0x2f0] sm:$0xff]
    %v2677 = vld [vmem:[%s2581 + $0x2f8] sm:$0xff]
    %v2678 = vld [vmem:[%s2581 + $0x300] sm:$0xff]
    %v2679 = vld [vmem:[%s2581 + $0x308] sm:$0xff]
    %v2680 = vld [vmem:[%s2581 + $0x310] sm:$0xff]
    %v2681 = vld [vmem:[%s2581 + $0x318] sm:$0xff]
    %v2682 = vld [vmem:[%s2581 + $0x320] sm:$0xff]
    %v2683 = vld [vmem:[%s2581 + $0x328] sm:$0xff]
    %v2684 = vld [vmem:[%s2581 + $0x330] sm:$0xff]
    %v2685 = vld [vmem:[%s2581 + $0x338] sm:$0xff]
    %v2686 = vld [vmem:[%s2581 + $0x340] sm:$0xff]
    %v2687 = vld [vmem:[%s2581 + $0x348] sm:$0xff]
    %v2688 = vld [vmem:[%s2581 + $0x350] sm:$0xff]
    %v2689 = vld [vmem:[%s2581 + $0x358] sm:$0xff]
    %v2690 = vld [vmem:[%s2581 + $0x360] sm:$0xff]
    %v2691 = vld [vmem:[%s2581 + $0x368] sm:$0xff]
    %v2692 = vld [vmem:[%s2581 + $0x370] sm:$0xff]
    %v2693 = vld [vmem:[%s2581 + $0x378] sm:$0xff]
    %v2694 = vld [vmem:[%s2581 + $0x380] sm:$0xff]
    %v2695 = vld [vmem:[%s2581 + $0x388] sm:$0xff]
    %v2696 = vld [vmem:[%s2581 + $0x390] sm:$0xff]
    %v2697 = vld [vmem:[%s2581 + $0x398] sm:$0xff]
    %v2698 = vld [vmem:[%s2581 + $0x3a0] sm:$0xff]
    %v2699 = vld [vmem:[%s2581 + $0x3a8] sm:$0xff]
    %v2700 = vld [vmem:[%s2581 + $0x3b0] sm:$0xff]
    %v2701 = vld [vmem:[%s2581 + $0x3b8] sm:$0xff]
    %v2702 = vld [vmem:[%s2581 + $0x3c0] sm:$0xff]
    %v2703 = vld [vmem:[%s2581 + $0x3c8] sm:$0xff]
    %v2704 = vld [vmem:[%s2581 + $0x3d0] sm:$0xff]
    %v2705 = vld [vmem:[%s2581 + $0x3d8] sm:$0xff]
    %v2706 = vld [vmem:[%s2581 + $0x3e0] sm:$0xff]
    %v2707 = vld [vmem:[%s2581 + $0x3e8] sm:$0xff]
    %v2708 = vld [vmem:[%s2581 + $0x3f0] sm:$0xff]
    %v2709 = vld [vmem:[%s2581 + $0x3f8] sm:$0xff]
    %v2710 = vld [vmem:[%s2581 + $0x400] sm:$0xff]
    %v2711 = vld [vmem:[%s2581 + $0x408] sm:$0xff]
    %v2712 = vld [vmem:[%s2581 + $0x410] sm:$0xff]
    %v2713 = vld [vmem:[%s2581 + $0x418] sm:$0xff]
    %v2714 = vld [vmem:[%s2581 + $0x420] sm:$0xff]
    %v2715 = vld [vmem:[%s2581 + $0x428] sm:$0xff]
    %v2716 = vld [vmem:[%s2581 + $0x430] sm:$0xff]
    %v2717 = vld [vmem:[%s2581 + $0x438] sm:$0xff]
    %v2718 = vld [vmem:[%s2581 + $0x440] sm:$0xff]
    %v2719 = vld [vmem:[%s2581 + $0x448] sm:$0xff]
    %v2720 = vld [vmem:[%s2581 + $0x450] sm:$0xff]
    %v2721 = vld [vmem:[%s2581 + $0x458] sm:$0xff]
    %v2722 = vld [vmem:[%s2581 + $0x460] sm:$0xff]
    %v2723 = vld [vmem:[%s2581 + $0x468] sm:$0xff]
    %v2724 = vld [vmem:[%s2581 + $0x470] sm:$0xff]
    %v2725 = vld [vmem:[%s2581 + $0x478] sm:$0xff]
    %v2726 = vld [vmem:[%s2581 + $0x480] sm:$0xff]
    %v2727 = vld [vmem:[%s2581 + $0x488] sm:$0xff]
    %v2728 = vld [vmem:[%s2581 + $0x490] sm:$0xff]
    %v2729 = vld [vmem:[%s2581 + $0x498] sm:$0xff]
    %v2730 = vld [vmem:[%s2581 + $0x4a0] sm:$0xff]
    %v2731 = vld [vmem:[%s2581 + $0x4a8] sm:$0xff]
    %v2732 = vld [vmem:[%s2581 + $0x4b0] sm:$0xff]
    %v2733 = vld [vmem:[%s2581 + $0x4b8] sm:$0xff]
    %v2734 = vld [vmem:[%s2581 + $0x4c0] sm:$0xff]
    %v2735 = vld [vmem:[%s2581 + $0x4c8] sm:$0xff]
    %v2736 = vld [vmem:[%s2581 + $0x4d0] sm:$0xff]
    %v2737 = vld [vmem:[%s2581 + $0x4d8] sm:$0xff]
    %v2738 = vld [vmem:[%s2581 + $0x4e0] sm:$0xff]
    %v2739 = vld [vmem:[%s2581 + $0x4e8] sm:$0xff]
    %v2740 = vld [vmem:[%s2581 + $0x4f0] sm:$0xff]
    %v2741 = vld [vmem:[%s2581 + $0x4f8] sm:$0xff]
    %v2742 = vld [vmem:[%s2581 + $0x500] sm:$0xff]
    %v2743 = vld [vmem:[%s2581 + $0x508] sm:$0xff]
    %v2744 = vld [vmem:[%s2581 + $0x510] sm:$0xff]
    %v2745 = vld [vmem:[%s2581 + $0x518] sm:$0xff]
    %v2746 = vld [vmem:[%s2581 + $0x520] sm:$0xff]
    %v2747 = vld [vmem:[%s2581 + $0x528] sm:$0xff]
    %v2748 = vld [vmem:[%s2581 + $0x530] sm:$0xff]
    %v2749 = vld [vmem:[%s2581 + $0x538] sm:$0xff]
    %v2750 = vld [vmem:[%s2581 + $0x540] sm:$0xff]
    %v2751 = vld [vmem:[%s2581 + $0x548] sm:$0xff]
    %v2752 = vld [vmem:[%s2581 + $0x550] sm:$0xff]
    %v2753 = vld [vmem:[%s2581 + $0x558] sm:$0xff]
    %v2754 = vld [vmem:[%s2581 + $0x560] sm:$0xff]
    %v2755 = vld [vmem:[%s2581 + $0x568] sm:$0xff]
    %v2756 = vld [vmem:[%s2581 + $0x570] sm:$0xff]
    %v2757 = vld [vmem:[%s2581 + $0x578] sm:$0xff]
    %v2758 = vld [vmem:[%s2581 + $0x580] sm:$0xff]
    %v2759 = vld [vmem:[%s2581 + $0x588] sm:$0xff]
    %v2760 = vld [vmem:[%s2581 + $0x590] sm:$0xff]
    %v2761 = vld [vmem:[%s2581 + $0x598] sm:$0xff]
    %v2762 = vld [vmem:[%s2581 + $0x5a0] sm:$0xff]
    %v2763 = vld [vmem:[%s2581 + $0x5a8] sm:$0xff]
    %v2764 = vld [vmem:[%s2581 + $0x5b0] sm:$0xff]
    %v2765 = vld [vmem:[%s2581 + $0x5b8] sm:$0xff]
    %v2766 = vld [vmem:[%s2581 + $0x5c0] sm:$0xff]
    %v2767 = vld [vmem:[%s2581 + $0x5c8] sm:$0xff]
    %v2768 = vld [vmem:[%s2581 + $0x5d0] sm:$0xff]
    %v2769 = vld [vmem:[%s2581 + $0x5d8] sm:$0xff]
    %v2770 = vld [vmem:[%s2581 + $0x5e0] sm:$0xff]
    %v2771 = vld [vmem:[%s2581 + $0x5e8] sm:$0xff]
    %v2772 = vld [vmem:[%s2581 + $0x5f0] sm:$0xff]
    %v2773 = vld [vmem:[%s2581 + $0x5f8] sm:$0xff]
    %s2774 = scalar_lea.vmem [#allocation15], 4
    %v2775 = vld [vmem:[%s2774] sm:$0x3]
    %v2777 = vlaneseq
    %v2778 = vshrl.u32 %v2777, 7
    %v2779 = vsub.s32 0, %v2778
    %v2780 = vrot.slane %v2775, %v2779
    %v2781 = vlaneseq
    %v2782 = vshrl.u32 %v2781, 7
    %v2783 = vsub.s32 1, %v2782
    %v2784 = vrot.slane %v2775, %v2783
    %2787 = vmatprep.subr.mxu0 %v2583
    %2788 = vmatpush1.msra.mxu0 %v2582
    %2789 = vmatprep.subr.mxu0 %v2585
    %2790 = vmatpush1.msra.mxu0 %v2584
    %2791 = vmatprep.subr.mxu0 %v2587
    %2792 = vmatpush1.msra.mxu0 %v2586
    %2793 = vmatprep.subr.mxu0 %v2589
    %2794 = vmatpush1.msra.mxu0 %v2588
    %2795 = vmatprep.subr.mxu0 %v2591
    %2796 = vmatpush1.msra.mxu0 %v2590
    %2797 = vmatprep.subr.mxu0 %v2593
    %2798 = vmatpush1.msra.mxu0 %v2592
    %2799 = vmatprep.subr.mxu0 %v2595
    %2800 = vmatpush1.msra.mxu0 %v2594
    %2801 = vmatprep.subr.mxu0 %v2597
    %2802 = vmatpush1.msra.mxu0 %v2596
    %2803 = vmatprep.subr.mxu0 %v2599
    %2804 = vmatpush1.msra.mxu0 %v2598
    %2805 = vmatprep.subr.mxu0 %v2601
    %2806 = vmatpush1.msra.mxu0 %v2600
    %2807 = vmatprep.subr.mxu0 %v2603
    %2808 = vmatpush1.msra.mxu0 %v2602
    %2809 = vmatprep.subr.mxu0 %v2605
    %2810 = vmatpush1.msra.mxu0 %v2604
    %2811 = vmatprep.subr.mxu0 %v2607
    %2812 = vmatpush1.msra.mxu0 %v2606
    %2813 = vmatprep.subr.mxu0 %v2609
    %2814 = vmatpush1.msra.mxu0 %v2608
    %2815 = vmatprep.subr.mxu0 %v2611
    %2816 = vmatpush1.msra.mxu0 %v2610
    %2817 = vmatprep.subr.mxu0 %v2613
    %2818 = vmatpush1.msra.mxu0 %v2612
    %2819 = vmatprep.subr.mxu0 %v2615
    %2820 = vmatpush1.msra.mxu0 %v2614
    %2821 = vmatprep.subr.mxu0 %v2617
    %2822 = vmatpush1.msra.mxu0 %v2616
    %2823 = vmatprep.subr.mxu0 %v2619
    %2824 = vmatpush1.msra.mxu0 %v2618
    %2825 = vmatprep.subr.mxu0 %v2621
    %2826 = vmatpush1.msra.mxu0 %v2620
    %2827 = vmatprep.subr.mxu0 %v2623
    %2828 = vmatpush1.msra.mxu0 %v2622
    %2829 = vmatprep.subr.mxu0 %v2625
    %2830 = vmatpush1.msra.mxu0 %v2624
    %2831 = vmatprep.subr.mxu0 %v2627
    %2832 = vmatpush1.msra.mxu0 %v2626
    %2833 = vmatprep.subr.mxu0 %v2629
    %2834 = vmatpush1.msra.mxu0 %v2628
    %2835 = vmatprep.subr.mxu0 %v2631
    %2836 = vmatpush1.msra.mxu0 %v2630
    %2837 = vmatprep.subr.mxu0 %v2633
    %2838 = vmatpush1.msra.mxu0 %v2632
    %2839 = vmatprep.subr.mxu0 %v2635
    %2840 = vmatpush1.msra.mxu0 %v2634
    %2841 = vmatprep.subr.mxu0 %v2637
    %2842 = vmatpush1.msra.mxu0 %v2636
    %2843 = vmatprep.subr.mxu0 %v2639
    %2844 = vmatpush1.msra.mxu0 %v2638
    %2845 = vmatprep.subr.mxu0 %v2641
    %2846 = vmatpush1.msra.mxu0 %v2640
    %2847 = vmatprep.subr.mxu0 %v2643
    %2848 = vmatpush1.msra.mxu0 %v2642
    %2849 = vmatprep.subr.mxu0 %v2645
    %2850 = vmatpush1.msra.mxu0 %v2644
    %2851 = vmatprep.mubr.f32.mxu0 %v2317
    %2852 = vmatmul.mubr.f32.gmra.mrb[0].mxu0 %v2263
    %v2853 = vpop.f32.mrb[0].mxu0
    %v2854 = vadd.f32 %v2780, %v2853
    %v2855 = vpop.f32.mrb[0].mxu0
    %v2856 = vadd.f32 %v2784, %v2855
    %2857 = vmatprep.mubr.f32.mxu0 %v2539
    %2858 = vmatmul.mubr.f32.gmra.mrb[0].mxu0 %v2531
    %v2859 = vpop.f32.mrb[0].mxu0
    %v2860 = vadd.f32 %v2780, %v2859
    %v2861 = vpop.f32.mrb[0].mxu0
    %v2862 = vadd.f32 %v2784, %v2861
    %2863 = vmatprep.mubr.f32.mxu0 %v2535
    %2864 = vmatmul.mubr.f32.gmra.mrb[0].mxu0 %v2526
    %v2865 = vpop.f32.mrb[0].mxu0
    %v2866 = vadd.f32 %v2780, %v2865
    %v2867 = vpop.f32.mrb[0].mxu0
    %v2868 = vadd.f32 %v2784, %v2867
    %2869 = vdwg.mxu0
    %2870 = vmatprep.subr.mxu0 %v2647
    %2871 = vmatpush1.msra.mxu0 %v2646
    %2872 = vmatprep.subr.mxu0 %v2649
    %2873 = vmatpush1.msra.mxu0 %v2648
    %2874 = vmatprep.subr.mxu0 %v2651
    %2875 = vmatpush1.msra.mxu0 %v2650
    %2876 = vmatprep.subr.mxu0 %v2653
    %2877 = vmatpush1.msra.mxu0 %v2652
    %2878 = vmatprep.subr.mxu0 %v2655
    %2879 = vmatpush1.msra.mxu0 %v2654
    %2880 = vmatprep.subr.mxu0 %v2657
    %2881 = vmatpush1.msra.mxu0 %v2656
    %2882 = vmatprep.subr.mxu0 %v2659
    %2883 = vmatpush1.msra.mxu0 %v2658
    %2884 = vmatprep.subr.mxu0 %v2661
    %2885 = vmatpush1.msra.mxu0 %v2660
    %2886 = vmatprep.subr.mxu0 %v2663
    %2887 = vmatpush1.msra.mxu0 %v2662
    %2888 = vmatprep.subr.mxu0 %v2665
    %2889 = vmatpush1.msra.mxu0 %v2664
    %2890 = vmatprep.subr.mxu0 %v2667
    %2891 = vmatpush1.msra.mxu0 %v2666
    %2892 = vmatprep.subr.mxu0 %v2669
    %2893 = vmatpush1.msra.mxu0 %v2668
    %2894 = vmatprep.subr.mxu0 %v2671
    %2895 = vmatpush1.msra.mxu0 %v2670
    %2896 = vmatprep.subr.mxu0 %v2673
    %2897 = vmatpush1.msra.mxu0 %v2672
    %2898 = vmatprep.subr.mxu0 %v2675
    %2899 = vmatpush1.msra.mxu0 %v2674
    %2900 = vmatprep.subr.mxu0 %v2677
    %2901 = vmatpush1.msra.mxu0 %v2676
    %2902 = vmatprep.subr.mxu0 %v2679
    %2903 = vmatpush1.msra.mxu0 %v2678
    %2904 = vmatprep.subr.mxu0 %v2681
    %2905 = vmatpush1.msra.mxu0 %v2680
    %2906 = vmatprep.subr.mxu0 %v2683
    %2907 = vmatpush1.msra.mxu0 %v2682
    %2908 = vmatprep.subr.mxu0 %v2685
    %2909 = vmatpush1.msra.mxu0 %v2684
    %2910 = vmatprep.subr.mxu0 %v2687
    %2911 = vmatpush1.msra.mxu0 %v2686
    %2912 = vmatprep.subr.mxu0 %v2689
    %2913 = vmatpush1.msra.mxu0 %v2688
    %2914 = vmatprep.subr.mxu0 %v2691
    %2915 = vmatpush1.msra.mxu0 %v2690
    %2916 = vmatprep.subr.mxu0 %v2693
    %2917 = vmatpush1.msra.mxu0 %v2692
    %2918 = vmatprep.subr.mxu0 %v2695
    %2919 = vmatpush1.msra.mxu0 %v2694
    %2920 = vmatprep.subr.mxu0 %v2697
    %2921 = vmatpush1.msra.mxu0 %v2696
    %2922 = vmatprep.subr.mxu0 %v2699
    %2923 = vmatpush1.msra.mxu0 %v2698
    %2924 = vmatprep.subr.mxu0 %v2701
    %2925 = vmatpush1.msra.mxu0 %v2700
    %2926 = vmatprep.subr.mxu0 %v2703
    %2927 = vmatpush1.msra.mxu0 %v2702
    %2928 = vmatprep.subr.mxu0 %v2705
    %2929 = vmatpush1.msra.mxu0 %v2704
    %2930 = vmatprep.subr.mxu0 %v2707
    %2931 = vmatpush1.msra.mxu0 %v2706
    %2932 = vmatprep.subr.mxu0 %v2709
    %2933 = vmatpush1.msra.mxu0 %v2708
    %2934 = vmatprep.mubr.f32.mxu0 %v2550
    %2935 = vmatmul.mubr.f32.gmra.mrb[0].mxu0 %v2520
    %v2936 = vpop.f32.mrb[0].mxu0
    %v2937 = vadd.f32 %v2854, %v2936
    %v2938 = vpop.f32.mrb[0].mxu0
    %v2939 = vadd.f32 %v2856, %v2938
    %2940 = vmatprep.mubr.f32.mxu0 %v2558
    %2941 = vmatmul.mubr.f32.gmra.mrb[0].mxu0 %v2547
    %v2942 = vpop.f32.mrb[0].mxu0
    %v2943 = vadd.f32 %v2860, %v2942
    %v2944 = vpop.f32.mrb[0].mxu0
    %v2945 = vadd.f32 %v2862, %v2944
    %2946 = vmatprep.mubr.f32.mxu0 %v2554
    %2947 = vmatmul.mubr.f32.gmra.mrb[0].mxu0 %v2543
    %v2948 = vpop.f32.mrb[0].mxu0
    %v2949 = vadd.f32 %v2866, %v2948
    %v2950 = vpop.f32.mrb[0].mxu0
    %v2951 = vadd.f32 %v2868, %v2950
    %2952 = vdwg.mxu0
    %2953 = vmatprep.subr.mxu0 %v2711
    %2954 = vmatpush1.msra.mxu0 %v2710
    %2955 = vmatprep.subr.mxu0 %v2713
    %2956 = vmatpush1.msra.mxu0 %v2712
    %2957 = vmatprep.subr.mxu0 %v2715
    %2958 = vmatpush1.msra.mxu0 %v2714
    %2959 = vmatprep.subr.mxu0 %v2717
    %2960 = vmatpush1.msra.mxu0 %v2716
    %2961 = vmatprep.subr.mxu0 %v2719
    %2962 = vmatpush1.msra.mxu0 %v2718
    %2963 = vmatprep.subr.mxu0 %v2721
    %2964 = vmatpush1.msra.mxu0 %v2720
    %2965 = vmatprep.subr.mxu0 %v2723
    %2966 = vmatpush1.msra.mxu0 %v2722
    %2967 = vmatprep.subr.mxu0 %v2725
    %2968 = vmatpush1.msra.mxu0 %v2724
    %2969 = vmatprep.subr.mxu0 %v2727
    %2970 = vmatpush1.msra.mxu0 %v2726
    %2971 = vmatprep.subr.mxu0 %v2729
    %2972 = vmatpush1.msra.mxu0 %v2728
    %2973 = vmatprep.subr.mxu0 %v2731
    %2974 = vmatpush1.msra.mxu0 %v2730
    %2975 = vmatprep.subr.mxu0 %v2733
    %2976 = vmatpush1.msra.mxu0 %v2732
    %2977 = vmatprep.subr.mxu0 %v2735
    %2978 = vmatpush1.msra.mxu0 %v2734
    %2979 = vmatprep.subr.mxu0 %v2737
    %2980 = vmatpush1.msra.mxu0 %v2736
    %2981 = vmatprep.subr.mxu0 %v2739
    %2982 = vmatpush1.msra.mxu0 %v2738
    %2983 = vmatprep.subr.mxu0 %v2741
    %2984 = vmatpush1.msra.mxu0 %v2740
    %2985 = vmatprep.subr.mxu0 %v2743
    %2986 = vmatpush1.msra.mxu0 %v2742
    %2987 = vmatprep.subr.mxu0 %v2745
    %2988 = vmatpush1.msra.mxu0 %v2744
    %2989 = vmatprep.subr.mxu0 %v2747
    %2990 = vmatpush1.msra.mxu0 %v2746
    %2991 = vmatprep.subr.mxu0 %v2749
    %2992 = vmatpush1.msra.mxu0 %v2748
    %2993 = vmatprep.subr.mxu0 %v2751
    %2994 = vmatpush1.msra.mxu0 %v2750
    %2995 = vmatprep.subr.mxu0 %v2753
    %2996 = vmatpush1.msra.mxu0 %v2752
    %2997 = vmatprep.subr.mxu0 %v2755
    %2998 = vmatpush1.msra.mxu0 %v2754
    %2999 = vmatprep.subr.mxu0 %v2757
    %3000 = vmatpush1.msra.mxu0 %v2756
    %3001 = vmatprep.subr.mxu0 %v2759
    %3002 = vmatpush1.msra.mxu0 %v2758
    %3003 = vmatprep.subr.mxu0 %v2761
    %3004 = vmatpush1.msra.mxu0 %v2760
    %3005 = vmatprep.subr.mxu0 %v2763
    %3006 = vmatpush1.msra.mxu0 %v2762
    %3007 = vmatprep.subr.mxu0 %v2765
    %3008 = vmatpush1.msra.mxu0 %v2764
    %3009 = vmatprep.subr.mxu0 %v2767
    %3010 = vmatpush1.msra.mxu0 %v2766
    %3011 = vmatprep.subr.mxu0 %v2769
    %3012 = vmatpush1.msra.mxu0 %v2768
    %3013 = vmatprep.subr.mxu0 %v2771
    %3014 = vmatpush1.msra.mxu0 %v2770
    %3015 = vmatprep.subr.mxu0 %v2773
    %3016 = vmatpush1.msra.mxu0 %v2772
    %3017 = vmatprep.mubr.f32.mxu0 %v2572
    %3018 = vmatmul.mubr.f32.gmra.mrb[0].mxu0 %v2561
    %v3019 = vpop.f32.mrb[0].mxu0
    %v3020 = vadd.f32 %v2937, %v3019
    %v3021 = vpop.f32.mrb[0].mxu0
    %v3022 = vadd.f32 %v2939, %v3021
    %3023 = vmatprep.mubr.f32.mxu0 %v2580
    %3024 = vmatmul.mubr.f32.gmra.mrb[0].mxu0 %v2569
    %v3025 = vpop.f32.mrb[0].mxu0
    %v3026 = vadd.f32 %v2943, %v3025
    %v3027 = vpop.f32.mrb[0].mxu0
    %v3028 = vadd.f32 %v2945, %v3027
    %3029 = vmatprep.mubr.f32.mxu0 %v2576
    %3030 = vmatmul.mubr.f32.gmra.mrb[0].mxu0 %v2565
    %v3031 = vpop.f32.mrb[0].mxu0
    %v3032 = vadd.f32 %v2949, %v3031
    %v3033 = vpop.f32.mrb[0].mxu0
    %v3034 = vadd.f32 %v2951, %v3033
    %3035 = vdwg.mxu0
    %v3036 = vtanh.pop %v3020
    %v3037 = vtanh.pop %v3026
    %v3038 = vtanh.pop %v3032
    %v3039 = vxor.u32 %v3022, 2147483648
    %v3040 = vxor.u32 %v3028, 2147483648
    %v3041 = vxor.u32 %v3034, 2147483648
    %v3042 = vmul.f32 %v3039, 1.442695
    %v3043 = vpow.pop %v3042
    %v3044 = vmul.f32 %v3040, 1.442695
    %v3045 = vpow.pop %v3044
    %v3046 = vmul.f32 %v3041, 1.442695
    %v3047 = vpow.pop %v3046
    %v3048 = vadd.f32 %v3043, 1.0
    %v3049 = vadd.f32 %v3045, 1.0
    %v3050 = vadd.f32 %v3047, 1.0
    %v3051 = vrcp.pop %v3048
    %v3052 = vmul.f32 1.0, %v3051
    %v3053 = vrcp.pop %v3049
    %v3054 = vmul.f32 1.0, %v3053
    %v3055 = vrcp.pop %v3050
    %v3056 = vmul.f32 1.0, %v3055
    %v3057 = vmul.f32 %v3036, %v3052
    %v3058 = vmul.f32 %v3037, %v3054
    %v3059 = vmul.f32 %v3038, %v3056
    %s3060 = scalar_lea.vmem [#allocation16], 512
    %v3061 = vld [vmem:[%s3060] sm:$0xff]
    %v3062 = vld [vmem:[%s3060 + $0x8] sm:$0xff]
    %v3063 = vld [vmem:[%s3060 + $0x10] sm:$0xff]
    %v3064 = vld [vmem:[%s3060 + $0x18] sm:$0xff]
    %v3065 = vld [vmem:[%s3060 + $0x20] sm:$0xff]
    %v3066 = vld [vmem:[%s3060 + $0x28] sm:$0xff]
    %v3067 = vld [vmem:[%s3060 + $0x30] sm:$0xff]
    %v3068 = vld [vmem:[%s3060 + $0x38] sm:$0xff]
    %v3069 = vld [vmem:[%s3060 + $0x40] sm:$0xff]
    %v3070 = vld [vmem:[%s3060 + $0x48] sm:$0xff]
    %v3071 = vld [vmem:[%s3060 + $0x50] sm:$0xff]
    %v3072 = vld [vmem:[%s3060 + $0x58] sm:$0xff]
    %v3073 = vld [vmem:[%s3060 + $0x60] sm:$0xff]
    %v3074 = vld [vmem:[%s3060 + $0x68] sm:$0xff]
    %v3075 = vld [vmem:[%s3060 + $0x70] sm:$0xff]
    %v3076 = vld [vmem:[%s3060 + $0x78] sm:$0xff]
    %v3077 = vld [vmem:[%s3060 + $0x80] sm:$0xff]
    %v3078 = vld [vmem:[%s3060 + $0x88] sm:$0xff]
    %v3079 = vld [vmem:[%s3060 + $0x90] sm:$0xff]
    %v3080 = vld [vmem:[%s3060 + $0x98] sm:$0xff]
    %v3081 = vld [vmem:[%s3060 + $0xa0] sm:$0xff]
    %v3082 = vld [vmem:[%s3060 + $0xa8] sm:$0xff]
    %v3083 = vld [vmem:[%s3060 + $0xb0] sm:$0xff]
    %v3084 = vld [vmem:[%s3060 + $0xb8] sm:$0xff]
    %v3085 = vld [vmem:[%s3060 + $0xc0] sm:$0xff]
    %v3086 = vld [vmem:[%s3060 + $0xc8] sm:$0xff]
    %v3087 = vld [vmem:[%s3060 + $0xd0] sm:$0xff]
    %v3088 = vld [vmem:[%s3060 + $0xd8] sm:$0xff]
    %v3089 = vld [vmem:[%s3060 + $0xe0] sm:$0xff]
    %v3090 = vld [vmem:[%s3060 + $0xe8] sm:$0xff]
    %v3091 = vld [vmem:[%s3060 + $0xf0] sm:$0xff]
    %v3092 = vld [vmem:[%s3060 + $0xf8] sm:$0xff]
    %s3093 = scalar_lea.vmem [#allocation18], 4
    %v3094 = vld [vmem:[%s3093] sm:$0x3]
    %v3096 = vlaneseq
    %v3097 = vshrl.u32 %v3096, 7
    %v3098 = vsub.s32 0, %v3097
    %v3099 = vrot.slane %v3094, %v3098
    %v3100 = vlaneseq
    %v3101 = vshrl.u32 %v3100, 7
    %v3102 = vsub.s32 1, %v3101
    %v3103 = vrot.slane %v3094, %v3102
    %3106 = vmatprep.subr.mxu0 %v3062
    %3107 = vmatpush1.msra.mxu0 %v3061
    %3108 = vmatprep.subr.mxu0 %v3064
    %3109 = vmatpush1.msra.mxu0 %v3063
    %3110 = vmatprep.subr.mxu0 %v3066
    %3111 = vmatpush1.msra.mxu0 %v3065
    %3112 = vmatprep.subr.mxu0 %v3068
    %3113 = vmatpush1.msra.mxu0 %v3067
    %3114 = vmatprep.subr.mxu0 %v3070
    %3115 = vmatpush1.msra.mxu0 %v3069
    %3116 = vmatprep.subr.mxu0 %v3072
    %3117 = vmatpush1.msra.mxu0 %v3071
    %3118 = vmatprep.subr.mxu0 %v3074
    %3119 = vmatpush1.msra.mxu0 %v3073
    %3120 = vmatprep.subr.mxu0 %v3076
    %3121 = vmatpush1.msra.mxu0 %v3075
    %3122 = vmatprep.subr.mxu0 %v3078
    %3123 = vmatpush1.msra.mxu0 %v3077
    %3124 = vmatprep.subr.mxu0 %v3080
    %3125 = vmatpush1.msra.mxu0 %v3079
    %3126 = vmatprep.subr.mxu0 %v3082
    %3127 = vmatpush1.msra.mxu0 %v3081
    %3128 = vmatprep.subr.mxu0 %v3084
    %3129 = vmatpush1.msra.mxu0 %v3083
    %3130 = vmatprep.subr.mxu0 %v3086
    %3131 = vmatpush1.msra.mxu0 %v3085
    %3132 = vmatprep.subr.mxu0 %v3088
    %3133 = vmatpush1.msra.mxu0 %v3087
    %3134 = vmatprep.subr.mxu0 %v3090
    %3135 = vmatpush1.msra.mxu0 %v3089
    %3136 = vmatprep.subr.mxu0 %v3092
    %3137 = vmatpush1.msra.mxu0 %v3091
    %3138 = vmatprep.subr.mxu0 0.0
    %3139 = vmatpush1.msra.mxu0 0.0
    %3140 = vmatprep.subr.mxu0 0.0
    %3141 = vmatpush1.msra.mxu0 0.0
    %3142 = vmatprep.subr.mxu0 0.0
    %3143 = vmatpush1.msra.mxu0 0.0
    %3144 = vmatprep.subr.mxu0 0.0
    %3145 = vmatpush1.msra.mxu0 0.0
    %3146 = vmatprep.subr.mxu0 0.0
    %3147 = vmatpush1.msra.mxu0 0.0
    %3148 = vmatprep.subr.mxu0 0.0
    %3149 = vmatpush1.msra.mxu0 0.0
    %3150 = vmatprep.subr.mxu0 0.0
    %3151 = vmatpush1.msra.mxu0 0.0
    %3152 = vmatprep.subr.mxu0 0.0
    %3153 = vmatpush1.msra.mxu0 0.0
    %3154 = vmatprep.subr.mxu0 0.0
    %3155 = vmatpush1.msra.mxu0 0.0
    %3156 = vmatprep.subr.mxu0 0.0
    %3157 = vmatpush1.msra.mxu0 0.0
    %3158 = vmatprep.subr.mxu0 0.0
    %3159 = vmatpush1.msra.mxu0 0.0
    %3160 = vmatprep.subr.mxu0 0.0
    %3161 = vmatpush1.msra.mxu0 0.0
    %3162 = vmatprep.subr.mxu0 0.0
    %3163 = vmatpush1.msra.mxu0 0.0
    %3164 = vmatprep.subr.mxu0 0.0
    %3165 = vmatpush1.msra.mxu0 0.0
    %3166 = vmatprep.subr.mxu0 0.0
    %3167 = vmatpush1.msra.mxu0 0.0
    %3168 = vmatprep.subr.mxu0 0.0
    %3169 = vmatpush1.msra.mxu0 0.0
    %3170 = vmatprep.mubr.f32.mxu0 0.0
    %3171 = vmatmul.mubr.f32.gmra.mrb[0].mxu0 %v3057
    %v3172 = vpop.f32.mrb[0].mxu0
    %v3173 = vadd.f32 %v3099, %v3172
    %v3174 = vpop.f32.mrb[0].mxu0
    %v3175 = vadd.f32 %v3103, %v3174
    %3176 = vmatprep.mubr.f32.mxu0 0.0
    %3177 = vmatmul.mubr.f32.gmra.mrb[0].mxu0 %v3058
    %v3178 = vpop.f32.mrb[0].mxu0
    %v3179 = vadd.f32 %v3099, %v3178
    %v3180 = vpop.f32.mrb[0].mxu0
    %v3181 = vadd.f32 %v3103, %v3180
    %3182 = vmatprep.mubr.f32.mxu0 0.0
    %3183 = vmatmul.mubr.f32.gmra.mrb[0].mxu0 %v3059
    %v3184 = vpop.f32.mrb[0].mxu0
    %v3185 = vadd.f32 %v3099, %v3184
    %v3186 = vpop.f32.mrb[0].mxu0
    %v3187 = vadd.f32 %v3103, %v3186
    %3188 = vdwg.mxu0
    %v3191 = vrot.slane %v2260, 1
    %v3192 = vrot.slane %v2261, 1
    %v3193 = vsel %vm647, %v3191, %v3192
    %v3197 = vrot.slane %v2261, 2
    %v3198 = vrot.slane %v2262, 2
    %v3199 = vsel %vm684, %v3197, %v3198
    %v3202 = vsel %vm2530, %v3192, %v3199
    %v3203 = vadd.f32 %v3173, %v3193
    %v3204 = vadd.f32 %v3179, %v3202
    %v3205 = vadd.f32 %v3185, %v3198
    %v3206 = vadd.f32 %v3175, %v2550
    %v3207 = vadd.f32 %v3181, %v2558
    %v3208 = vadd.f32 %v3187, %v2554
    %v3209 = vadd.f32 %v3206, %v3207
    %v3210 = vsel %vm350, %v3208, 0.0
    %v3211 = vadd.f32 %v3209, %v3210
    %v3212 = vrot.slane %v3211, 4
    %v3213 = vadd.f32 %v3211, %v3212
    %v3214 = vrot.slane %v3213, 2
    %v3215 = vadd.f32 %v3213, %v3214
    %v3216 = vrot.slane %v3215, 1
    %v3217 = vadd.f32 %v3215, %v3216
    %v3218 = vrcp.pop 18.0
    %v3219 = vmul.f32 %v3217, %v3218
    %v3220 = vsub.f32 %v3206, %v3219
    %v3221 = vsub.f32 %v3207, %v3219
    %v3222 = vsub.f32 %v3208, %v3219
    %v3223 = vmul.f32 %v3220, %v3220
    %v3224 = vmul.f32 %v3221, %v3221
    %v3225 = vmul.f32 %v3222, %v3222
    %v3226 = vadd.f32 %v3223, %v3224
    %v3227 = vsel %vm350, %v3225, 0.0
    %v3228 = vadd.f32 %v3226, %v3227
    %v3229 = vrot.slane %v3228, 4
    %v3230 = vadd.f32 %v3228, %v3229
    %v3231 = vrot.slane %v3230, 2
    %v3232 = vadd.f32 %v3230, %v3231
    %v3233 = vrot.slane %v3232, 1
    %v3234 = vadd.f32 %v3232, %v3233
    %v3235 = vmul.f32 %v3234, %v3218
    %v3236 = vadd.f32 %v3235, 1e-05
    %v3237 = vrsqrt.pop %v3236
    %v3238 = vmul.f32 %v3220, %v3237
    %v3239 = vmul.f32 %v3221, %v3237
    %v3240 = vmul.f32 %v3222, %v3237
    %s3241 = scalar_lea.vmem [#allocation7], 3
    %v3242 = vld [vmem:[%s3241] sm:$0x1]
    %v3244 = vlaneseq
    %v3245 = vshrl.u32 %v3244, 7
    %v3246 = vsub.s32 0, %v3245
    %v3247 = vrot.slane %v3242, %v3246
    %v3249 = vmul.f32 %v3238, %v3247
    %v3250 = vmul.f32 %v3239, %v3247
    %v3251 = vmul.f32 %v3240, %v3247
    %s3252 = scalar_lea.vmem [#allocation9], 3
    %v3253 = vld [vmem:[%s3252] sm:$0x1]
    %v3255 = vlaneseq
    %v3256 = vshrl.u32 %v3255, 7
    %v3257 = vsub.s32 0, %v3256
    %v3258 = vrot.slane %v3253, %v3257
    %v3260 = vadd.f32 %v3249, %v3258
    %v3261 = vadd.f32 %v3250, %v3258
    %v3262 = vadd.f32 %v3251, %v3258
    %3263 = vmatprep.subr.mxu0 0.0
    %3264 = vmatpush1.msra.mxu0 %v408
    %3265 = vmatprep.subr.mxu0 0.0
    %3266 = vmatpush1.msra.mxu0 %v409
    %3267 = vmatprep.subr.mxu0 0.0
    %3268 = vmatpush1.msra.mxu0 %v410
    %3269 = vmatprep.subr.mxu0 0.0
    %3270 = vmatpush1.msra.mxu0 %v411
    %3271 = vmatprep.subr.mxu0 0.0
    %3272 = vmatpush1.msra.mxu0 %v412
    %3273 = vmatprep.subr.mxu0 0.0
    %3274 = vmatpush1.msra.mxu0 %v413
    %3275 = vmatprep.subr.mxu0 0.0
    %3276 = vmatpush1.msra.mxu0 %v414
    %3277 = vmatprep.subr.mxu0 0.0
    %3278 = vmatpush1.msra.mxu0 %v415
    %3279 = vmatprep.subr.mxu0 0.0
    %3280 = vmatpush1.msra.mxu0 %v416
    %3281 = vmatprep.subr.mxu0 0.0
    %3282 = vmatpush1.msra.mxu0 %v417
    %3283 = vmatprep.subr.mxu0 0.0
    %3284 = vmatpush1.msra.mxu0 %v418
    %3285 = vmatprep.subr.mxu0 0.0
    %3286 = vmatpush1.msra.mxu0 %v419
    %3287 = vmatprep.subr.mxu0 0.0
    %3288 = vmatpush1.msra.mxu0 %v420
    %3289 = vmatprep.subr.mxu0 0.0
    %3290 = vmatpush1.msra.mxu0 %v421
    %3291 = vmatprep.subr.mxu0 0.0
    %3292 = vmatpush1.msra.mxu0 %v422
    %3293 = vmatprep.subr.mxu0 0.0
    %3294 = vmatpush1.msra.mxu0 %v423
    %3295 = vmatprep.subr.mxu0 0.0
    %3296 = vmatpush1.msra.mxu0 0.0
    %3297 = vmatprep.subr.mxu0 0.0
    %3298 = vmatpush1.msra.mxu0 0.0
    %3299 = vmatprep.subr.mxu0 0.0
    %3300 = vmatpush1.msra.mxu0 0.0
    %3301 = vmatprep.subr.mxu0 0.0
    %3302 = vmatpush1.msra.mxu0 0.0
    %3303 = vmatprep.subr.mxu0 0.0
    %3304 = vmatpush1.msra.mxu0 0.0
    %3305 = vmatprep.subr.mxu0 0.0
    %3306 = vmatpush1.msra.mxu0 0.0
    %3307 = vmatprep.subr.mxu0 0.0
    %3308 = vmatpush1.msra.mxu0 0.0
    %3309 = vmatprep.subr.mxu0 0.0
    %3310 = vmatpush1.msra.mxu0 0.0
    %3311 = vmatprep.subr.mxu0 0.0
    %3312 = vmatpush1.msra.mxu0 0.0
    %3313 = vmatprep.subr.mxu0 0.0
    %3314 = vmatpush1.msra.mxu0 0.0
    %3315 = vmatprep.subr.mxu0 0.0
    %3316 = vmatpush1.msra.mxu0 0.0
    %3317 = vmatprep.subr.mxu0 0.0
    %3318 = vmatpush1.msra.mxu0 0.0
    %3319 = vmatprep.subr.mxu0 0.0
    %3320 = vmatpush1.msra.mxu0 0.0
    %3321 = vmatprep.subr.mxu0 0.0
    %3322 = vmatpush1.msra.mxu0 0.0
    %3323 = vmatprep.subr.mxu0 0.0
    %3324 = vmatpush1.msra.mxu0 0.0
    %3325 = vmatprep.subr.mxu0 0.0
    %3326 = vmatpush1.msra.mxu0 0.0
    %3327 = vmatprep.mubr.f32.mxu0 0.0
    %3328 = vmatmul.mubr.f32.gmra.mrb[0].mxu0 %v3206
    %v3329 = vpop.f32.mrb[0].mxu0
    %v3330 = vadd.f32 0.0, %v3329
    %v3331 = vpop.f32.mrb[0].mxu0
    %3332 = vmatprep.mubr.f32.mxu0 0.0
    %3333 = vmatmul.mubr.f32.gmra.mrb[0].mxu0 %v3207
    %v3334 = vpop.f32.mrb[0].mxu0
    %v3335 = vadd.f32 0.0, %v3334
    %v3336 = vpop.f32.mrb[0].mxu0
    %3337 = vmatprep.mubr.f32.mxu0 0.0
    %3338 = vmatmul.mubr.f32.gmra.mrb[0].mxu0 %v3208
    %v3339 = vpop.f32.mrb[0].mxu0
    %v3340 = vadd.f32 0.0, %v3339
    %v3341 = vpop.f32.mrb[0].mxu0
    %3342 = vdwg.mxu0
    %v3343 = vmul.f32 %v3330, 0.125
    %v3344 = vmul.f32 %v3335, 0.125
    %v3345 = vmul.f32 %v3340, 0.125
    %v3346 = vsub.f32 %v3206, %v3343
    %v3347 = vsub.f32 %v3207, %v3344
    %v3348 = vsub.f32 %v3208, %v3345
    %v3349 = vmul.f32 %v3346, %v3346
    %v3350 = vmul.f32 %v3347, %v3347
    %v3351 = vmul.f32 %v3348, %v3348
    %3352 = vmatprep.subr.mxu0 0.0
    %3353 = vmatpush1.msra.mxu0 %v408
    %3354 = vmatprep.subr.mxu0 0.0
    %3355 = vmatpush1.msra.mxu0 %v409
    %3356 = vmatprep.subr.mxu0 0.0
    %3357 = vmatpush1.msra.mxu0 %v410
    %3358 = vmatprep.subr.mxu0 0.0
    %3359 = vmatpush1.msra.mxu0 %v411
    %3360 = vmatprep.subr.mxu0 0.0
    %3361 = vmatpush1.msra.mxu0 %v412
    %3362 = vmatprep.subr.mxu0 0.0
    %3363 = vmatpush1.msra.mxu0 %v413
    %3364 = vmatprep.subr.mxu0 0.0
    %3365 = vmatpush1.msra.mxu0 %v414
    %3366 = vmatprep.subr.mxu0 0.0
    %3367 = vmatpush1.msra.mxu0 %v415
    %3368 = vmatprep.subr.mxu0 0.0
    %3369 = vmatpush1.msra.mxu0 %v416
    %3370 = vmatprep.subr.mxu0 0.0
    %3371 = vmatpush1.msra.mxu0 %v417
    %3372 = vmatprep.subr.mxu0 0.0
    %3373 = vmatpush1.msra.mxu0 %v418
    %3374 = vmatprep.subr.mxu0 0.0
    %3375 = vmatpush1.msra.mxu0 %v419
    %3376 = vmatprep.subr.mxu0 0.0
    %3377 = vmatpush1.msra.mxu0 %v420
    %3378 = vmatprep.subr.mxu0 0.0
    %3379 = vmatpush1.msra.mxu0 %v421
    %3380 = vmatprep.subr.mxu0 0.0
    %3381 = vmatpush1.msra.mxu0 %v422
    %3382 = vmatprep.subr.mxu0 0.0
    %3383 = vmatpush1.msra.mxu0 %v423
    %3384 = vmatprep.subr.mxu0 0.0
    %3385 = vmatpush1.msra.mxu0 0.0
    %3386 = vmatprep.subr.mxu0 0.0
    %3387 = vmatpush1.msra.mxu0 0.0
    %3388 = vmatprep.subr.mxu0 0.0
    %3389 = vmatpush1.msra.mxu0 0.0
    %3390 = vmatprep.subr.mxu0 0.0
    %3391 = vmatpush1.msra.mxu0 0.0
    %3392 = vmatprep.subr.mxu0 0.0
    %3393 = vmatpush1.msra.mxu0 0.0
    %3394 = vmatprep.subr.mxu0 0.0
    %3395 = vmatpush1.msra.mxu0 0.0
    %3396 = vmatprep.subr.mxu0 0.0
    %3397 = vmatpush1.msra.mxu0 0.0
    %3398 = vmatprep.subr.mxu0 0.0
    %3399 = vmatpush1.msra.mxu0 0.0
    %3400 = vmatprep.subr.mxu0 0.0
    %3401 = vmatpush1.msra.mxu0 0.0
    %3402 = vmatprep.subr.mxu0 0.0
    %3403 = vmatpush1.msra.mxu0 0.0
    %3404 = vmatprep.subr.mxu0 0.0
    %3405 = vmatpush1.msra.mxu0 0.0
    %3406 = vmatprep.subr.mxu0 0.0
    %3407 = vmatpush1.msra.mxu0 0.0
    %3408 = vmatprep.subr.mxu0 0.0
    %3409 = vmatpush1.msra.mxu0 0.0
    %3410 = vmatprep.subr.mxu0 0.0
    %3411 = vmatpush1.msra.mxu0 0.0
    %3412 = vmatprep.subr.mxu0 0.0
    %3413 = vmatpush1.msra.mxu0 0.0
    %3414 = vmatprep.subr.mxu0 0.0
    %3415 = vmatpush1.msra.mxu0 0.0
    %3416 = vmatprep.mubr.f32.mxu0 0.0
    %3417 = vmatmul.mubr.f32.gmra.mrb[0].mxu0 %v3349
    %v3418 = vpop.f32.mrb[0].mxu0
    %v3419 = vadd.f32 0.0, %v3418
    %v3420 = vpop.f32.mrb[0].mxu0
    %3421 = vmatprep.mubr.f32.mxu0 0.0
    %3422 = vmatmul.mubr.f32.gmra.mrb[0].mxu0 %v3350
    %v3423 = vpop.f32.mrb[0].mxu0
    %v3424 = vadd.f32 0.0, %v3423
    %v3425 = vpop.f32.mrb[0].mxu0
    %3426 = vmatprep.mubr.f32.mxu0 0.0
    %3427 = vmatmul.mubr.f32.gmra.mrb[0].mxu0 %v3351
    %v3428 = vpop.f32.mrb[0].mxu0
    %v3429 = vadd.f32 0.0, %v3428
    %v3430 = vpop.f32.mrb[0].mxu0
    %3431 = vdwg.mxu0
    %v3432 = vmul.f32 %v3419, 0.14285715
    %v3433 = vmul.f32 %v3424, 0.14285715
    %v3434 = vmul.f32 %v3429, 0.14285715
    %v3435 = vadd.f32 %v3432, 1e-05
    %v3436 = vadd.f32 %v3433, 1e-05
    %v3437 = vadd.f32 %v3434, 1e-05
    %v3438 = vrsqrt.pop %v3435
    %v3439 = vrsqrt.pop %v3436
    %v3440 = vrsqrt.pop %v3437
    %v3441 = vmul.f32 %v3346, %v3438
    %v3442 = vmul.f32 %v3347, %v3439
    %v3443 = vmul.f32 %v3348, %v3440
    %s3444 = scalar_lea.vmem [#allocation10], 3
    %v3445 = vld [vmem:[%s3444] sm:$0x1]
    %v3447 = vlaneseq
    %v3448 = vshrl.u32 %v3447, 7
    %v3449 = vsub.s32 0, %v3448
    %v3450 = vrot.slane %v3445, %v3449
    %v3452 = vmul.f32 %v3441, %v3450
    %v3453 = vmul.f32 %v3442, %v3450
    %v3454 = vmul.f32 %v3443, %v3450
    %s3455 = scalar_lea.vmem [#allocation12], 3
    %v3456 = vld [vmem:[%s3455] sm:$0x1]
    %v3458 = vlaneseq
    %v3459 = vshrl.u32 %v3458, 7
    %v3460 = vsub.s32 0, %v3459
    %v3461 = vrot.slane %v3456, %v3460
    %v3463 = vadd.f32 %v3452, %v3461
    %v3464 = vadd.f32 %v3453, %v3461
    %v3465 = vadd.f32 %v3454, %v3461
    %v3467 = vrot.slane %v3207, 2
    %v3469 = vsel %vm647, %v3206, %v3467
    %v3471 = vrot.slane %v3261, 2
    %v3473 = vsel %vm647, %v3260, %v3471
    %v3475 = vrot.slane %v3464, 2
    %v3477 = vsel %vm647, %v3463, %v3475
    %v3479 = vrot.slane %v3206, 2
    %v3480 = vsel %vm684, %v3479, %v3467
    %v3483 = vrot.slane %v3207, 4
    %v3484 = vrot.slane %v3208, 4
    %v3485 = vsel %vm655, %v3483, %v3484
    %v3488 = vsel %vm647, %v3480, %v3483
    %v3490 = vrot.slane %v3260, 2
    %v3491 = vsel %vm684, %v3490, %v3471
    %v3494 = vrot.slane %v3261, 4
    %v3495 = vrot.slane %v3262, 4
    %v3496 = vsel %vm655, %v3494, %v3495
    %v3499 = vsel %vm647, %v3491, %v3494
    %v3501 = vrot.slane %v3463, 2
    %v3502 = vsel %vm684, %v3501, %v3475
    %v3505 = vrot.slane %v3464, 4
    %v3506 = vrot.slane %v3465, 4
    %v3507 = vsel %vm655, %v3505, %v3506
    %v3510 = vsel %vm647, %v3502, %v3505
    %s3511 = scalar_lea.vmem [#allocation13], 4608
    %v3512 = vld [vmem:[%s3511] sm:$0xff]
    %v3513 = vld [vmem:[%s3511 + $0x8] sm:$0xff]
    %v3514 = vld [vmem:[%s3511 + $0x10] sm:$0xff]
    %v3515 = vld [vmem:[%s3511 + $0x18] sm:$0xff]
    %v3516 = vld [vmem:[%s3511 + $0x20] sm:$0xff]
    %v3517 = vld [vmem:[%s3511 + $0x28] sm:$0xff]
    %v3518 = vld [vmem:[%s3511 + $0x30] sm:$0xff]
    %v3519 = vld [vmem:[%s3511 + $0x38] sm:$0xff]
    %v3520 = vld [vmem:[%s3511 + $0x40] sm:$0xff]
    %v3521 = vld [vmem:[%s3511 + $0x48] sm:$0xff]
    %v3522 = vld [vmem:[%s3511 + $0x50] sm:$0xff]
    %v3523 = vld [vmem:[%s3511 + $0x58] sm:$0xff]
    %v3524 = vld [vmem:[%s3511 + $0x60] sm:$0xff]
    %v3525 = vld [vmem:[%s3511 + $0x68] sm:$0xff]
    %v3526 = vld [vmem:[%s3511 + $0x70] sm:$0xff]
    %v3527 = vld [vmem:[%s3511 + $0x78] sm:$0xff]
    %v3528 = vld [vmem:[%s3511 + $0x80] sm:$0xff]
    %v3529 = vld [vmem:[%s3511 + $0x88] sm:$0xff]
    %v3530 = vld [vmem:[%s3511 + $0x90] sm:$0xff]
    %v3531 = vld [vmem:[%s3511 + $0x98] sm:$0xff]
    %v3532 = vld [vmem:[%s3511 + $0xa0] sm:$0xff]
    %v3533 = vld [vmem:[%s3511 + $0xa8] sm:$0xff]
    %v3534 = vld [vmem:[%s3511 + $0xb0] sm:$0xff]
    %v3535 = vld [vmem:[%s3511 + $0xb8] sm:$0xff]
    %v3536 = vld [vmem:[%s3511 + $0xc0] sm:$0xff]
    %v3537 = vld [vmem:[%s3511 + $0xc8] sm:$0xff]
    %v3538 = vld [vmem:[%s3511 + $0xd0] sm:$0xff]
    %v3539 = vld [vmem:[%s3511 + $0xd8] sm:$0xff]
    %v3540 = vld [vmem:[%s3511 + $0xe0] sm:$0xff]
    %v3541 = vld [vmem:[%s3511 + $0xe8] sm:$0xff]
    %v3542 = vld [vmem:[%s3511 + $0xf0] sm:$0xff]
    %v3543 = vld [vmem:[%s3511 + $0xf8] sm:$0xff]
    %v3544 = vld [vmem:[%s3511 + $0x100] sm:$0xff]
    %v3545 = vld [vmem:[%s3511 + $0x108] sm:$0xff]
    %v3546 = vld [vmem:[%s3511 + $0x110] sm:$0xff]
    %v3547 = vld [vmem:[%s3511 + $0x118] sm:$0xff]
    %v3548 = vld [vmem:[%s3511 + $0x120] sm:$0xff]
    %v3549 = vld [vmem:[%s3511 + $0x128] sm:$0xff]
    %v3550 = vld [vmem:[%s3511 + $0x130] sm:$0xff]
    %v3551 = vld [vmem:[%s3511 + $0x138] sm:$0xff]
    %v3552 = vld [vmem:[%s3511 + $0x140] sm:$0xff]
    %v3553 = vld [vmem:[%s3511 + $0x148] sm:$0xff]
    %v3554 = vld [vmem:[%s3511 + $0x150] sm:$0xff]
    %v3555 = vld [vmem:[%s3511 + $0x158] sm:$0xff]
    %v3556 = vld [vmem:[%s3511 + $0x160] sm:$0xff]
    %v3557 = vld [vmem:[%s3511 + $0x168] sm:$0xff]
    %v3558 = vld [vmem:[%s3511 + $0x170] sm:$0xff]
    %v3559 = vld [vmem:[%s3511 + $0x178] sm:$0xff]
    %v3560 = vld [vmem:[%s3511 + $0x180] sm:$0xff]
    %v3561 = vld [vmem:[%s3511 + $0x188] sm:$0xff]
    %v3562 = vld [vmem:[%s3511 + $0x190] sm:$0xff]
    %v3563 = vld [vmem:[%s3511 + $0x198] sm:$0xff]
    %v3564 = vld [vmem:[%s3511 + $0x1a0] sm:$0xff]
    %v3565 = vld [vmem:[%s3511 + $0x1a8] sm:$0xff]
    %v3566 = vld [vmem:[%s3511 + $0x1b0] sm:$0xff]
    %v3567 = vld [vmem:[%s3511 + $0x1b8] sm:$0xff]
    %v3568 = vld [vmem:[%s3511 + $0x1c0] sm:$0xff]
    %v3569 = vld [vmem:[%s3511 + $0x1c8] sm:$0xff]
    %v3570 = vld [vmem:[%s3511 + $0x1d0] sm:$0xff]
    %v3571 = vld [vmem:[%s3511 + $0x1d8] sm:$0xff]
    %v3572 = vld [vmem:[%s3511 + $0x1e0] sm:$0xff]
    %v3573 = vld [vmem:[%s3511 + $0x1e8] sm:$0xff]
    %v3574 = vld [vmem:[%s3511 + $0x1f0] sm:$0xff]
    %v3575 = vld [vmem:[%s3511 + $0x1f8] sm:$0xff]
    %v3576 = vld [vmem:[%s3511 + $0x200] sm:$0xff]
    %v3577 = vld [vmem:[%s3511 + $0x208] sm:$0xff]
    %v3578 = vld [vmem:[%s3511 + $0x210] sm:$0xff]
    %v3579 = vld [vmem:[%s3511 + $0x218] sm:$0xff]
    %v3580 = vld [vmem:[%s3511 + $0x220] sm:$0xff]
    %v3581 = vld [vmem:[%s3511 + $0x228] sm:$0xff]
    %v3582 = vld [vmem:[%s3511 + $0x230] sm:$0xff]
    %v3583 = vld [vmem:[%s3511 + $0x238] sm:$0xff]
    %v3584 = vld [vmem:[%s3511 + $0x240] sm:$0xff]
    %v3585 = vld [vmem:[%s3511 + $0x248] sm:$0xff]
    %v3586 = vld [vmem:[%s3511 + $0x250] sm:$0xff]
    %v3587 = vld [vmem:[%s3511 + $0x258] sm:$0xff]
    %v3588 = vld [vmem:[%s3511 + $0x260] sm:$0xff]
    %v3589 = vld [vmem:[%s3511 + $0x268] sm:$0xff]
    %v3590 = vld [vmem:[%s3511 + $0x270] sm:$0xff]
    %v3591 = vld [vmem:[%s3511 + $0x278] sm:$0xff]
    %v3592 = vld [vmem:[%s3511 + $0x280] sm:$0xff]
    %v3593 = vld [vmem:[%s3511 + $0x288] sm:$0xff]
    %v3594 = vld [vmem:[%s3511 + $0x290] sm:$0xff]
    %v3595 = vld [vmem:[%s3511 + $0x298] sm:$0xff]
    %v3596 = vld [vmem:[%s3511 + $0x2a0] sm:$0xff]
    %v3597 = vld [vmem:[%s3511 + $0x2a8] sm:$0xff]
    %v3598 = vld [vmem:[%s3511 + $0x2b0] sm:$0xff]
    %v3599 = vld [vmem:[%s3511 + $0x2b8] sm:$0xff]
    %v3600 = vld [vmem:[%s3511 + $0x2c0] sm:$0xff]
    %v3601 = vld [vmem:[%s3511 + $0x2c8] sm:$0xff]
    %v3602 = vld [vmem:[%s3511 + $0x2d0] sm:$0xff]
    %v3603 = vld [vmem:[%s3511 + $0x2d8] sm:$0xff]
    %v3604 = vld [vmem:[%s3511 + $0x2e0] sm:$0xff]
    %v3605 = vld [vmem:[%s3511 + $0x2e8] sm:$0xff]
    %v3606 = vld [vmem:[%s3511 + $0x2f0] sm:$0xff]
    %v3607 = vld [vmem:[%s3511 + $0x2f8] sm:$0xff]
    %v3608 = vld [vmem:[%s3511 + $0x300] sm:$0xff]
    %v3609 = vld [vmem:[%s3511 + $0x308] sm:$0xff]
    %v3610 = vld [vmem:[%s3511 + $0x310] sm:$0xff]
    %v3611 = vld [vmem:[%s3511 + $0x318] sm:$0xff]
    %v3612 = vld [vmem:[%s3511 + $0x320] sm:$0xff]
    %v3613 = vld [vmem:[%s3511 + $0x328] sm:$0xff]
    %v3614 = vld [vmem:[%s3511 + $0x330] sm:$0xff]
    %v3615 = vld [vmem:[%s3511 + $0x338] sm:$0xff]
    %v3616 = vld [vmem:[%s3511 + $0x340] sm:$0xff]
    %v3617 = vld [vmem:[%s3511 + $0x348] sm:$0xff]
    %v3618 = vld [vmem:[%s3511 + $0x350] sm:$0xff]
    %v3619 = vld [vmem:[%s3511 + $0x358] sm:$0xff]
    %v3620 = vld [vmem:[%s3511 + $0x360] sm:$0xff]
    %v3621 = vld [vmem:[%s3511 + $0x368] sm:$0xff]
    %v3622 = vld [vmem:[%s3511 + $0x370] sm:$0xff]
    %v3623 = vld [vmem:[%s3511 + $0x378] sm:$0xff]
    %v3624 = vld [vmem:[%s3511 + $0x380] sm:$0xff]
    %v3625 = vld [vmem:[%s3511 + $0x388] sm:$0xff]
    %v3626 = vld [vmem:[%s3511 + $0x390] sm:$0xff]
    %v3627 = vld [vmem:[%s3511 + $0x398] sm:$0xff]
    %v3628 = vld [vmem:[%s3511 + $0x3a0] sm:$0xff]
    %v3629 = vld [vmem:[%s3511 + $0x3a8] sm:$0xff]
    %v3630 = vld [vmem:[%s3511 + $0x3b0] sm:$0xff]
    %v3631 = vld [vmem:[%s3511 + $0x3b8] sm:$0xff]
    %v3632 = vld [vmem:[%s3511 + $0x3c0] sm:$0xff]
    %v3633 = vld [vmem:[%s3511 + $0x3c8] sm:$0xff]
    %v3634 = vld [vmem:[%s3511 + $0x3d0] sm:$0xff]
    %v3635 = vld [vmem:[%s3511 + $0x3d8] sm:$0xff]
    %v3636 = vld [vmem:[%s3511 + $0x3e0] sm:$0xff]
    %v3637 = vld [vmem:[%s3511 + $0x3e8] sm:$0xff]
    %v3638 = vld [vmem:[%s3511 + $0x3f0] sm:$0xff]
    %v3639 = vld [vmem:[%s3511 + $0x3f8] sm:$0xff]
    %v3640 = vld [vmem:[%s3511 + $0x400] sm:$0xff]
    %v3641 = vld [vmem:[%s3511 + $0x408] sm:$0xff]
    %v3642 = vld [vmem:[%s3511 + $0x410] sm:$0xff]
    %v3643 = vld [vmem:[%s3511 + $0x418] sm:$0xff]
    %v3644 = vld [vmem:[%s3511 + $0x420] sm:$0xff]
    %v3645 = vld [vmem:[%s3511 + $0x428] sm:$0xff]
    %v3646 = vld [vmem:[%s3511 + $0x430] sm:$0xff]
    %v3647 = vld [vmem:[%s3511 + $0x438] sm:$0xff]
    %v3648 = vld [vmem:[%s3511 + $0x440] sm:$0xff]
    %v3649 = vld [vmem:[%s3511 + $0x448] sm:$0xff]
    %v3650 = vld [vmem:[%s3511 + $0x450] sm:$0xff]
    %v3651 = vld [vmem:[%s3511 + $0x458] sm:$0xff]
    %v3652 = vld [vmem:[%s3511 + $0x460] sm:$0xff]
    %v3653 = vld [vmem:[%s3511 + $0x468] sm:$0xff]
    %v3654 = vld [vmem:[%s3511 + $0x470] sm:$0xff]
    %v3655 = vld [vmem:[%s3511 + $0x478] sm:$0xff]
    %v3656 = vld [vmem:[%s3511 + $0x480] sm:$0xff]
    %v3657 = vld [vmem:[%s3511 + $0x488] sm:$0xff]
    %v3658 = vld [vmem:[%s3511 + $0x490] sm:$0xff]
    %v3659 = vld [vmem:[%s3511 + $0x498] sm:$0xff]
    %v3660 = vld [vmem:[%s3511 + $0x4a0] sm:$0xff]
    %v3661 = vld [vmem:[%s3511 + $0x4a8] sm:$0xff]
    %v3662 = vld [vmem:[%s3511 + $0x4b0] sm:$0xff]
    %v3663 = vld [vmem:[%s3511 + $0x4b8] sm:$0xff]
    %v3664 = vld [vmem:[%s3511 + $0x4c0] sm:$0xff]
    %v3665 = vld [vmem:[%s3511 + $0x4c8] sm:$0xff]
    %v3666 = vld [vmem:[%s3511 + $0x4d0] sm:$0xff]
    %v3667 = vld [vmem:[%s3511 + $0x4d8] sm:$0xff]
    %v3668 = vld [vmem:[%s3511 + $0x4e0] sm:$0xff]
    %v3669 = vld [vmem:[%s3511 + $0x4e8] sm:$0xff]
    %v3670 = vld [vmem:[%s3511 + $0x4f0] sm:$0xff]
    %v3671 = vld [vmem:[%s3511 + $0x4f8] sm:$0xff]
    %v3672 = vld [vmem:[%s3511 + $0x500] sm:$0xff]
    %v3673 = vld [vmem:[%s3511 + $0x508] sm:$0xff]
    %v3674 = vld [vmem:[%s3511 + $0x510] sm:$0xff]
    %v3675 = vld [vmem:[%s3511 + $0x518] sm:$0xff]
    %v3676 = vld [vmem:[%s3511 + $0x520] sm:$0xff]
    %v3677 = vld [vmem:[%s3511 + $0x528] sm:$0xff]
    %v3678 = vld [vmem:[%s3511 + $0x530] sm:$0xff]
    %v3679 = vld [vmem:[%s3511 + $0x538] sm:$0xff]
    %v3680 = vld [vmem:[%s3511 + $0x540] sm:$0xff]
    %v3681 = vld [vmem:[%s3511 + $0x548] sm:$0xff]
    %v3682 = vld [vmem:[%s3511 + $0x550] sm:$0xff]
    %v3683 = vld [vmem:[%s3511 + $0x558] sm:$0xff]
    %v3684 = vld [vmem:[%s3511 + $0x560] sm:$0xff]
    %v3685 = vld [vmem:[%s3511 + $0x568] sm:$0xff]
    %v3686 = vld [vmem:[%s3511 + $0x570] sm:$0xff]
    %v3687 = vld [vmem:[%s3511 + $0x578] sm:$0xff]
    %v3688 = vld [vmem:[%s3511 + $0x580] sm:$0xff]
    %v3689 = vld [vmem:[%s3511 + $0x588] sm:$0xff]
    %v3690 = vld [vmem:[%s3511 + $0x590] sm:$0xff]
    %v3691 = vld [vmem:[%s3511 + $0x598] sm:$0xff]
    %v3692 = vld [vmem:[%s3511 + $0x5a0] sm:$0xff]
    %v3693 = vld [vmem:[%s3511 + $0x5a8] sm:$0xff]
    %v3694 = vld [vmem:[%s3511 + $0x5b0] sm:$0xff]
    %v3695 = vld [vmem:[%s3511 + $0x5b8] sm:$0xff]
    %v3696 = vld [vmem:[%s3511 + $0x5c0] sm:$0xff]
    %v3697 = vld [vmem:[%s3511 + $0x5c8] sm:$0xff]
    %v3698 = vld [vmem:[%s3511 + $0x5d0] sm:$0xff]
    %v3699 = vld [vmem:[%s3511 + $0x5d8] sm:$0xff]
    %v3700 = vld [vmem:[%s3511 + $0x5e0] sm:$0xff]
    %v3701 = vld [vmem:[%s3511 + $0x5e8] sm:$0xff]
    %v3702 = vld [vmem:[%s3511 + $0x5f0] sm:$0xff]
    %v3703 = vld [vmem:[%s3511 + $0x5f8] sm:$0xff]
    %s3704 = scalar_lea.vmem [#allocation15], 6
    %v3705 = vld [vmem:[%s3704] sm:$0x3]
    %v3707 = vlaneseq
    %v3708 = vshrl.u32 %v3707, 7
    %v3709 = vsub.s32 0, %v3708
    %v3710 = vrot.slane %v3705, %v3709
    %v3711 = vlaneseq
    %v3712 = vshrl.u32 %v3711, 7
    %v3713 = vsub.s32 1, %v3712
    %v3714 = vrot.slane %v3705, %v3713
    %3717 = vmatprep.subr.mxu0 %v3513
    %3718 = vmatpush1.msra.mxu0 %v3512
    %3719 = vmatprep.subr.mxu0 %v3515
    %3720 = vmatpush1.msra.mxu0 %v3514
    %3721 = vmatprep.subr.mxu0 %v3517
    %3722 = vmatpush1.msra.mxu0 %v3516
    %3723 = vmatprep.subr.mxu0 %v3519
    %3724 = vmatpush1.msra.mxu0 %v3518
    %3725 = vmatprep.subr.mxu0 %v3521
    %3726 = vmatpush1.msra.mxu0 %v3520
    %3727 = vmatprep.subr.mxu0 %v3523
    %3728 = vmatpush1.msra.mxu0 %v3522
    %3729 = vmatprep.subr.mxu0 %v3525
    %3730 = vmatpush1.msra.mxu0 %v3524
    %3731 = vmatprep.subr.mxu0 %v3527
    %3732 = vmatpush1.msra.mxu0 %v3526
    %3733 = vmatprep.subr.mxu0 %v3529
    %3734 = vmatpush1.msra.mxu0 %v3528
    %3735 = vmatprep.subr.mxu0 %v3531
    %3736 = vmatpush1.msra.mxu0 %v3530
    %3737 = vmatprep.subr.mxu0 %v3533
    %3738 = vmatpush1.msra.mxu0 %v3532
    %3739 = vmatprep.subr.mxu0 %v3535
    %3740 = vmatpush1.msra.mxu0 %v3534
    %3741 = vmatprep.subr.mxu0 %v3537
    %3742 = vmatpush1.msra.mxu0 %v3536
    %3743 = vmatprep.subr.mxu0 %v3539
    %3744 = vmatpush1.msra.mxu0 %v3538
    %3745 = vmatprep.subr.mxu0 %v3541
    %3746 = vmatpush1.msra.mxu0 %v3540
    %3747 = vmatprep.subr.mxu0 %v3543
    %3748 = vmatpush1.msra.mxu0 %v3542
    %3749 = vmatprep.subr.mxu0 %v3545
    %3750 = vmatpush1.msra.mxu0 %v3544
    %3751 = vmatprep.subr.mxu0 %v3547
    %3752 = vmatpush1.msra.mxu0 %v3546
    %3753 = vmatprep.subr.mxu0 %v3549
    %3754 = vmatpush1.msra.mxu0 %v3548
    %3755 = vmatprep.subr.mxu0 %v3551
    %3756 = vmatpush1.msra.mxu0 %v3550
    %3757 = vmatprep.subr.mxu0 %v3553
    %3758 = vmatpush1.msra.mxu0 %v3552
    %3759 = vmatprep.subr.mxu0 %v3555
    %3760 = vmatpush1.msra.mxu0 %v3554
    %3761 = vmatprep.subr.mxu0 %v3557
    %3762 = vmatpush1.msra.mxu0 %v3556
    %3763 = vmatprep.subr.mxu0 %v3559
    %3764 = vmatpush1.msra.mxu0 %v3558
    %3765 = vmatprep.subr.mxu0 %v3561
    %3766 = vmatpush1.msra.mxu0 %v3560
    %3767 = vmatprep.subr.mxu0 %v3563
    %3768 = vmatpush1.msra.mxu0 %v3562
    %3769 = vmatprep.subr.mxu0 %v3565
    %3770 = vmatpush1.msra.mxu0 %v3564
    %3771 = vmatprep.subr.mxu0 %v3567
    %3772 = vmatpush1.msra.mxu0 %v3566
    %3773 = vmatprep.subr.mxu0 %v3569
    %3774 = vmatpush1.msra.mxu0 %v3568
    %3775 = vmatprep.subr.mxu0 %v3571
    %3776 = vmatpush1.msra.mxu0 %v3570
    %3777 = vmatprep.subr.mxu0 %v3573
    %3778 = vmatpush1.msra.mxu0 %v3572
    %3779 = vmatprep.subr.mxu0 %v3575
    %3780 = vmatpush1.msra.mxu0 %v3574
    %3781 = vmatprep.mubr.f32.mxu0 %v3473
    %3782 = vmatmul.mubr.f32.gmra.mrb[0].mxu0 %v3469
    %v3783 = vpop.f32.mrb[0].mxu0
    %v3784 = vadd.f32 %v3710, %v3783
    %v3785 = vpop.f32.mrb[0].mxu0
    %v3786 = vadd.f32 %v3714, %v3785
    %3787 = vmatprep.mubr.f32.mxu0 %v3471
    %3788 = vmatmul.mubr.f32.gmra.mrb[0].mxu0 %v3467
    %v3789 = vpop.f32.mrb[0].mxu0
    %v3790 = vadd.f32 %v3710, %v3789
    %v3791 = vpop.f32.mrb[0].mxu0
    %v3792 = vadd.f32 %v3714, %v3791
    %3793 = vdwg.mxu0
    %3794 = vmatprep.subr.mxu0 %v3577
    %3795 = vmatpush1.msra.mxu0 %v3576
    %3796 = vmatprep.subr.mxu0 %v3579
    %3797 = vmatpush1.msra.mxu0 %v3578
    %3798 = vmatprep.subr.mxu0 %v3581
    %3799 = vmatpush1.msra.mxu0 %v3580
    %3800 = vmatprep.subr.mxu0 %v3583
    %3801 = vmatpush1.msra.mxu0 %v3582
    %3802 = vmatprep.subr.mxu0 %v3585
    %3803 = vmatpush1.msra.mxu0 %v3584
    %3804 = vmatprep.subr.mxu0 %v3587
    %3805 = vmatpush1.msra.mxu0 %v3586
    %3806 = vmatprep.subr.mxu0 %v3589
    %3807 = vmatpush1.msra.mxu0 %v3588
    %3808 = vmatprep.subr.mxu0 %v3591
    %3809 = vmatpush1.msra.mxu0 %v3590
    %3810 = vmatprep.subr.mxu0 %v3593
    %3811 = vmatpush1.msra.mxu0 %v3592
    %3812 = vmatprep.subr.mxu0 %v3595
    %3813 = vmatpush1.msra.mxu0 %v3594
    %3814 = vmatprep.subr.mxu0 %v3597
    %3815 = vmatpush1.msra.mxu0 %v3596
    %3816 = vmatprep.subr.mxu0 %v3599
    %3817 = vmatpush1.msra.mxu0 %v3598
    %3818 = vmatprep.subr.mxu0 %v3601
    %3819 = vmatpush1.msra.mxu0 %v3600
    %3820 = vmatprep.subr.mxu0 %v3603
    %3821 = vmatpush1.msra.mxu0 %v3602
    %3822 = vmatprep.subr.mxu0 %v3605
    %3823 = vmatpush1.msra.mxu0 %v3604
    %3824 = vmatprep.subr.mxu0 %v3607
    %3825 = vmatpush1.msra.mxu0 %v3606
    %3826 = vmatprep.subr.mxu0 %v3609
    %3827 = vmatpush1.msra.mxu0 %v3608
    %3828 = vmatprep.subr.mxu0 %v3611
    %3829 = vmatpush1.msra.mxu0 %v3610
    %3830 = vmatprep.subr.mxu0 %v3613
    %3831 = vmatpush1.msra.mxu0 %v3612
    %3832 = vmatprep.subr.mxu0 %v3615
    %3833 = vmatpush1.msra.mxu0 %v3614
    %3834 = vmatprep.subr.mxu0 %v3617
    %3835 = vmatpush1.msra.mxu0 %v3616
    %3836 = vmatprep.subr.mxu0 %v3619
    %3837 = vmatpush1.msra.mxu0 %v3618
    %3838 = vmatprep.subr.mxu0 %v3621
    %3839 = vmatpush1.msra.mxu0 %v3620
    %3840 = vmatprep.subr.mxu0 %v3623
    %3841 = vmatpush1.msra.mxu0 %v3622
    %3842 = vmatprep.subr.mxu0 %v3625
    %3843 = vmatpush1.msra.mxu0 %v3624
    %3844 = vmatprep.subr.mxu0 %v3627
    %3845 = vmatpush1.msra.mxu0 %v3626
    %3846 = vmatprep.subr.mxu0 %v3629
    %3847 = vmatpush1.msra.mxu0 %v3628
    %3848 = vmatprep.subr.mxu0 %v3631
    %3849 = vmatpush1.msra.mxu0 %v3630
    %3850 = vmatprep.subr.mxu0 %v3633
    %3851 = vmatpush1.msra.mxu0 %v3632
    %3852 = vmatprep.subr.mxu0 %v3635
    %3853 = vmatpush1.msra.mxu0 %v3634
    %3854 = vmatprep.subr.mxu0 %v3637
    %3855 = vmatpush1.msra.mxu0 %v3636
    %3856 = vmatprep.subr.mxu0 %v3639
    %3857 = vmatpush1.msra.mxu0 %v3638
    %3858 = vmatprep.mubr.f32.mxu0 %v3488
    %3859 = vmatmul.mubr.f32.gmra.mrb[0].mxu0 %v3477
    %v3860 = vpop.f32.mrb[0].mxu0
    %v3861 = vadd.f32 %v3784, %v3860
    %v3862 = vpop.f32.mrb[0].mxu0
    %v3863 = vadd.f32 %v3786, %v3862
    %3864 = vmatprep.mubr.f32.mxu0 %v3485
    %3865 = vmatmul.mubr.f32.gmra.mrb[0].mxu0 %v3475
    %v3866 = vpop.f32.mrb[0].mxu0
    %v3867 = vadd.f32 %v3790, %v3866
    %v3868 = vpop.f32.mrb[0].mxu0
    %v3869 = vadd.f32 %v3792, %v3868
    %3870 = vdwg.mxu0
    %3871 = vmatprep.subr.mxu0 %v3641
    %3872 = vmatpush1.msra.mxu0 %v3640
    %3873 = vmatprep.subr.mxu0 %v3643
    %3874 = vmatpush1.msra.mxu0 %v3642
    %3875 = vmatprep.subr.mxu0 %v3645
    %3876 = vmatpush1.msra.mxu0 %v3644
    %3877 = vmatprep.subr.mxu0 %v3647
    %3878 = vmatpush1.msra.mxu0 %v3646
    %3879 = vmatprep.subr.mxu0 %v3649
    %3880 = vmatpush1.msra.mxu0 %v3648
    %3881 = vmatprep.subr.mxu0 %v3651
    %3882 = vmatpush1.msra.mxu0 %v3650
    %3883 = vmatprep.subr.mxu0 %v3653
    %3884 = vmatpush1.msra.mxu0 %v3652
    %3885 = vmatprep.subr.mxu0 %v3655
    %3886 = vmatpush1.msra.mxu0 %v3654
    %3887 = vmatprep.subr.mxu0 %v3657
    %3888 = vmatpush1.msra.mxu0 %v3656
    %3889 = vmatprep.subr.mxu0 %v3659
    %3890 = vmatpush1.msra.mxu0 %v3658
    %3891 = vmatprep.subr.mxu0 %v3661
    %3892 = vmatpush1.msra.mxu0 %v3660
    %3893 = vmatprep.subr.mxu0 %v3663
    %3894 = vmatpush1.msra.mxu0 %v3662
    %3895 = vmatprep.subr.mxu0 %v3665
    %3896 = vmatpush1.msra.mxu0 %v3664
    %3897 = vmatprep.subr.mxu0 %v3667
    %3898 = vmatpush1.msra.mxu0 %v3666
    %3899 = vmatprep.subr.mxu0 %v3669
    %3900 = vmatpush1.msra.mxu0 %v3668
    %3901 = vmatprep.subr.mxu0 %v3671
    %3902 = vmatpush1.msra.mxu0 %v3670
    %3903 = vmatprep.subr.mxu0 %v3673
    %3904 = vmatpush1.msra.mxu0 %v3672
    %3905 = vmatprep.subr.mxu0 %v3675
    %3906 = vmatpush1.msra.mxu0 %v3674
    %3907 = vmatprep.subr.mxu0 %v3677
    %3908 = vmatpush1.msra.mxu0 %v3676
    %3909 = vmatprep.subr.mxu0 %v3679
    %3910 = vmatpush1.msra.mxu0 %v3678
    %3911 = vmatprep.subr.mxu0 %v3681
    %3912 = vmatpush1.msra.mxu0 %v3680
    %3913 = vmatprep.subr.mxu0 %v3683
    %3914 = vmatpush1.msra.mxu0 %v3682
    %3915 = vmatprep.subr.mxu0 %v3685
    %3916 = vmatpush1.msra.mxu0 %v3684
    %3917 = vmatprep.subr.mxu0 %v3687
    %3918 = vmatpush1.msra.mxu0 %v3686
    %3919 = vmatprep.subr.mxu0 %v3689
    %3920 = vmatpush1.msra.mxu0 %v3688
    %3921 = vmatprep.subr.mxu0 %v3691
    %3922 = vmatpush1.msra.mxu0 %v3690
    %3923 = vmatprep.subr.mxu0 %v3693
    %3924 = vmatpush1.msra.mxu0 %v3692
    %3925 = vmatprep.subr.mxu0 %v3695
    %3926 = vmatpush1.msra.mxu0 %v3694
    %3927 = vmatprep.subr.mxu0 %v3697
    %3928 = vmatpush1.msra.mxu0 %v3696
    %3929 = vmatprep.subr.mxu0 %v3699
    %3930 = vmatpush1.msra.mxu0 %v3698
    %3931 = vmatprep.subr.mxu0 %v3701
    %3932 = vmatpush1.msra.mxu0 %v3700
    %3933 = vmatprep.subr.mxu0 %v3703
    %3934 = vmatpush1.msra.mxu0 %v3702
    %3935 = vmatprep.mubr.f32.mxu0 %v3510
    %3936 = vmatmul.mubr.f32.gmra.mrb[0].mxu0 %v3499
    %v3937 = vpop.f32.mrb[0].mxu0
    %v3938 = vadd.f32 %v3861, %v3937
    %v3939 = vpop.f32.mrb[0].mxu0
    %v3940 = vadd.f32 %v3863, %v3939
    %3941 = vmatprep.mubr.f32.mxu0 %v3507
    %3942 = vmatmul.mubr.f32.gmra.mrb[0].mxu0 %v3496
    %v3943 = vpop.f32.mrb[0].mxu0
    %v3944 = vadd.f32 %v3867, %v3943
    %v3945 = vpop.f32.mrb[0].mxu0
    %v3946 = vadd.f32 %v3869, %v3945
    %3947 = vdwg.mxu0
    %v3948 = vtanh.pop %v3938
    %v3949 = vtanh.pop %v3944
    %v3950 = vxor.u32 %v3940, 2147483648
    %v3951 = vxor.u32 %v3946, 2147483648
    %v3952 = vmul.f32 %v3950, 1.442695
    %v3953 = vpow.pop %v3952
    %v3954 = vmul.f32 %v3951, 1.442695
    %v3955 = vpow.pop %v3954
    %v3956 = vadd.f32 %v3953, 1.0
    %v3957 = vadd.f32 %v3955, 1.0
    %v3958 = vrcp.pop %v3956
    %v3959 = vmul.f32 1.0, %v3958
    %v3960 = vrcp.pop %v3957
    %v3961 = vmul.f32 1.0, %v3960
    %v3962 = vmul.f32 %v3948, %v3959
    %v3963 = vmul.f32 %v3949, %v3961
    %s3964 = scalar_lea.vmem [#allocation16], 768
    %v3965 = vld [vmem:[%s3964] sm:$0xff]
    %v3966 = vld [vmem:[%s3964 + $0x8] sm:$0xff]
    %v3967 = vld [vmem:[%s3964 + $0x10] sm:$0xff]
    %v3968 = vld [vmem:[%s3964 + $0x18] sm:$0xff]
    %v3969 = vld [vmem:[%s3964 + $0x20] sm:$0xff]
    %v3970 = vld [vmem:[%s3964 + $0x28] sm:$0xff]
    %v3971 = vld [vmem:[%s3964 + $0x30] sm:$0xff]
    %v3972 = vld [vmem:[%s3964 + $0x38] sm:$0xff]
    %v3973 = vld [vmem:[%s3964 + $0x40] sm:$0xff]
    %v3974 = vld [vmem:[%s3964 + $0x48] sm:$0xff]
    %v3975 = vld [vmem:[%s3964 + $0x50] sm:$0xff]
    %v3976 = vld [vmem:[%s3964 + $0x58] sm:$0xff]
    %v3977 = vld [vmem:[%s3964 + $0x60] sm:$0xff]
    %v3978 = vld [vmem:[%s3964 + $0x68] sm:$0xff]
    %v3979 = vld [vmem:[%s3964 + $0x70] sm:$0xff]
    %v3980 = vld [vmem:[%s3964 + $0x78] sm:$0xff]
    %v3981 = vld [vmem:[%s3964 + $0x80] sm:$0xff]
    %v3982 = vld [vmem:[%s3964 + $0x88] sm:$0xff]
    %v3983 = vld [vmem:[%s3964 + $0x90] sm:$0xff]
    %v3984 = vld [vmem:[%s3964 + $0x98] sm:$0xff]
    %v3985 = vld [vmem:[%s3964 + $0xa0] sm:$0xff]
    %v3986 = vld [vmem:[%s3964 + $0xa8] sm:$0xff]
    %v3987 = vld [vmem:[%s3964 + $0xb0] sm:$0xff]
    %v3988 = vld [vmem:[%s3964 + $0xb8] sm:$0xff]
    %v3989 = vld [vmem:[%s3964 + $0xc0] sm:$0xff]
    %v3990 = vld [vmem:[%s3964 + $0xc8] sm:$0xff]
    %v3991 = vld [vmem:[%s3964 + $0xd0] sm:$0xff]
    %v3992 = vld [vmem:[%s3964 + $0xd8] sm:$0xff]
    %v3993 = vld [vmem:[%s3964 + $0xe0] sm:$0xff]
    %v3994 = vld [vmem:[%s3964 + $0xe8] sm:$0xff]
    %v3995 = vld [vmem:[%s3964 + $0xf0] sm:$0xff]
    %v3996 = vld [vmem:[%s3964 + $0xf8] sm:$0xff]
    %s3997 = scalar_lea.vmem [#allocation18], 6
    %v3998 = vld [vmem:[%s3997] sm:$0x3]
    %v4000 = vlaneseq
    %v4001 = vshrl.u32 %v4000, 7
    %v4002 = vsub.s32 0, %v4001
    %v4003 = vrot.slane %v3998, %v4002
    %4005 = vmatprep.subr.mxu0 %v3966
    %4006 = vmatpush1.msra.mxu0 %v3965
    %4007 = vmatprep.subr.mxu0 %v3968
    %4008 = vmatpush1.msra.mxu0 %v3967
    %4009 = vmatprep.subr.mxu0 %v3970
    %4010 = vmatpush1.msra.mxu0 %v3969
    %4011 = vmatprep.subr.mxu0 %v3972
    %4012 = vmatpush1.msra.mxu0 %v3971
    %4013 = vmatprep.subr.mxu0 %v3974
    %4014 = vmatpush1.msra.mxu0 %v3973
    %4015 = vmatprep.subr.mxu0 %v3976
    %4016 = vmatpush1.msra.mxu0 %v3975
    %4017 = vmatprep.subr.mxu0 %v3978
    %4018 = vmatpush1.msra.mxu0 %v3977
    %4019 = vmatprep.subr.mxu0 %v3980
    %4020 = vmatpush1.msra.mxu0 %v3979
    %4021 = vmatprep.subr.mxu0 %v3982
    %4022 = vmatpush1.msra.mxu0 %v3981
    %4023 = vmatprep.subr.mxu0 %v3984
    %4024 = vmatpush1.msra.mxu0 %v3983
    %4025 = vmatprep.subr.mxu0 %v3986
    %4026 = vmatpush1.msra.mxu0 %v3985
    %4027 = vmatprep.subr.mxu0 %v3988
    %4028 = vmatpush1.msra.mxu0 %v3987
    %4029 = vmatprep.subr.mxu0 %v3990
    %4030 = vmatpush1.msra.mxu0 %v3989
    %4031 = vmatprep.subr.mxu0 %v3992
    %4032 = vmatpush1.msra.mxu0 %v3991
    %4033 = vmatprep.subr.mxu0 %v3994
    %4034 = vmatpush1.msra.mxu0 %v3993
    %4035 = vmatprep.subr.mxu0 %v3996
    %4036 = vmatpush1.msra.mxu0 %v3995
    %4037 = vmatprep.subr.mxu0 0.0
    %4038 = vmatpush1.msra.mxu0 0.0
    %4039 = vmatprep.subr.mxu0 0.0
    %4040 = vmatpush1.msra.mxu0 0.0
    %4041 = vmatprep.subr.mxu0 0.0
    %4042 = vmatpush1.msra.mxu0 0.0
    %4043 = vmatprep.subr.mxu0 0.0
    %4044 = vmatpush1.msra.mxu0 0.0
    %4045 = vmatprep.subr.mxu0 0.0
    %4046 = vmatpush1.msra.mxu0 0.0
    %4047 = vmatprep.subr.mxu0 0.0
    %4048 = vmatpush1.msra.mxu0 0.0
    %4049 = vmatprep.subr.mxu0 0.0
    %4050 = vmatpush1.msra.mxu0 0.0
    %4051 = vmatprep.subr.mxu0 0.0
    %4052 = vmatpush1.msra.mxu0 0.0
    %4053 = vmatprep.subr.mxu0 0.0
    %4054 = vmatpush1.msra.mxu0 0.0
    %4055 = vmatprep.subr.mxu0 0.0
    %4056 = vmatpush1.msra.mxu0 0.0
    %4057 = vmatprep.subr.mxu0 0.0
    %4058 = vmatpush1.msra.mxu0 0.0
    %4059 = vmatprep.subr.mxu0 0.0
    %4060 = vmatpush1.msra.mxu0 0.0
    %4061 = vmatprep.subr.mxu0 0.0
    %4062 = vmatpush1.msra.mxu0 0.0
    %4063 = vmatprep.subr.mxu0 0.0
    %4064 = vmatpush1.msra.mxu0 0.0
    %4065 = vmatprep.subr.mxu0 0.0
    %4066 = vmatpush1.msra.mxu0 0.0
    %4067 = vmatprep.subr.mxu0 0.0
    %4068 = vmatpush1.msra.mxu0 0.0
    %4069 = vmatprep.mubr.f32.mxu0 0.0
    %4070 = vmatmul.mubr.f32.gmra.mrb[0].mxu0 %v3962
    %v4071 = vpop.f32.mrb[0].mxu0
    %v4072 = vadd.f32 %v4003, %v4071
    %v4073 = vpop.f32.mrb[0].mxu0
    %4074 = vmatprep.mubr.f32.mxu0 0.0
    %4075 = vmatmul.mubr.f32.gmra.mrb[0].mxu0 %v3963
    %v4076 = vpop.f32.mrb[0].mxu0
    %v4077 = vadd.f32 %v4003, %v4076
    %v4078 = vpop.f32.mrb[0].mxu0
    %4079 = vdwg.mxu0
    %v4082 = vrot.slane %v3203, 2
    %v4083 = vrot.slane %v3204, 2
    %v4084 = vsel %vm684, %v4082, %v4083
    %v4087 = vrot.slane %v3204, 4
    %v4088 = vrot.slane %v3205, 4
    %v4089 = vsel %vm655, %v4087, %v4088
    %v4092 = vsel %vm647, %v4084, %v4087
    %v4093 = vadd.f32 %v4072, %v4092
    %v4094 = vadd.f32 %v4077, %v4089
    %v4095 = vmax.f32 %v4093, 0.0
    %v4096 = vmax.f32 %v4094, 0.0
    %v4097 = vld [vmem:[#allocation19] sm:$0xff]
    %v4098 = vld [vmem:[#allocation19 + $0x8] sm:$0xff]
    %v4099 = vld [vmem:[#allocation19 + $0x10] sm:$0xff]
    %v4100 = vld [vmem:[#allocation19 + $0x18] sm:$0xff]
    %v4101 = vld [vmem:[#allocation19 + $0x20] sm:$0xff]
    %v4102 = vld [vmem:[#allocation19 + $0x28] sm:$0xff]
    %v4103 = vld [vmem:[#allocation19 + $0x30] sm:$0xff]
    %v4104 = vld [vmem:[#allocation19 + $0x38] sm:$0xff]
    %v4105 = vld [vmem:[#allocation19 + $0x40] sm:$0xff]
    %v4106 = vld [vmem:[#allocation19 + $0x48] sm:$0xff]
    %v4107 = vld [vmem:[#allocation19 + $0x50] sm:$0xff]
    %v4108 = vld [vmem:[#allocation19 + $0x58] sm:$0xff]
    %v4109 = vld [vmem:[#allocation19 + $0x60] sm:$0xff]
    %v4110 = vld [vmem:[#allocation19 + $0x68] sm:$0xff]
    %v4111 = vld [vmem:[#allocation19 + $0x70] sm:$0xff]
    %v4112 = vld [vmem:[#allocation19 + $0x78] sm:$0xff]
    %v4113 = vld [vmem:[#allocation21] sm:$0x1]
    %v4115 = vlaneseq
    %v4116 = vshrl.u32 %v4115, 7
    %v4117 = vsub.s32 0, %v4116
    %v4118 = vrot.slane %v4113, %v4117
    %4120 = vmatprep.subr.mxu0 0.0
    %4121 = vmatpush1.msra.mxu0 %v4097
    %4122 = vmatprep.subr.mxu0 0.0
    %4123 = vmatpush1.msra.mxu0 %v4098
    %4124 = vmatprep.subr.mxu0 0.0
    %4125 = vmatpush1.msra.mxu0 %v4099
    %4126 = vmatprep.subr.mxu0 0.0
    %4127 = vmatpush1.msra.mxu0 %v4100
    %4128 = vmatprep.subr.mxu0 0.0
    %4129 = vmatpush1.msra.mxu0 %v4101
    %4130 = vmatprep.subr.mxu0 0.0
    %4131 = vmatpush1.msra.mxu0 %v4102
    %4132 = vmatprep.subr.mxu0 0.0
    %4133 = vmatpush1.msra.mxu0 %v4103
    %4134 = vmatprep.subr.mxu0 0.0
    %4135 = vmatpush1.msra.mxu0 %v4104
    %4136 = vmatprep.subr.mxu0 0.0
    %4137 = vmatpush1.msra.mxu0 %v4105
    %4138 = vmatprep.subr.mxu0 0.0
    %4139 = vmatpush1.msra.mxu0 %v4106
    %4140 = vmatprep.subr.mxu0 0.0
    %4141 = vmatpush1.msra.mxu0 %v4107
    %4142 = vmatprep.subr.mxu0 0.0
    %4143 = vmatpush1.msra.mxu0 %v4108
    %4144 = vmatprep.subr.mxu0 0.0
    %4145 = vmatpush1.msra.mxu0 %v4109
    %4146 = vmatprep.subr.mxu0 0.0
    %4147 = vmatpush1.msra.mxu0 %v4110
    %4148 = vmatprep.subr.mxu0 0.0
    %4149 = vmatpush1.msra.mxu0 %v4111
    %4150 = vmatprep.subr.mxu0 0.0
    %4151 = vmatpush1.msra.mxu0 %v4112
    %4152 = vmatprep.subr.mxu0 0.0
    %4153 = vmatpush1.msra.mxu0 0.0
    %4154 = vmatprep.subr.mxu0 0.0
    %4155 = vmatpush1.msra.mxu0 0.0
    %4156 = vmatprep.subr.mxu0 0.0
    %4157 = vmatpush1.msra.mxu0 0.0
    %4158 = vmatprep.subr.mxu0 0.0
    %4159 = vmatpush1.msra.mxu0 0.0
    %4160 = vmatprep.subr.mxu0 0.0
    %4161 = vmatpush1.msra.mxu0 0.0
    %4162 = vmatprep.subr.mxu0 0.0
    %4163 = vmatpush1.msra.mxu0 0.0
    %4164 = vmatprep.subr.mxu0 0.0
    %4165 = vmatpush1.msra.mxu0 0.0
    %4166 = vmatprep.subr.mxu0 0.0
    %4167 = vmatpush1.msra.mxu0 0.0
    %4168 = vmatprep.subr.mxu0 0.0
    %4169 = vmatpush1.msra.mxu0 0.0
    %4170 = vmatprep.subr.mxu0 0.0
    %4171 = vmatpush1.msra.mxu0 0.0
    %4172 = vmatprep.subr.mxu0 0.0
    %4173 = vmatpush1.msra.mxu0 0.0
    %4174 = vmatprep.subr.mxu0 0.0
    %4175 = vmatpush1.msra.mxu0 0.0
    %4176 = vmatprep.subr.mxu0 0.0
    %4177 = vmatpush1.msra.mxu0 0.0
    %4178 = vmatprep.subr.mxu0 0.0
    %4179 = vmatpush1.msra.mxu0 0.0
    %4180 = vmatprep.subr.mxu0 0.0
    %4181 = vmatpush1.msra.mxu0 0.0
    %4182 = vmatprep.subr.mxu0 0.0
    %4183 = vmatpush1.msra.mxu0 0.0
    %4184 = vmatprep.mubr.f32.mxu0 0.0
    %4185 = vmatmul.mubr.f32.gmra.mrb[0].mxu0 %v4095
    %v4186 = vpop.f32.mrb[0].mxu0
    %v4187 = vadd.f32 %v4118, %v4186
    %v4188 = vpop.f32.mrb[0].mxu0
    %4189 = vmatprep.mubr.f32.mxu0 0.0
    %4190 = vmatmul.mubr.f32.gmra.mrb[0].mxu0 %v4096
    %v4191 = vpop.f32.mrb[0].mxu0
    %v4192 = vadd.f32 %v4118, %v4191
    %v4193 = vpop.f32.mrb[0].mxu0
    %4194 = vdwg.mxu0
    %v4195 = vmax.f32 %v4187, 0.0
    %v4196 = vmax.f32 %v4192, 0.0
    %v4197 = vld [vmem:[#allocation22] sm:$0xff]
    %v4198 = vld [vmem:[%s15] sm:$0xff]
    %4200 = vset.pattern.permute.xlu0 0
    %4201 = vperm.xlu0 %4200, %v4198
    %v4202 = vpop.permute.xlu0 %4201
    %4204 = vmatprep.subr.mxu0 0.0
    %4205 = vmatpush1.xpose.msra.mxu0 %v4195
    %4206 = vmatprep.subr.mxu0 0.0
    %4207 = vmatpush1.xpose.msra.mxu0 0.0
    %4208 = vmatprep.subr.mxu0 0.0
    %4209 = vmatpush1.xpose.msra.mxu0 0.0
    %4210 = vmatprep.subr.mxu0 0.0
    %4211 = vmatpush1.xpose.msra.mxu0 0.0
    %4212 = vmatprep.subr.mxu0 0.0
    %4213 = vmatpush1.xpose.msra.mxu0 0.0
    %4214 = vmatprep.subr.mxu0 0.0
    %4215 = vmatpush1.xpose.msra.mxu0 0.0
    %4216 = vmatprep.subr.mxu0 0.0
    %4217 = vmatpush1.xpose.msra.mxu0 0.0
    %4218 = vmatprep.subr.mxu0 0.0
    %4219 = vmatpush1.xpose.msra.mxu0 0.0
    %4220 = vmatprep.subr.mxu0 0.0
    %4221 = vmatpush1.xpose.msra.mxu0 0.0
    %4222 = vmatprep.subr.mxu0 0.0
    %4223 = vmatpush1.xpose.msra.mxu0 0.0
    %4224 = vmatprep.subr.mxu0 0.0
    %4225 = vmatpush1.xpose.msra.mxu0 0.0
    %4226 = vmatprep.subr.mxu0 0.0
    %4227 = vmatpush1.xpose.msra.mxu0 0.0
    %4228 = vmatprep.subr.mxu0 0.0
    %4229 = vmatpush1.xpose.msra.mxu0 0.0
    %4230 = vmatprep.subr.mxu0 0.0
    %4231 = vmatpush1.xpose.msra.mxu0 0.0
    %4232 = vmatprep.subr.mxu0 0.0
    %4233 = vmatpush1.xpose.msra.mxu0 0.0
    %4234 = vmatprep.subr.mxu0 0.0
    %4235 = vmatpush1.xpose.msra.mxu0 0.0
    %4236 = vmatprep.subr.mxu0 0.0
    %4237 = vmatpush1.xpose.msra.mxu0 0.0
    %4238 = vmatprep.subr.mxu0 0.0
    %4239 = vmatpush1.xpose.msra.mxu0 0.0
    %4240 = vmatprep.subr.mxu0 0.0
    %4241 = vmatpush1.xpose.msra.mxu0 0.0
    %4242 = vmatprep.subr.mxu0 0.0
    %4243 = vmatpush1.xpose.msra.mxu0 0.0
    %4244 = vmatprep.subr.mxu0 0.0
    %4245 = vmatpush1.xpose.msra.mxu0 0.0
    %4246 = vmatprep.subr.mxu0 0.0
    %4247 = vmatpush1.xpose.msra.mxu0 0.0
    %4248 = vmatprep.subr.mxu0 0.0
    %4249 = vmatpush1.xpose.msra.mxu0 0.0
    %4250 = vmatprep.subr.mxu0 0.0
    %4251 = vmatpush1.xpose.msra.mxu0 0.0
    %4252 = vmatprep.subr.mxu0 0.0
    %4253 = vmatpush1.xpose.msra.mxu0 0.0
    %4254 = vmatprep.subr.mxu0 0.0
    %4255 = vmatpush1.xpose.msra.mxu0 0.0
    %4256 = vmatprep.subr.mxu0 0.0
    %4257 = vmatpush1.xpose.msra.mxu0 0.0
    %4258 = vmatprep.subr.mxu0 0.0
    %4259 = vmatpush1.xpose.msra.mxu0 0.0
    %4260 = vmatprep.subr.mxu0 0.0
    %4261 = vmatpush1.xpose.msra.mxu0 0.0
    %4262 = vmatprep.subr.mxu0 0.0
    %4263 = vmatpush1.xpose.msra.mxu0 0.0
    %4264 = vmatprep.subr.mxu0 0.0
    %4265 = vmatpush1.xpose.msra.mxu0 0.0
    %4266 = vmatprep.subr.mxu0 0.0
    %4267 = vmatpush1.xpose.msra.mxu0 0.0
    %4268 = vmatprep.mubr.f32.mxu0 0.0
    %4269 = vmatmul.mubr.f32.gmra.mrb[0].mxu0 %v4197
    %v4270 = vpop.f32.mrb[0].mxu0
    %v4271 = vadd.f32 %v4202, %v4270
    %v4272 = vpop.f32.mrb[0].mxu0
    %4273 = vdwg.mxu0
    %vm4274 = vcmask 56320
    %4275 = vst.msk [vmem:[%s16] sm:$0xff] %vm4274, %v4271
    %v4276 = vld [vmem:[#allocation22] sm:$0xff]
    %v4277 = vld [vmem:[%s15] sm:$0xff]
    %4279 = vset.pattern.permute.xlu0 0
    %4280 = vperm.xlu0 %4279, %v4277
    %v4281 = vpop.permute.xlu0 %4280
    %v4285 = vrot.slane %v4195, 7
    %v4286 = vrot.slane %v4196, 7
    %v4287 = vsel %vm2530, %v4285, %v4286
    %4289 = vmatprep.subr.mxu0 0.0
    %4290 = vmatpush1.xpose.msra.mxu0 %v4287
    %4291 = vmatprep.subr.mxu0 0.0
    %4292 = vmatpush1.xpose.msra.mxu0 0.0
    %4293 = vmatprep.subr.mxu0 0.0
    %4294 = vmatpush1.xpose.msra.mxu0 0.0
    %4295 = vmatprep.subr.mxu0 0.0
    %4296 = vmatpush1.xpose.msra.mxu0 0.0
    %4297 = vmatprep.subr.mxu0 0.0
    %4298 = vmatpush1.xpose.msra.mxu0 0.0
    %4299 = vmatprep.subr.mxu0 0.0
    %4300 = vmatpush1.xpose.msra.mxu0 0.0
    %4301 = vmatprep.subr.mxu0 0.0
    %4302 = vmatpush1.xpose.msra.mxu0 0.0
    %4303 = vmatprep.subr.mxu0 0.0
    %4304 = vmatpush1.xpose.msra.mxu0 0.0
    %4305 = vmatprep.subr.mxu0 0.0
    %4306 = vmatpush1.xpose.msra.mxu0 0.0
    %4307 = vmatprep.subr.mxu0 0.0
    %4308 = vmatpush1.xpose.msra.mxu0 0.0
    %4309 = vmatprep.subr.mxu0 0.0
    %4310 = vmatpush1.xpose.msra.mxu0 0.0
    %4311 = vmatprep.subr.mxu0 0.0
    %4312 = vmatpush1.xpose.msra.mxu0 0.0
    %4313 = vmatprep.subr.mxu0 0.0
    %4314 = vmatpush1.xpose.msra.mxu0 0.0
    %4315 = vmatprep.subr.mxu0 0.0
    %4316 = vmatpush1.xpose.msra.mxu0 0.0
    %4317 = vmatprep.subr.mxu0 0.0
    %4318 = vmatpush1.xpose.msra.mxu0 0.0
    %4319 = vmatprep.subr.mxu0 0.0
    %4320 = vmatpush1.xpose.msra.mxu0 0.0
    %4321 = vmatprep.subr.mxu0 0.0
    %4322 = vmatpush1.xpose.msra.mxu0 0.0
    %4323 = vmatprep.subr.mxu0 0.0
    %4324 = vmatpush1.xpose.msra.mxu0 0.0
    %4325 = vmatprep.subr.mxu0 0.0
    %4326 = vmatpush1.xpose.msra.mxu0 0.0
    %4327 = vmatprep.subr.mxu0 0.0
    %4328 = vmatpush1.xpose.msra.mxu0 0.0
    %4329 = vmatprep.subr.mxu0 0.0
    %4330 = vmatpush1.xpose.msra.mxu0 0.0
    %4331 = vmatprep.subr.mxu0 0.0
    %4332 = vmatpush1.xpose.msra.mxu0 0.0
    %4333 = vmatprep.subr.mxu0 0.0
    %4334 = vmatpush1.xpose.msra.mxu0 0.0
    %4335 = vmatprep.subr.mxu0 0.0
    %4336 = vmatpush1.xpose.msra.mxu0 0.0
    %4337 = vmatprep.subr.mxu0 0.0
    %4338 = vmatpush1.xpose.msra.mxu0 0.0
    %4339 = vmatprep.subr.mxu0 0.0
    %4340 = vmatpush1.xpose.msra.mxu0 0.0
    %4341 = vmatprep.subr.mxu0 0.0
    %4342 = vmatpush1.xpose.msra.mxu0 0.0
    %4343 = vmatprep.subr.mxu0 0.0
    %4344 = vmatpush1.xpose.msra.mxu0 0.0
    %4345 = vmatprep.subr.mxu0 0.0
    %4346 = vmatpush1.xpose.msra.mxu0 0.0
    %4347 = vmatprep.subr.mxu0 0.0
    %4348 = vmatpush1.xpose.msra.mxu0 0.0
    %4349 = vmatprep.subr.mxu0 0.0
    %4350 = vmatpush1.xpose.msra.mxu0 0.0
    %4351 = vmatprep.subr.mxu0 0.0
    %4352 = vmatpush1.xpose.msra.mxu0 0.0
    %4353 = vmatprep.mubr.f32.mxu0 0.0
    %4354 = vmatmul.mubr.f32.gmra.mrb[0].mxu0 %v4276
    %v4355 = vpop.f32.mrb[0].mxu0
    %v4356 = vadd.f32 %v4281, %v4355
    %v4357 = vpop.f32.mrb[0].mxu0
    %4358 = vdwg.mxu0
    %s4359 = scalar_lea.vmem %s16, 8
    %4360 = vst.msk [vmem:[%s4359] sm:$0xff] %vm4274, %v4356
    // Predicated region
    $region122: #{tpu_custom_call.1} parent=1 // pred_check
      _
    $region123: #{tpu_custom_call.1} parent=1 // pred_check_branch
      %4362 = sbr.rel (0) target = $region125
    $region124: #{tpu_custom_call.1} parent=1 // pred_region
      _
    $region125: #{tpu_custom_call.1} parent=1 // pred_fallthru
      _
    // Predicated region
    $region126: #{tpu_custom_call.1} parent=1 // pred_check
      _
    $region127: #{tpu_custom_call.1} parent=1 // pred_check_branch
      %4364 = sbr.rel (0) target = $region129
    $region128: #{tpu_custom_call.1} parent=1 // pred_region
      _
    $region129: #{tpu_custom_call.1} parent=1 // pred_fallthru
      _
    %4365 = vsyncpa [#allocation3], 1
    %4366 = vsyncpa [#allocation5], 1
    %4367 = vsyncpa [#allocation8], 1
    %4368 = vsyncpa [#allocation11], 1
    %4369 = vsyncpa [#allocation14], 1
    %4370 = vsyncpa [#allocation17], 1
    %4371 = vsyncpa [#allocation20], 1
    %4372 = vsyncpa [#allocation23], 1

</llo_original>
